<compile_context>
chip_gen: v7x
topology: tpu7x:2x2x1
jax: 0.10.0
libtpu: 0.0.40
codegen_flags: <defaults>
</compile_context>

<pallas_src>
import functools

import jax
import jax.numpy as jnp
import numpy as np
from jax.experimental import pallas as pl
from jax.experimental.pallas import tpu as pltpu


def _softplus(x):
    # numerically stable softplus (used by both kernel and reference)
    return jnp.log1p(jnp.exp(-jnp.abs(x))) + jnp.maximum(x, 0.0)


def sparse_moe_kernel(x_ref, z_ref, wrn_ref, brn_ref,
                      w1_ref, b1_ref, w2_ref, b2_ref, out_ref,
                      *, top_k, num_experts, hidden):
    """Grid = (token_tiles,). One grid step does gating + ALL experts."""
    E, H = num_experts, hidden
    x = x_ref[...]                                            # (TM, C) f32

    # ---------------- gating (f32: expert selection must not be perturbed) ---
    # Router and noise projections fused into one MXU call: wrn = [Wr | Wn].
    rn = jnp.dot(x, wrn_ref[...], preferred_element_type=jnp.float32) + brn_ref[...]
    logits = rn[:, :E]
    nlog = rn[:, E:]
    noisy = logits + z_ref[...] * _softplus(nlog)             # (TM, E)

    # Exact top-k membership mask with lowest-index tie-break (matches
    # torch.topk / jax.lax.top_k): pick the current max one element at a time.
    lane = jax.lax.broadcasted_iota(jnp.int32, noisy.shape, 1)
    cur = noisy
    selected = jnp.zeros(noisy.shape, dtype=jnp.bool_)
    for _ in range(top_k):                                    # static, tiny
        row_max = jnp.max(cur, axis=-1, keepdims=True)
        first = jnp.min(jnp.where(cur == row_max, lane, E), axis=-1, keepdims=True)
        pick = lane == first
        selected = jnp.logical_or(selected, pick)
        cur = jnp.where(pick, -jnp.inf, cur)

    # softmax over the sparse (-inf elsewhere) logits == masked softmax.
    # Divide goes to the EUP via approx reciprocal (free bundle slot).
    row_max = jnp.max(noisy, axis=-1, keepdims=True)
    ex = jnp.where(selected, jnp.exp(noisy - row_max), 0.0)
    gate = ex * pl.reciprocal(jnp.sum(ex, axis=-1, keepdims=True), approx=True)

    # ---------------- expert path: unrolled per-expert loop ------------------
    # bf16 MXU operands, f32 accumulation; elementwise (bias+ReLU+gate) in f32
    # (v5e has no bf16 VPU datapath).  Live intermediate capped at (TM, H).
    xb = x.astype(w1_ref.dtype)
    y = jnp.dot(gate, b2_ref[...], preferred_element_type=jnp.float32)  # (TM, C)
    for e in range(E):                                        # static unroll
        lo, hi = e * H, (e + 1) * H
        h = jnp.dot(xb, w1_ref[:, lo:hi], preferred_element_type=jnp.float32)
        h = jnp.maximum(h + b1_ref[:, lo:hi], 0.0)            # (TM, H) f32
        hg = (h * gate[:, e:e + 1]).astype(w2_ref.dtype)      # bf16 operand
        y = y + jnp.dot(hg, w2_ref[lo:hi, :], preferred_element_type=jnp.float32)

    out_ref[...] = y.astype(out_ref.dtype)


def _round_up(n, m):
    return -(-n // m) * m


def _choose_tile_m(n):
    """MXU-friendly token tile: fill the M dimension before splitting into
    multiple grid steps.  Single tile up to 512 tokens; >= 256 per step
    otherwise (so megacore sharding never starves the MXU)."""
    n8 = _round_up(n, 8)
    if n8 <= 512:
        return n8
    if n8 % 512 == 0:
        return 512
    return 256


def _vmem_limit_bytes(frac=0.85):
    """Generation-aware VMEM limit with headroom (≈54 MiB v7x, ≈108 MiB v5e/v6e)."""
    try:
        cap = pltpu.get_tpu_info().vmem_capacity_bytes
    except Exception:
        cap = 64 * 1024 * 1024  # conservative: v7x per-TC VMEM
    return int(cap * frac)


def prepare_moe_weights(params, compute_dtype=jnp.bfloat16):
    """One-time weight re-layout (run at model init, NOT per forward):
    fuse router|noise, flatten experts to lane-dense mats, cast expert-path
    weights to bf16 (halves DMA bytes & resident VMEM)."""
    E, C, H = params["w1"].shape
    wrn = jnp.concatenate([params["wr"], params["wn"]], axis=1)            # (C, 2E)
    brn = jnp.concatenate([params["br"], params["bn"]], axis=1)            # (1, 2E)
    w1f = jnp.transpose(params["w1"], (1, 0, 2)).reshape(C, E * H).astype(compute_dtype)
    b1f = params["b1"].reshape(1, E * H)                                   # f32
    w2f = params["w2"].reshape(E * H, C).astype(compute_dtype)
    b2 = params["b2"].reshape(E, C)                                        # f32
    return dict(wrn=wrn, brn=brn, w1=w1f, b1=b1f, w2=w2f, b2=b2,
                num_experts=E, hidden=H, n_embed=C)


def sparse_moe_forward(x, z, prepped, top_k, tile_m=None):
    B, T, C = x.shape
    N = B * T
    E, H = prepped["num_experts"], prepped["hidden"]
    assert C == prepped["n_embed"]

    xf = x.reshape(N, C)
    zf = z.reshape(N, E)

    TM = tile_m or _choose_tile_m(N)
    N_pad = _round_up(N, TM)
    if N_pad != N:
        # zero-pad tokens; padded rows are sliced off below (no effect on real rows)
        xf = jnp.pad(xf, ((0, N_pad - N), (0, 0)))
        zf = jnp.pad(zf, ((0, N_pad - N), (0, 0)))

    kernel = functools.partial(sparse_moe_kernel, top_k=top_k,
                               num_experts=E, hidden=H)

    def build(single_buffer_weights):
        # Constant-index weight blocks: single-buffered so the resident
        # flattened expert weights are not doubled by the default pipeline.
        w_kw = ({"pipeline_mode": pl.Buffered(1)} if single_buffer_weights else {})
        return pl.pallas_call(
            kernel,
            out_shape=jax.ShapeDtypeStruct((N_pad, C), x.dtype),
            grid_spec=pltpu.PrefetchScalarGridSpec(
                num_scalar_prefetch=0,
                grid=(N_pad // TM,),
                in_specs=[
                    pl.BlockSpec((TM, C), lambda i: (i, 0)),              # x tokens
                    pl.BlockSpec((TM, E), lambda i: (i, 0)),              # gaussian noise
                    pl.BlockSpec((C, 2 * E), lambda i: (0, 0), **w_kw),   # [Wr | Wn]
                    pl.BlockSpec((1, 2 * E), lambda i: (0, 0), **w_kw),   # [br | bn]
                    pl.BlockSpec((C, E * H), lambda i: (0, 0), **w_kw),   # all W1 (bf16)
                    pl.BlockSpec((1, E * H), lambda i: (0, 0), **w_kw),   # all b1
                    pl.BlockSpec((E * H, C), lambda i: (0, 0), **w_kw),   # all W2 (bf16)
                    pl.BlockSpec((E, C), lambda i: (0, 0), **w_kw),       # all b2
                ],
                out_specs=pl.BlockSpec((TM, C), lambda i: (i, 0)),
            ),
            compiler_params=pltpu.CompilerParams(
                dimension_semantics=("parallel",),
                vmem_limit_bytes=_vmem_limit_bytes()),
        )

    args = (xf, zf, prepped["wrn"], prepped["brn"],
            prepped["w1"], prepped["b1"], prepped["w2"], prepped["b2"])
    try:
        out = build(True)(*args)
    except Exception:
        # Fallback for JAX versions whose TPU pallas_call pipeline rejects
        # pipeline_mode=pl.Buffered(1); semantics are identical.
        out = build(False)(*args)
    return out[:N].reshape(B, T, C)


def sparse_moe_reference(x, z, params, top_k, compute_dtype=jnp.float32):
    """Pure-JAX reference. compute_dtype=float32 reproduces the module's math
    exactly; compute_dtype=bfloat16 mirrors the kernel's quantization points
    (bf16 MXU operands, f32 accumulation) for a tight numerical check."""
    B, T, C = x.shape
    E = params["wr"].shape[1]
    xf = x.reshape(-1, C)
    zf = z.reshape(-1, E)
    logits = xf @ params["wr"] + params["br"][0]
    nlog = xf @ params["wn"] + params["bn"][0]
    noisy = logits + zf * _softplus(nlog)
    _, topi = jax.lax.top_k(noisy, top_k)
    mask = jnp.any(jax.nn.one_hot(topi, E, dtype=jnp.bool_), axis=1)
    gate = jax.nn.softmax(jnp.where(mask, noisy, -jnp.inf), axis=-1)

    xq = xf.astype(compute_dtype)
    out = jnp.zeros_like(xf)
    for e in range(E):
        h = jnp.maximum(
            jnp.dot(xq, params["w1"][e].astype(compute_dtype),
                    preferred_element_type=jnp.float32) + params["b1"][e, 0], 0.0)
        hg = (gate[:, e:e + 1] * h).astype(compute_dtype)
        y = jnp.dot(hg, params["w2"][e].astype(compute_dtype),
                    preferred_element_type=jnp.float32)
        out = out + y + gate[:, e:e + 1] * params["b2"][e, 0]
    return out.reshape(B, T, C)


def init_params(key, n_embed, num_experts):
    H = 4 * n_embed
    ks = jax.random.split(key, 8)
    s_in = 1.0 / np.sqrt(n_embed)
    s_h = 1.0 / np.sqrt(H)
    return {
        "wr": jax.random.uniform(ks[0], (n_embed, num_experts), jnp.float32, -s_in, s_in),
        "br": jax.random.uniform(ks[1], (1, num_experts), jnp.float32, -s_in, s_in),
        "wn": jax.random.uniform(ks[2], (n_embed, num_experts), jnp.float32, -s_in, s_in),
        "bn": jax.random.uniform(ks[3], (1, num_experts), jnp.float32, -s_in, s_in),
        "w1": jax.random.uniform(ks[4], (num_experts, n_embed, H), jnp.float32, -s_in, s_in),
        "b1": jax.random.uniform(ks[5], (num_experts, 1, H), jnp.float32, -s_in, s_in),
        "w2": jax.random.uniform(ks[6], (num_experts, H, n_embed), jnp.float32, -s_h, s_h),
        "b2": jax.random.uniform(ks[7], (num_experts, 1, n_embed), jnp.float32, -s_h, s_h),
    }


if __name__ == "__main__":
    n_embed, num_experts, top_k = 32, 8, 2
    B, T = 2, 8

    key = jax.random.PRNGKey(0)
    k_x, k_z, k_p = jax.random.split(key, 3)
    x = jax.random.normal(k_x, (B, T, n_embed), jnp.float32)
    # torch.randn_like(logits) equivalent, precomputed so the kernel is deterministic
    z = jax.random.normal(k_z, (B, T, num_experts), jnp.float32)
    params = init_params(k_p, n_embed, num_experts)

    prepped = prepare_moe_weights(params)          # one-time relayout (model init)
    out = sparse_moe_forward(x, z, prepped, top_k)
    out = jax.block_until_ready(out)

    # Tight check against a reference mirroring the kernel's bf16/f32 mixed
    # precision, plus a looser check against the exact f32 module math.
    ref_bf16 = sparse_moe_reference(x, z, params, top_k, compute_dtype=jnp.bfloat16)
    np.testing.assert_allclose(np.asarray(out), np.asarray(ref_bf16),
                               rtol=2e-2, atol=5e-3)
    ref_f32 = sparse_moe_reference(x, z, params, top_k, compute_dtype=jnp.float32)
    np.testing.assert_allclose(np.asarray(out), np.asarray(ref_f32),
                               rtol=5e-2, atol=2e-2)

    print("KERNEL_OK")
</pallas_src>

<mosaic_0001>
module attributes {stable_mosaic.version = 11 : i64} {
  func.func @sparse_moe_kernel(%arg0: i32, %arg1: memref<16x32xf32, #tpu.memory_space<vmem>>, %arg2: memref<16x8xf32, #tpu.memory_space<vmem>>, %arg3: memref<32x16xf32, #tpu.memory_space<vmem>>, %arg4: memref<1x16xf32, #tpu.memory_space<vmem>>, %arg5: memref<32x1024xbf16, #tpu.memory_space<vmem>>, %arg6: memref<1x1024xf32, #tpu.memory_space<vmem>>, %arg7: memref<1024x32xbf16, #tpu.memory_space<vmem>>, %arg8: memref<8x32xf32, #tpu.memory_space<vmem>>, %arg9: memref<16x32xf32, #tpu.memory_space<vmem>>) attributes {dimension_semantics = [#tpu.dimension_semantics<parallel>], iteration_bounds = array<i64: 1>, scalar_prefetch = 0 : i64, scratch_operands = 0 : i64, tpu.core_type = #tpu.core_type<tc>, window_params = [{transform_indices = @transform_0, window_bounds = array<i64: 16, 32>}, {transform_indices = @transform_1, window_bounds = array<i64: 16, 8>}, {pipeline_mode = #tpu.pipeline_mode<synchronous>, transform_indices = @transform_2, window_bounds = array<i64: 32, 16>}, {pipeline_mode = #tpu.pipeline_mode<synchronous>, transform_indices = @transform_3, window_bounds = array<i64: 1, 16>}, {pipeline_mode = #tpu.pipeline_mode<synchronous>, transform_indices = @transform_4, window_bounds = array<i64: 32, 1024>}, {pipeline_mode = #tpu.pipeline_mode<synchronous>, transform_indices = @transform_5, window_bounds = array<i64: 1, 1024>}, {pipeline_mode = #tpu.pipeline_mode<synchronous>, transform_indices = @transform_6, window_bounds = array<i64: 1024, 32>}, {pipeline_mode = #tpu.pipeline_mode<synchronous>, transform_indices = @transform_7, window_bounds = array<i64: 8, 32>}, {transform_indices = @transform_8, window_bounds = array<i64: 16, 32>}]} {
    %c0 = arith.constant 0 : index
    %c0_0 = arith.constant 0 : index
    %0 = vector.load %arg1[%c0, %c0_0] : memref<16x32xf32, #tpu.memory_space<vmem>>, vector<16x32xf32>
    %c0_1 = arith.constant 0 : index
    %c0_2 = arith.constant 0 : index
    %1 = vector.load %arg3[%c0_1, %c0_2] : memref<32x16xf32, #tpu.memory_space<vmem>>, vector<32x16xf32>
    %cst = arith.constant dense<0.000000e+00> : vector<16x16xf32>
    %2 = tpu.matmul %0, %1, %cst {dimension_numbers = #tpu.dot_dimension_numbers<[1], [0], [0], [1], [0, 0, 1, 1], [], []>} : vector<16x32xf32>, vector<32x16xf32>, vector<16x16xf32> -> vector<16x16xf32>
    %c0_3 = arith.constant 0 : index
    %c0_4 = arith.constant 0 : index
    %3 = vector.load %arg4[%c0_3, %c0_4] : memref<1x16xf32, #tpu.memory_space<vmem>>, vector<1x16xf32>
    %4 = vector.broadcast %3 : vector<1x16xf32> to vector<16x16xf32>
    %5 = arith.addf %2, %4 : vector<16x16xf32>
    %6 = vector.extract_strided_slice %5 {offsets = [0, 0], sizes = [16, 8], strides = [1, 1]} : vector<16x16xf32> to vector<16x8xf32>
    %7 = vector.extract_strided_slice %5 {offsets = [0, 8], sizes = [16, 8], strides = [1, 1]} : vector<16x16xf32> to vector<16x8xf32>
    %c0_5 = arith.constant 0 : index
    %c0_6 = arith.constant 0 : index
    %8 = vector.load %arg2[%c0_5, %c0_6] : memref<16x8xf32, #tpu.memory_space<vmem>>, vector<16x8xf32>
    %9 = math.absf %7 : vector<16x8xf32>
    %cst_7 = arith.constant 0.000000e+00 : f32
    %10 = vector.broadcast %cst_7 : f32 to vector<16x8xf32>
    %11 = arith.subf %10, %9 : vector<16x8xf32>
    %12 = math.exp %11 : vector<16x8xf32>
    %13 = math.log1p %12 : vector<16x8xf32>
    %cst_8 = arith.constant 0.000000e+00 : f32
    %14 = vector.broadcast %cst_8 : f32 to vector<16x8xf32>
    %15 = arith.maximumf %7, %14 : vector<16x8xf32>
    %16 = arith.addf %13, %15 : vector<16x8xf32>
    %17 = arith.mulf %8, %16 : vector<16x8xf32>
    %18 = arith.addf %6, %17 : vector<16x8xf32>
    %19 = tpu.iota {dimensions = array<i32: 1>} : vector<16x8xi32>
    %false = arith.constant false
    %20 = vector.broadcast %false : i1 to vector<16x8xi1>
    %cst_9 = arith.constant dense<0xFF800000> : vector<16xf32>
    %21 = vector.multi_reduction <maximumf>, %18, %cst_9 [1] : vector<16x8xf32> to vector<16xf32>
    %22 = vector.shape_cast %21 : vector<16xf32> to vector<16x1xf32>
    %23 = vector.broadcast %22 : vector<16x1xf32> to vector<16x8xf32>
    %24 = arith.cmpf oeq, %18, %23 : vector<16x8xf32>
    %c8_i32 = arith.constant 8 : i32
    %25 = vector.broadcast %c8_i32 : i32 to vector<16x8xi32>
    %26 = arith.select %24, %19, %25 : vector<16x8xi1>, vector<16x8xi32>
    %cst_10 = arith.constant dense<2147483647> : vector<16xi32>
    %27 = vector.multi_reduction <minsi>, %26, %cst_10 [1] : vector<16x8xi32> to vector<16xi32>
    %28 = vector.shape_cast %27 : vector<16xi32> to vector<16x1xi32>
    %29 = vector.broadcast %28 : vector<16x1xi32> to vector<16x8xi32>
    %30 = arith.cmpi eq, %19, %29 : vector<16x8xi32>
    %31 = arith.ori %20, %30 : vector<16x8xi1>
    %cst_11 = arith.constant 0xFF800000 : f32
    %32 = vector.broadcast %cst_11 : f32 to vector<16x8xf32>
    %33 = arith.select %30, %32, %18 : vector<16x8xi1>, vector<16x8xf32>
    %cst_12 = arith.constant dense<0xFF800000> : vector<16xf32>
    %34 = vector.multi_reduction <maximumf>, %33, %cst_12 [1] : vector<16x8xf32> to vector<16xf32>
    %35 = vector.shape_cast %34 : vector<16xf32> to vector<16x1xf32>
    %36 = vector.broadcast %35 : vector<16x1xf32> to vector<16x8xf32>
    %37 = arith.cmpf oeq, %33, %36 : vector<16x8xf32>
    %c8_i32_13 = arith.constant 8 : i32
    %38 = vector.broadcast %c8_i32_13 : i32 to vector<16x8xi32>
    %39 = arith.select %37, %19, %38 : vector<16x8xi1>, vector<16x8xi32>
    %cst_14 = arith.constant dense<2147483647> : vector<16xi32>
    %40 = vector.multi_reduction <minsi>, %39, %cst_14 [1] : vector<16x8xi32> to vector<16xi32>
    %41 = vector.shape_cast %40 : vector<16xi32> to vector<16x1xi32>
    %42 = vector.broadcast %41 : vector<16x1xi32> to vector<16x8xi32>
    %43 = arith.cmpi eq, %19, %42 : vector<16x8xi32>
    %44 = arith.ori %31, %43 : vector<16x8xi1>
    %cst_15 = arith.constant dense<0xFF800000> : vector<16xf32>
    %45 = vector.multi_reduction <maximumf>, %18, %cst_15 [1] : vector<16x8xf32> to vector<16xf32>
    %46 = vector.shape_cast %45 : vector<16xf32> to vector<16x1xf32>
    %47 = vector.broadcast %46 : vector<16x1xf32> to vector<16x8xf32>
    %48 = arith.subf %18, %47 : vector<16x8xf32>
    %49 = math.exp %48 : vector<16x8xf32>
    %cst_16 = arith.constant 0.000000e+00 : f32
    %50 = vector.broadcast %cst_16 : f32 to vector<16x8xf32>
    %51 = arith.select %44, %49, %50 : vector<16x8xi1>, vector<16x8xf32>
    %cst_17 = arith.constant dense<0.000000e+00> : vector<16xf32>
    %52 = vector.multi_reduction <add>, %51, %cst_17 [1] : vector<16x8xf32> to vector<16xf32>
    %53 = vector.shape_cast %52 : vector<16xf32> to vector<16x1xf32>
    %54 = tpu.reciprocal %53 {approx = true} : vector<16x1xf32> -> vector<16x1xf32>
    %55 = vector.broadcast %54 : vector<16x1xf32> to vector<16x8xf32>
    %56 = arith.mulf %51, %55 : vector<16x8xf32>
    %57 = arith.truncf %0 : vector<16x32xf32> to vector<16x32xbf16>
    %c0_18 = arith.constant 0 : index
    %c0_19 = arith.constant 0 : index
    %58 = vector.load %arg8[%c0_18, %c0_19] : memref<8x32xf32, #tpu.memory_space<vmem>>, vector<8x32xf32>
    %cst_20 = arith.constant dense<0.000000e+00> : vector<16x32xf32>
    %59 = tpu.matmul %56, %58, %cst_20 {dimension_numbers = #tpu.dot_dimension_numbers<[1], [0], [0], [1], [0, 0, 1, 1], [], []>} : vector<16x8xf32>, vector<8x32xf32>, vector<16x32xf32> -> vector<16x32xf32>
    %c0_21 = arith.constant 0 : index
    %c0_22 = arith.constant 0 : index
    %60 = vector.load %arg5[%c0_21, %c0_22] : memref<32x1024xbf16, #tpu.memory_space<vmem>>, vector<32x128xbf16>
    %cst_23 = arith.constant dense<0.000000e+00> : vector<16x128xf32>
    %61 = tpu.matmul %57, %60, %cst_23 {dimension_numbers = #tpu.dot_dimension_numbers<[1], [0], [0], [1], [0, 0, 1, 1], [], []>} : vector<16x32xbf16>, vector<32x128xbf16>, vector<16x128xf32> -> vector<16x128xf32>
    %c0_24 = arith.constant 0 : index
    %c0_25 = arith.constant 0 : index
    %62 = vector.load %arg6[%c0_24, %c0_25] : memref<1x1024xf32, #tpu.memory_space<vmem>>, vector<1x128xf32>
    %63 = vector.broadcast %62 : vector<1x128xf32> to vector<16x128xf32>
    %64 = arith.addf %61, %63 : vector<16x128xf32>
    %cst_26 = arith.constant 0.000000e+00 : f32
    %65 = vector.broadcast %cst_26 : f32 to vector<16x128xf32>
    %66 = arith.maximumf %64, %65 : vector<16x128xf32>
    %67 = vector.extract_strided_slice %56 {offsets = [0, 0], sizes = [16, 1], strides = [1, 1]} : vector<16x8xf32> to vector<16x1xf32>
    %68 = vector.broadcast %67 : vector<16x1xf32> to vector<16x128xf32>
    %69 = arith.mulf %66, %68 : vector<16x128xf32>
    %70 = arith.truncf %69 : vector<16x128xf32> to vector<16x128xbf16>
    %c0_27 = arith.constant 0 : index
    %c0_28 = arith.constant 0 : index
    %71 = vector.load %arg7[%c0_27, %c0_28] : memref<1024x32xbf16, #tpu.memory_space<vmem>>, vector<128x32xbf16>
    %cst_29 = arith.constant dense<0.000000e+00> : vector<16x32xf32>
    %72 = tpu.matmul %70, %71, %cst_29 {dimension_numbers = #tpu.dot_dimension_numbers<[1], [0], [0], [1], [0, 0, 1, 1], [], []>} : vector<16x128xbf16>, vector<128x32xbf16>, vector<16x32xf32> -> vector<16x32xf32>
    %73 = arith.addf %59, %72 : vector<16x32xf32>
    %c0_30 = arith.constant 0 : index
    %c128 = arith.constant 128 : index
    %74 = vector.load %arg5[%c0_30, %c128] : memref<32x1024xbf16, #tpu.memory_space<vmem>>, vector<32x128xbf16>
    %cst_31 = arith.constant dense<0.000000e+00> : vector<16x128xf32>
    %75 = tpu.matmul %57, %74, %cst_31 {dimension_numbers = #tpu.dot_dimension_numbers<[1], [0], [0], [1], [0, 0, 1, 1], [], []>} : vector<16x32xbf16>, vector<32x128xbf16>, vector<16x128xf32> -> vector<16x128xf32>
    %c0_32 = arith.constant 0 : index
    %c128_33 = arith.constant 128 : index
    %76 = vector.load %arg6[%c0_32, %c128_33] : memref<1x1024xf32, #tpu.memory_space<vmem>>, vector<1x128xf32>
    %77 = vector.broadcast %76 : vector<1x128xf32> to vector<16x128xf32>
    %78 = arith.addf %75, %77 : vector<16x128xf32>
    %cst_34 = arith.constant 0.000000e+00 : f32
    %79 = vector.broadcast %cst_34 : f32 to vector<16x128xf32>
    %80 = arith.maximumf %78, %79 : vector<16x128xf32>
    %81 = vector.extract_strided_slice %56 {offsets = [0, 1], sizes = [16, 1], strides = [1, 1]} : vector<16x8xf32> to vector<16x1xf32>
    %82 = vector.broadcast %81 : vector<16x1xf32> to vector<16x128xf32>
    %83 = arith.mulf %80, %82 : vector<16x128xf32>
    %84 = arith.truncf %83 : vector<16x128xf32> to vector<16x128xbf16>
    %c128_35 = arith.constant 128 : index
    %c0_36 = arith.constant 0 : index
    %85 = vector.load %arg7[%c128_35, %c0_36] : memref<1024x32xbf16, #tpu.memory_space<vmem>>, vector<128x32xbf16>
    %cst_37 = arith.constant dense<0.000000e+00> : vector<16x32xf32>
    %86 = tpu.matmul %84, %85, %cst_37 {dimension_numbers = #tpu.dot_dimension_numbers<[1], [0], [0], [1], [0, 0, 1, 1], [], []>} : vector<16x128xbf16>, vector<128x32xbf16>, vector<16x32xf32> -> vector<16x32xf32>
    %87 = arith.addf %73, %86 : vector<16x32xf32>
    %c0_38 = arith.constant 0 : index
    %c256 = arith.constant 256 : index
    %88 = vector.load %arg5[%c0_38, %c256] : memref<32x1024xbf16, #tpu.memory_space<vmem>>, vector<32x128xbf16>
    %cst_39 = arith.constant dense<0.000000e+00> : vector<16x128xf32>
    %89 = tpu.matmul %57, %88, %cst_39 {dimension_numbers = #tpu.dot_dimension_numbers<[1], [0], [0], [1], [0, 0, 1, 1], [], []>} : vector<16x32xbf16>, vector<32x128xbf16>, vector<16x128xf32> -> vector<16x128xf32>
    %c0_40 = arith.constant 0 : index
    %c256_41 = arith.constant 256 : index
    %90 = vector.load %arg6[%c0_40, %c256_41] : memref<1x1024xf32, #tpu.memory_space<vmem>>, vector<1x128xf32>
    %91 = vector.broadcast %90 : vector<1x128xf32> to vector<16x128xf32>
    %92 = arith.addf %89, %91 : vector<16x128xf32>
    %cst_42 = arith.constant 0.000000e+00 : f32
    %93 = vector.broadcast %cst_42 : f32 to vector<16x128xf32>
    %94 = arith.maximumf %92, %93 : vector<16x128xf32>
    %95 = vector.extract_strided_slice %56 {offsets = [0, 2], sizes = [16, 1], strides = [1, 1]} : vector<16x8xf32> to vector<16x1xf32>
    %96 = vector.broadcast %95 : vector<16x1xf32> to vector<16x128xf32>
    %97 = arith.mulf %94, %96 : vector<16x128xf32>
    %98 = arith.truncf %97 : vector<16x128xf32> to vector<16x128xbf16>
    %c256_43 = arith.constant 256 : index
    %c0_44 = arith.constant 0 : index
    %99 = vector.load %arg7[%c256_43, %c0_44] : memref<1024x32xbf16, #tpu.memory_space<vmem>>, vector<128x32xbf16>
    %cst_45 = arith.constant dense<0.000000e+00> : vector<16x32xf32>
    %100 = tpu.matmul %98, %99, %cst_45 {dimension_numbers = #tpu.dot_dimension_numbers<[1], [0], [0], [1], [0, 0, 1, 1], [], []>} : vector<16x128xbf16>, vector<128x32xbf16>, vector<16x32xf32> -> vector<16x32xf32>
    %101 = arith.addf %87, %100 : vector<16x32xf32>
    %c0_46 = arith.constant 0 : index
    %c384 = arith.constant 384 : index
    %102 = vector.load %arg5[%c0_46, %c384] : memref<32x1024xbf16, #tpu.memory_space<vmem>>, vector<32x128xbf16>
    %cst_47 = arith.constant dense<0.000000e+00> : vector<16x128xf32>
    %103 = tpu.matmul %57, %102, %cst_47 {dimension_numbers = #tpu.dot_dimension_numbers<[1], [0], [0], [1], [0, 0, 1, 1], [], []>} : vector<16x32xbf16>, vector<32x128xbf16>, vector<16x128xf32> -> vector<16x128xf32>
    %c0_48 = arith.constant 0 : index
    %c384_49 = arith.constant 384 : index
    %104 = vector.load %arg6[%c0_48, %c384_49] : memref<1x1024xf32, #tpu.memory_space<vmem>>, vector<1x128xf32>
    %105 = vector.broadcast %104 : vector<1x128xf32> to vector<16x128xf32>
    %106 = arith.addf %103, %105 : vector<16x128xf32>
    %cst_50 = arith.constant 0.000000e+00 : f32
    %107 = vector.broadcast %cst_50 : f32 to vector<16x128xf32>
    %108 = arith.maximumf %106, %107 : vector<16x128xf32>
    %109 = vector.extract_strided_slice %56 {offsets = [0, 3], sizes = [16, 1], strides = [1, 1]} : vector<16x8xf32> to vector<16x1xf32>
    %110 = vector.broadcast %109 : vector<16x1xf32> to vector<16x128xf32>
    %111 = arith.mulf %108, %110 : vector<16x128xf32>
    %112 = arith.truncf %111 : vector<16x128xf32> to vector<16x128xbf16>
    %c384_51 = arith.constant 384 : index
    %c0_52 = arith.constant 0 : index
    %113 = vector.load %arg7[%c384_51, %c0_52] : memref<1024x32xbf16, #tpu.memory_space<vmem>>, vector<128x32xbf16>
    %cst_53 = arith.constant dense<0.000000e+00> : vector<16x32xf32>
    %114 = tpu.matmul %112, %113, %cst_53 {dimension_numbers = #tpu.dot_dimension_numbers<[1], [0], [0], [1], [0, 0, 1, 1], [], []>} : vector<16x128xbf16>, vector<128x32xbf16>, vector<16x32xf32> -> vector<16x32xf32>
    %115 = arith.addf %101, %114 : vector<16x32xf32>
    %c0_54 = arith.constant 0 : index
    %c512 = arith.constant 512 : index
    %116 = vector.load %arg5[%c0_54, %c512] : memref<32x1024xbf16, #tpu.memory_space<vmem>>, vector<32x128xbf16>
    %cst_55 = arith.constant dense<0.000000e+00> : vector<16x128xf32>
    %117 = tpu.matmul %57, %116, %cst_55 {dimension_numbers = #tpu.dot_dimension_numbers<[1], [0], [0], [1], [0, 0, 1, 1], [], []>} : vector<16x32xbf16>, vector<32x128xbf16>, vector<16x128xf32> -> vector<16x128xf32>
    %c0_56 = arith.constant 0 : index
    %c512_57 = arith.constant 512 : index
    %118 = vector.load %arg6[%c0_56, %c512_57] : memref<1x1024xf32, #tpu.memory_space<vmem>>, vector<1x128xf32>
    %119 = vector.broadcast %118 : vector<1x128xf32> to vector<16x128xf32>
    %120 = arith.addf %117, %119 : vector<16x128xf32>
    %cst_58 = arith.constant 0.000000e+00 : f32
    %121 = vector.broadcast %cst_58 : f32 to vector<16x128xf32>
    %122 = arith.maximumf %120, %121 : vector<16x128xf32>
    %123 = vector.extract_strided_slice %56 {offsets = [0, 4], sizes = [16, 1], strides = [1, 1]} : vector<16x8xf32> to vector<16x1xf32>
    %124 = vector.broadcast %123 : vector<16x1xf32> to vector<16x128xf32>
    %125 = arith.mulf %122, %124 : vector<16x128xf32>
    %126 = arith.truncf %125 : vector<16x128xf32> to vector<16x128xbf16>
    %c512_59 = arith.constant 512 : index
    %c0_60 = arith.constant 0 : index
    %127 = vector.load %arg7[%c512_59, %c0_60] : memref<1024x32xbf16, #tpu.memory_space<vmem>>, vector<128x32xbf16>
    %cst_61 = arith.constant dense<0.000000e+00> : vector<16x32xf32>
    %128 = tpu.matmul %126, %127, %cst_61 {dimension_numbers = #tpu.dot_dimension_numbers<[1], [0], [0], [1], [0, 0, 1, 1], [], []>} : vector<16x128xbf16>, vector<128x32xbf16>, vector<16x32xf32> -> vector<16x32xf32>
    %129 = arith.addf %115, %128 : vector<16x32xf32>
    %c0_62 = arith.constant 0 : index
    %c640 = arith.constant 640 : index
    %130 = vector.load %arg5[%c0_62, %c640] : memref<32x1024xbf16, #tpu.memory_space<vmem>>, vector<32x128xbf16>
    %cst_63 = arith.constant dense<0.000000e+00> : vector<16x128xf32>
    %131 = tpu.matmul %57, %130, %cst_63 {dimension_numbers = #tpu.dot_dimension_numbers<[1], [0], [0], [1], [0, 0, 1, 1], [], []>} : vector<16x32xbf16>, vector<32x128xbf16>, vector<16x128xf32> -> vector<16x128xf32>
    %c0_64 = arith.constant 0 : index
    %c640_65 = arith.constant 640 : index
    %132 = vector.load %arg6[%c0_64, %c640_65] : memref<1x1024xf32, #tpu.memory_space<vmem>>, vector<1x128xf32>
    %133 = vector.broadcast %132 : vector<1x128xf32> to vector<16x128xf32>
    %134 = arith.addf %131, %133 : vector<16x128xf32>
    %cst_66 = arith.constant 0.000000e+00 : f32
    %135 = vector.broadcast %cst_66 : f32 to vector<16x128xf32>
    %136 = arith.maximumf %134, %135 : vector<16x128xf32>
    %137 = vector.extract_strided_slice %56 {offsets = [0, 5], sizes = [16, 1], strides = [1, 1]} : vector<16x8xf32> to vector<16x1xf32>
    %138 = vector.broadcast %137 : vector<16x1xf32> to vector<16x128xf32>
    %139 = arith.mulf %136, %138 : vector<16x128xf32>
    %140 = arith.truncf %139 : vector<16x128xf32> to vector<16x128xbf16>
    %c640_67 = arith.constant 640 : index
    %c0_68 = arith.constant 0 : index
    %141 = vector.load %arg7[%c640_67, %c0_68] : memref<1024x32xbf16, #tpu.memory_space<vmem>>, vector<128x32xbf16>
    %cst_69 = arith.constant dense<0.000000e+00> : vector<16x32xf32>
    %142 = tpu.matmul %140, %141, %cst_69 {dimension_numbers = #tpu.dot_dimension_numbers<[1], [0], [0], [1], [0, 0, 1, 1], [], []>} : vector<16x128xbf16>, vector<128x32xbf16>, vector<16x32xf32> -> vector<16x32xf32>
    %143 = arith.addf %129, %142 : vector<16x32xf32>
    %c0_70 = arith.constant 0 : index
    %c768 = arith.constant 768 : index
    %144 = vector.load %arg5[%c0_70, %c768] : memref<32x1024xbf16, #tpu.memory_space<vmem>>, vector<32x128xbf16>
    %cst_71 = arith.constant dense<0.000000e+00> : vector<16x128xf32>
    %145 = tpu.matmul %57, %144, %cst_71 {dimension_numbers = #tpu.dot_dimension_numbers<[1], [0], [0], [1], [0, 0, 1, 1], [], []>} : vector<16x32xbf16>, vector<32x128xbf16>, vector<16x128xf32> -> vector<16x128xf32>
    %c0_72 = arith.constant 0 : index
    %c768_73 = arith.constant 768 : index
    %146 = vector.load %arg6[%c0_72, %c768_73] : memref<1x1024xf32, #tpu.memory_space<vmem>>, vector<1x128xf32>
    %147 = vector.broadcast %146 : vector<1x128xf32> to vector<16x128xf32>
    %148 = arith.addf %145, %147 : vector<16x128xf32>
    %cst_74 = arith.constant 0.000000e+00 : f32
    %149 = vector.broadcast %cst_74 : f32 to vector<16x128xf32>
    %150 = arith.maximumf %148, %149 : vector<16x128xf32>
    %151 = vector.extract_strided_slice %56 {offsets = [0, 6], sizes = [16, 1], strides = [1, 1]} : vector<16x8xf32> to vector<16x1xf32>
    %152 = vector.broadcast %151 : vector<16x1xf32> to vector<16x128xf32>
    %153 = arith.mulf %150, %152 : vector<16x128xf32>
    %154 = arith.truncf %153 : vector<16x128xf32> to vector<16x128xbf16>
    %c768_75 = arith.constant 768 : index
    %c0_76 = arith.constant 0 : index
    %155 = vector.load %arg7[%c768_75, %c0_76] : memref<1024x32xbf16, #tpu.memory_space<vmem>>, vector<128x32xbf16>
    %cst_77 = arith.constant dense<0.000000e+00> : vector<16x32xf32>
    %156 = tpu.matmul %154, %155, %cst_77 {dimension_numbers = #tpu.dot_dimension_numbers<[1], [0], [0], [1], [0, 0, 1, 1], [], []>} : vector<16x128xbf16>, vector<128x32xbf16>, vector<16x32xf32> -> vector<16x32xf32>
    %157 = arith.addf %143, %156 : vector<16x32xf32>
    %c0_78 = arith.constant 0 : index
    %c896 = arith.constant 896 : index
    %158 = vector.load %arg5[%c0_78, %c896] : memref<32x1024xbf16, #tpu.memory_space<vmem>>, vector<32x128xbf16>
    %cst_79 = arith.constant dense<0.000000e+00> : vector<16x128xf32>
    %159 = tpu.matmul %57, %158, %cst_79 {dimension_numbers = #tpu.dot_dimension_numbers<[1], [0], [0], [1], [0, 0, 1, 1], [], []>} : vector<16x32xbf16>, vector<32x128xbf16>, vector<16x128xf32> -> vector<16x128xf32>
    %c0_80 = arith.constant 0 : index
    %c896_81 = arith.constant 896 : index
    %160 = vector.load %arg6[%c0_80, %c896_81] : memref<1x1024xf32, #tpu.memory_space<vmem>>, vector<1x128xf32>
    %161 = vector.broadcast %160 : vector<1x128xf32> to vector<16x128xf32>
    %162 = arith.addf %159, %161 : vector<16x128xf32>
    %cst_82 = arith.constant 0.000000e+00 : f32
    %163 = vector.broadcast %cst_82 : f32 to vector<16x128xf32>
    %164 = arith.maximumf %162, %163 : vector<16x128xf32>
    %165 = vector.extract_strided_slice %56 {offsets = [0, 7], sizes = [16, 1], strides = [1, 1]} : vector<16x8xf32> to vector<16x1xf32>
    %166 = vector.broadcast %165 : vector<16x1xf32> to vector<16x128xf32>
    %167 = arith.mulf %164, %166 : vector<16x128xf32>
    %168 = arith.truncf %167 : vector<16x128xf32> to vector<16x128xbf16>
    %c896_83 = arith.constant 896 : index
    %c0_84 = arith.constant 0 : index
    %169 = vector.load %arg7[%c896_83, %c0_84] : memref<1024x32xbf16, #tpu.memory_space<vmem>>, vector<128x32xbf16>
    %cst_85 = arith.constant dense<0.000000e+00> : vector<16x32xf32>
    %170 = tpu.matmul %168, %169, %cst_85 {dimension_numbers = #tpu.dot_dimension_numbers<[1], [0], [0], [1], [0, 0, 1, 1], [], []>} : vector<16x128xbf16>, vector<128x32xbf16>, vector<16x32xf32> -> vector<16x32xf32>
    %171 = arith.addf %157, %170 : vector<16x32xf32>
    %c0_86 = arith.constant 0 : index
    %c0_87 = arith.constant 0 : index
    %172 = vector.load %arg9[%c0_86, %c0_87] : memref<16x32xf32, #tpu.memory_space<vmem>>, vector<16x32xf32>
    tpu.vector_store %arg9[%c0_86, %c0_87], %171 {strides = array<i32>} : memref<16x32xf32, #tpu.memory_space<vmem>>, vector<16x32xf32>,
    return
  }
  func.func @transform_0(%arg0: i32) -> (i32, i32) {
    %c0_i32 = arith.constant 0 : i32
    %c0_i32_0 = arith.constant 0 : i32
    return %arg0, %c0_i32 : i32, i32
  }
  func.func @transform_1(%arg0: i32) -> (i32, i32) {
    %c0_i32 = arith.constant 0 : i32
    %c0_i32_0 = arith.constant 0 : i32
    return %arg0, %c0_i32 : i32, i32
  }
  func.func @transform_2(%arg0: i32) -> (i32, i32) {
    %c0_i32 = arith.constant 0 : i32
    %c0_i32_0 = arith.constant 0 : i32
    %c0_i32_1 = arith.constant 0 : i32
    return %c0_i32, %c0_i32_0 : i32, i32
  }
  func.func @transform_3(%arg0: i32) -> (i32, i32) {
    %c0_i32 = arith.constant 0 : i32
    %c0_i32_0 = arith.constant 0 : i32
    %c0_i32_1 = arith.constant 0 : i32
    return %c0_i32, %c0_i32_0 : i32, i32
  }
  func.func @transform_4(%arg0: i32) -> (i32, i32) {
    %c0_i32 = arith.constant 0 : i32
    %c0_i32_0 = arith.constant 0 : i32
    %c0_i32_1 = arith.constant 0 : i32
    return %c0_i32, %c0_i32_0 : i32, i32
  }
  func.func @transform_5(%arg0: i32) -> (i32, i32) {
    %c0_i32 = arith.constant 0 : i32
    %c0_i32_0 = arith.constant 0 : i32
    %c0_i32_1 = arith.constant 0 : i32
    return %c0_i32, %c0_i32_0 : i32, i32
  }
  func.func @transform_6(%arg0: i32) -> (i32, i32) {
    %c0_i32 = arith.constant 0 : i32
    %c0_i32_0 = arith.constant 0 : i32
    %c0_i32_1 = arith.constant 0 : i32
    return %c0_i32, %c0_i32_0 : i32, i32
  }
  func.func @transform_7(%arg0: i32) -> (i32, i32) {
    %c0_i32 = arith.constant 0 : i32
    %c0_i32_0 = arith.constant 0 : i32
    %c0_i32_1 = arith.constant 0 : i32
    return %c0_i32, %c0_i32_0 : i32, i32
  }
  func.func @transform_8(%arg0: i32) -> (i32, i32) {
    %c0_i32 = arith.constant 0 : i32
    %c0_i32_0 = arith.constant 0 : i32
    return %arg0, %c0_i32 : i32, i32
  }
}

module attributes {stable_mosaic.version = 11 : i64} {
  func.func @sparse_moe_kernel(%arg0: i32, %arg1: memref<16x32xf32, #tpu.memory_space<vmem>>, %arg2: memref<16x8xf32, #tpu.memory_space<vmem>>, %arg3: memref<32x16xf32, #tpu.memory_space<vmem>>, %arg4: memref<1x16xf32, #tpu.memory_space<vmem>>, %arg5: memref<32x1024xbf16, #tpu.memory_space<vmem>>, %arg6: memref<1x1024xf32, #tpu.memory_space<vmem>>, %arg7: memref<1024x32xbf16, #tpu.memory_space<vmem>>, %arg8: memref<8x32xf32, #tpu.memory_space<vmem>>, %arg9: memref<16x32xf32, #tpu.memory_space<vmem>>) attributes {dimension_semantics = [#tpu.dimension_semantics<parallel>], iteration_bounds = array<i64: 1>, scalar_prefetch = 0 : i64, scratch_operands = 0 : i64, tpu.core_type = #tpu.core_type<tc>, window_params = [{transform_indices = @transform_0, window_bounds = array<i64: 16, 32>}, {transform_indices = @transform_1, window_bounds = array<i64: 16, 8>}, {pipeline_mode = #tpu.pipeline_mode<synchronous>, transform_indices = @transform_2, window_bounds = array<i64: 32, 16>}, {pipeline_mode = #tpu.pipeline_mode<synchronous>, transform_indices = @transform_3, window_bounds = array<i64: 1, 16>}, {pipeline_mode = #tpu.pipeline_mode<synchronous>, transform_indices = @transform_4, window_bounds = array<i64: 32, 1024>}, {pipeline_mode = #tpu.pipeline_mode<synchronous>, transform_indices = @transform_5, window_bounds = array<i64: 1, 1024>}, {pipeline_mode = #tpu.pipeline_mode<synchronous>, transform_indices = @transform_6, window_bounds = array<i64: 1024, 32>}, {pipeline_mode = #tpu.pipeline_mode<synchronous>, transform_indices = @transform_7, window_bounds = array<i64: 8, 32>}, {transform_indices = @transform_8, window_bounds = array<i64: 16, 32>}]} {
    %c0 = arith.constant 0 : index
    %c0_0 = arith.constant 0 : index
    %0 = vector.load %arg1[%c0, %c0_0] : memref<16x32xf32, #tpu.memory_space<vmem>>, vector<16x32xf32>
    %c0_1 = arith.constant 0 : index
    %c0_2 = arith.constant 0 : index
    %1 = vector.load %arg3[%c0_1, %c0_2] : memref<32x16xf32, #tpu.memory_space<vmem>>, vector<32x16xf32>
    %cst = arith.constant dense<0.000000e+00> : vector<16x16xf32>
    %2 = tpu.matmul %0, %1, %cst {dimension_numbers = #tpu.dot_dimension_numbers<[1], [0], [0], [1], [0, 0, 1, 1], [], []>} : vector<16x32xf32>, vector<32x16xf32>, vector<16x16xf32> -> vector<16x16xf32>
    %c0_3 = arith.constant 0 : index
    %c0_4 = arith.constant 0 : index
    %3 = vector.load %arg4[%c0_3, %c0_4] : memref<1x16xf32, #tpu.memory_space<vmem>>, vector<1x16xf32>
    %4 = vector.broadcast %3 : vector<1x16xf32> to vector<16x16xf32>
    %5 = arith.addf %2, %4 : vector<16x16xf32>
    %6 = vector.extract_strided_slice %5 {offsets = [0, 0], sizes = [16, 8], strides = [1, 1]} : vector<16x16xf32> to vector<16x8xf32>
    %7 = vector.extract_strided_slice %5 {offsets = [0, 8], sizes = [16, 8], strides = [1, 1]} : vector<16x16xf32> to vector<16x8xf32>
    %c0_5 = arith.constant 0 : index
    %c0_6 = arith.constant 0 : index
    %8 = vector.load %arg2[%c0_5, %c0_6] : memref<16x8xf32, #tpu.memory_space<vmem>>, vector<16x8xf32>
    %9 = math.absf %7 : vector<16x8xf32>
    %cst_7 = arith.constant 0.000000e+00 : f32
    %10 = vector.broadcast %cst_7 : f32 to vector<16x8xf32>
    %11 = arith.subf %10, %9 : vector<16x8xf32>
    %12 = math.exp %11 : vector<16x8xf32>
    %13 = math.log1p %12 : vector<16x8xf32>
    %cst_8 = arith.constant 0.000000e+00 : f32
    %14 = vector.broadcast %cst_8 : f32 to vector<16x8xf32>
    %15 = arith.maximumf %7, %14 : vector<16x8xf32>
    %16 = arith.addf %13, %15 : vector<16x8xf32>
    %17 = arith.mulf %8, %16 : vector<16x8xf32>
    %18 = arith.addf %6, %17 : vector<16x8xf32>
    %19 = tpu.iota {dimensions = array<i32: 1>} : vector<16x8xi32>
    %false = arith.constant false
    %20 = vector.broadcast %false : i1 to vector<16x8xi1>
    %cst_9 = arith.constant dense<0xFF800000> : vector<16xf32>
    %21 = vector.multi_reduction <maximumf>, %18, %cst_9 [1] : vector<16x8xf32> to vector<16xf32>
    %22 = vector.shape_cast %21 : vector<16xf32> to vector<16x1xf32>
    %23 = vector.broadcast %22 : vector<16x1xf32> to vector<16x8xf32>
    %24 = arith.cmpf oeq, %18, %23 : vector<16x8xf32>
    %c8_i32 = arith.constant 8 : i32
    %25 = vector.broadcast %c8_i32 : i32 to vector<16x8xi32>
    %26 = arith.select %24, %19, %25 : vector<16x8xi1>, vector<16x8xi32>
    %cst_10 = arith.constant dense<2147483647> : vector<16xi32>
    %27 = vector.multi_reduction <minsi>, %26, %cst_10 [1] : vector<16x8xi32> to vector<16xi32>
    %28 = vector.shape_cast %27 : vector<16xi32> to vector<16x1xi32>
    %29 = vector.broadcast %28 : vector<16x1xi32> to vector<16x8xi32>
    %30 = arith.cmpi eq, %19, %29 : vector<16x8xi32>
    %31 = arith.ori %20, %30 : vector<16x8xi1>
    %cst_11 = arith.constant 0xFF800000 : f32
    %32 = vector.broadcast %cst_11 : f32 to vector<16x8xf32>
    %33 = arith.select %30, %32, %18 : vector<16x8xi1>, vector<16x8xf32>
    %cst_12 = arith.constant dense<0xFF800000> : vector<16xf32>
    %34 = vector.multi_reduction <maximumf>, %33, %cst_12 [1] : vector<16x8xf32> to vector<16xf32>
    %35 = vector.shape_cast %34 : vector<16xf32> to vector<16x1xf32>
    %36 = vector.broadcast %35 : vector<16x1xf32> to vector<16x8xf32>
    %37 = arith.cmpf oeq, %33, %36 : vector<16x8xf32>
    %c8_i32_13 = arith.constant 8 : i32
    %38 = vector.broadcast %c8_i32_13 : i32 to vector<16x8xi32>
    %39 = arith.select %37, %19, %38 : vector<16x8xi1>, vector<16x8xi32>
    %cst_14 = arith.constant dense<2147483647> : vector<16xi32>
    %40 = vector.multi_reduction <minsi>, %39, %cst_14 [1] : vector<16x8xi32> to vector<16xi32>
    %41 = vector.shape_cast %40 : vector<16xi32> to vector<16x1xi32>
    %42 = vector.broadcast %41 : vector<16x1xi32> to vector<16x8xi32>
    %43 = arith.cmpi eq, %19, %42 : vector<16x8xi32>
    %44 = arith.ori %31, %43 : vector<16x8xi1>
    %cst_15 = arith.constant dense<0xFF800000> : vector<16xf32>
    %45 = vector.multi_reduction <maximumf>, %18, %cst_15 [1] : vector<16x8xf32> to vector<16xf32>
    %46 = vector.shape_cast %45 : vector<16xf32> to vector<16x1xf32>
    %47 = vector.broadcast %46 : vector<16x1xf32> to vector<16x8xf32>
    %48 = arith.subf %18, %47 : vector<16x8xf32>
    %49 = math.exp %48 : vector<16x8xf32>
    %cst_16 = arith.constant 0.000000e+00 : f32
    %50 = vector.broadcast %cst_16 : f32 to vector<16x8xf32>
    %51 = arith.select %44, %49, %50 : vector<16x8xi1>, vector<16x8xf32>
    %cst_17 = arith.constant dense<0.000000e+00> : vector<16xf32>
    %52 = vector.multi_reduction <add>, %51, %cst_17 [1] : vector<16x8xf32> to vector<16xf32>
    %53 = vector.shape_cast %52 : vector<16xf32> to vector<16x1xf32>
    %54 = tpu.reciprocal %53 {approx = true} : vector<16x1xf32> -> vector<16x1xf32>
    %55 = vector.broadcast %54 : vector<16x1xf32> to vector<16x8xf32>
    %56 = arith.mulf %51, %55 : vector<16x8xf32>
    %57 = arith.truncf %0 : vector<16x32xf32> to vector<16x32xbf16>
    %c0_18 = arith.constant 0 : index
    %c0_19 = arith.constant 0 : index
    %58 = vector.load %arg8[%c0_18, %c0_19] : memref<8x32xf32, #tpu.memory_space<vmem>>, vector<8x32xf32>
    %cst_20 = arith.constant dense<0.000000e+00> : vector<16x32xf32>
    %59 = tpu.matmul %56, %58, %cst_20 {dimension_numbers = #tpu.dot_dimension_numbers<[1], [0], [0], [1], [0, 0, 1, 1], [], []>} : vector<16x8xf32>, vector<8x32xf32>, vector<16x32xf32> -> vector<16x32xf32>
    %c0_21 = arith.constant 0 : index
    %c0_22 = arith.constant 0 : index
    %60 = vector.load %arg5[%c0_21, %c0_22] : memref<32x1024xbf16, #tpu.memory_space<vmem>>, vector<32x128xbf16>
    %cst_23 = arith.constant dense<0.000000e+00> : vector<16x128xf32>
    %61 = tpu.matmul %57, %60, %cst_23 {dimension_numbers = #tpu.dot_dimension_numbers<[1], [0], [0], [1], [0, 0, 1, 1], [], []>} : vector<16x32xbf16>, vector<32x128xbf16>, vector<16x128xf32> -> vector<16x128xf32>
    %c0_24 = arith.constant 0 : index
    %c0_25 = arith.constant 0 : index
    %62 = vector.load %arg6[%c0_24, %c0_25] : memref<1x1024xf32, #tpu.memory_space<vmem>>, vector<1x128xf32>
    %63 = vector.broadcast %62 : vector<1x128xf32> to vector<16x128xf32>
    %64 = arith.addf %61, %63 : vector<16x128xf32>
    %cst_26 = arith.constant 0.000000e+00 : f32
    %65 = vector.broadcast %cst_26 : f32 to vector<16x128xf32>
    %66 = arith.maximumf %64, %65 : vector<16x128xf32>
    %67 = vector.extract_strided_slice %56 {offsets = [0, 0], sizes = [16, 1], strides = [1, 1]} : vector<16x8xf32> to vector<16x1xf32>
    %68 = vector.broadcast %67 : vector<16x1xf32> to vector<16x128xf32>
    %69 = arith.mulf %66, %68 : vector<16x128xf32>
    %70 = arith.truncf %69 : vector<16x128xf32> to vector<16x128xbf16>
    %c0_27 = arith.constant 0 : index
    %c0_28 = arith.constant 0 : index
    %71 = vector.load %arg7[%c0_27, %c0_28] : memref<1024x32xbf16, #tpu.memory_space<vmem>>, vector<128x32xbf16>
    %cst_29 = arith.constant dense<0.000000e+00> : vector<16x32xf32>
    %72 = tpu.matmul %70, %71, %cst_29 {dimension_numbers = #tpu.dot_dimension_numbers<[1], [0], [0], [1], [0, 0, 1, 1], [], []>} : vector<16x128xbf16>, vector<128x32xbf16>, vector<16x32xf32> -> vector<16x32xf32>
    %73 = arith.addf %59, %72 : vector<16x32xf32>
    %c0_30 = arith.constant 0 : index
    %c128 = arith.constant 128 : index
    %74 = vector.load %arg5[%c0_30, %c128] : memref<32x1024xbf16, #tpu.memory_space<vmem>>, vector<32x128xbf16>
    %cst_31 = arith.constant dense<0.000000e+00> : vector<16x128xf32>
    %75 = tpu.matmul %57, %74, %cst_31 {dimension_numbers = #tpu.dot_dimension_numbers<[1], [0], [0], [1], [0, 0, 1, 1], [], []>} : vector<16x32xbf16>, vector<32x128xbf16>, vector<16x128xf32> -> vector<16x128xf32>
    %c0_32 = arith.constant 0 : index
    %c128_33 = arith.constant 128 : index
    %76 = vector.load %arg6[%c0_32, %c128_33] : memref<1x1024xf32, #tpu.memory_space<vmem>>, vector<1x128xf32>
    %77 = vector.broadcast %76 : vector<1x128xf32> to vector<16x128xf32>
    %78 = arith.addf %75, %77 : vector<16x128xf32>
    %cst_34 = arith.constant 0.000000e+00 : f32
    %79 = vector.broadcast %cst_34 : f32 to vector<16x128xf32>
    %80 = arith.maximumf %78, %79 : vector<16x128xf32>
    %81 = vector.extract_strided_slice %56 {offsets = [0, 1], sizes = [16, 1], strides = [1, 1]} : vector<16x8xf32> to vector<16x1xf32>
    %82 = vector.broadcast %81 : vector<16x1xf32> to vector<16x128xf32>
    %83 = arith.mulf %80, %82 : vector<16x128xf32>
    %84 = arith.truncf %83 : vector<16x128xf32> to vector<16x128xbf16>
    %c128_35 = arith.constant 128 : index
    %c0_36 = arith.constant 0 : index
    %85 = vector.load %arg7[%c128_35, %c0_36] : memref<1024x32xbf16, #tpu.memory_space<vmem>>, vector<128x32xbf16>
    %cst_37 = arith.constant dense<0.000000e+00> : vector<16x32xf32>
    %86 = tpu.matmul %84, %85, %cst_37 {dimension_numbers = #tpu.dot_dimension_numbers<[1], [0], [0], [1], [0, 0, 1, 1], [], []>} : vector<16x128xbf16>, vector<128x32xbf16>, vector<16x32xf32> -> vector<16x32xf32>
    %87 = arith.addf %73, %86 : vector<16x32xf32>
    %c0_38 = arith.constant 0 : index
    %c256 = arith.constant 256 : index
    %88 = vector.load %arg5[%c0_38, %c256] : memref<32x1024xbf16, #tpu.memory_space<vmem>>, vector<32x128xbf16>
    %cst_39 = arith.constant dense<0.000000e+00> : vector<16x128xf32>
    %89 = tpu.matmul %57, %88, %cst_39 {dimension_numbers = #tpu.dot_dimension_numbers<[1], [0], [0], [1], [0, 0, 1, 1], [], []>} : vector<16x32xbf16>, vector<32x128xbf16>, vector<16x128xf32> -> vector<16x128xf32>
    %c0_40 = arith.constant 0 : index
    %c256_41 = arith.constant 256 : index
    %90 = vector.load %arg6[%c0_40, %c256_41] : memref<1x1024xf32, #tpu.memory_space<vmem>>, vector<1x128xf32>
    %91 = vector.broadcast %90 : vector<1x128xf32> to vector<16x128xf32>
    %92 = arith.addf %89, %91 : vector<16x128xf32>
    %cst_42 = arith.constant 0.000000e+00 : f32
    %93 = vector.broadcast %cst_42 : f32 to vector<16x128xf32>
    %94 = arith.maximumf %92, %93 : vector<16x128xf32>
    %95 = vector.extract_strided_slice %56 {offsets = [0, 2], sizes = [16, 1], strides = [1, 1]} : vector<16x8xf32> to vector<16x1xf32>
    %96 = vector.broadcast %95 : vector<16x1xf32> to vector<16x128xf32>
    %97 = arith.mulf %94, %96 : vector<16x128xf32>
    %98 = arith.truncf %97 : vector<16x128xf32> to vector<16x128xbf16>
    %c256_43 = arith.constant 256 : index
    %c0_44 = arith.constant 0 : index
    %99 = vector.load %arg7[%c256_43, %c0_44] : memref<1024x32xbf16, #tpu.memory_space<vmem>>, vector<128x32xbf16>
    %cst_45 = arith.constant dense<0.000000e+00> : vector<16x32xf32>
    %100 = tpu.matmul %98, %99, %cst_45 {dimension_numbers = #tpu.dot_dimension_numbers<[1], [0], [0], [1], [0, 0, 1, 1], [], []>} : vector<16x128xbf16>, vector<128x32xbf16>, vector<16x32xf32> -> vector<16x32xf32>
    %101 = arith.addf %87, %100 : vector<16x32xf32>
    %c0_46 = arith.constant 0 : index
    %c384 = arith.constant 384 : index
    %102 = vector.load %arg5[%c0_46, %c384] : memref<32x1024xbf16, #tpu.memory_space<vmem>>, vector<32x128xbf16>
    %cst_47 = arith.constant dense<0.000000e+00> : vector<16x128xf32>
    %103 = tpu.matmul %57, %102, %cst_47 {dimension_numbers = #tpu.dot_dimension_numbers<[1], [0], [0], [1], [0, 0, 1, 1], [], []>} : vector<16x32xbf16>, vector<32x128xbf16>, vector<16x128xf32> -> vector<16x128xf32>
    %c0_48 = arith.constant 0 : index
    %c384_49 = arith.constant 384 : index
    %104 = vector.load %arg6[%c0_48, %c384_49] : memref<1x1024xf32, #tpu.memory_space<vmem>>, vector<1x128xf32>
    %105 = vector.broadcast %104 : vector<1x128xf32> to vector<16x128xf32>
    %106 = arith.addf %103, %105 : vector<16x128xf32>
    %cst_50 = arith.constant 0.000000e+00 : f32
    %107 = vector.broadcast %cst_50 : f32 to vector<16x128xf32>
    %108 = arith.maximumf %106, %107 : vector<16x128xf32>
    %109 = vector.extract_strided_slice %56 {offsets = [0, 3], sizes = [16, 1], strides = [1, 1]} : vector<16x8xf32> to vector<16x1xf32>
    %110 = vector.broadcast %109 : vector<16x1xf32> to vector<16x128xf32>
    %111 = arith.mulf %108, %110 : vector<16x128xf32>
    %112 = arith.truncf %111 : vector<16x128xf32> to vector<16x128xbf16>
    %c384_51 = arith.constant 384 : index
    %c0_52 = arith.constant 0 : index
    %113 = vector.load %arg7[%c384_51, %c0_52] : memref<1024x32xbf16, #tpu.memory_space<vmem>>, vector<128x32xbf16>
    %cst_53 = arith.constant dense<0.000000e+00> : vector<16x32xf32>
    %114 = tpu.matmul %112, %113, %cst_53 {dimension_numbers = #tpu.dot_dimension_numbers<[1], [0], [0], [1], [0, 0, 1, 1], [], []>} : vector<16x128xbf16>, vector<128x32xbf16>, vector<16x32xf32> -> vector<16x32xf32>
    %115 = arith.addf %101, %114 : vector<16x32xf32>
    %c0_54 = arith.constant 0 : index
    %c512 = arith.constant 512 : index
    %116 = vector.load %arg5[%c0_54, %c512] : memref<32x1024xbf16, #tpu.memory_space<vmem>>, vector<32x128xbf16>
    %cst_55 = arith.constant dense<0.000000e+00> : vector<16x128xf32>
    %117 = tpu.matmul %57, %116, %cst_55 {dimension_numbers = #tpu.dot_dimension_numbers<[1], [0], [0], [1], [0, 0, 1, 1], [], []>} : vector<16x32xbf16>, vector<32x128xbf16>, vector<16x128xf32> -> vector<16x128xf32>
    %c0_56 = arith.constant 0 : index
    %c512_57 = arith.constant 512 : index
    %118 = vector.load %arg6[%c0_56, %c512_57] : memref<1x1024xf32, #tpu.memory_space<vmem>>, vector<1x128xf32>
    %119 = vector.broadcast %118 : vector<1x128xf32> to vector<16x128xf32>
    %120 = arith.addf %117, %119 : vector<16x128xf32>
    %cst_58 = arith.constant 0.000000e+00 : f32
    %121 = vector.broadcast %cst_58 : f32 to vector<16x128xf32>
    %122 = arith.maximumf %120, %121 : vector<16x128xf32>
    %123 = vector.extract_strided_slice %56 {offsets = [0, 4], sizes = [16, 1], strides = [1, 1]} : vector<16x8xf32> to vector<16x1xf32>
    %124 = vector.broadcast %123 : vector<16x1xf32> to vector<16x128xf32>
    %125 = arith.mulf %122, %124 : vector<16x128xf32>
    %126 = arith.truncf %125 : vector<16x128xf32> to vector<16x128xbf16>
    %c512_59 = arith.constant 512 : index
    %c0_60 = arith.constant 0 : index
    %127 = vector.load %arg7[%c512_59, %c0_60] : memref<1024x32xbf16, #tpu.memory_space<vmem>>, vector<128x32xbf16>
    %cst_61 = arith.constant dense<0.000000e+00> : vector<16x32xf32>
    %128 = tpu.matmul %126, %127, %cst_61 {dimension_numbers = #tpu.dot_dimension_numbers<[1], [0], [0], [1], [0, 0, 1, 1], [], []>} : vector<16x128xbf16>, vector<128x32xbf16>, vector<16x32xf32> -> vector<16x32xf32>
    %129 = arith.addf %115, %128 : vector<16x32xf32>
    %c0_62 = arith.constant 0 : index
    %c640 = arith.constant 640 : index
    %130 = vector.load %arg5[%c0_62, %c640] : memref<32x1024xbf16, #tpu.memory_space<vmem>>, vector<32x128xbf16>
    %cst_63 = arith.constant dense<0.000000e+00> : vector<16x128xf32>
    %131 = tpu.matmul %57, %130, %cst_63 {dimension_numbers = #tpu.dot_dimension_numbers<[1], [0], [0], [1], [0, 0, 1, 1], [], []>} : vector<16x32xbf16>, vector<32x128xbf16>, vector<16x128xf32> -> vector<16x128xf32>
    %c0_64 = arith.constant 0 : index
    %c640_65 = arith.constant 640 : index
    %132 = vector.load %arg6[%c0_64, %c640_65] : memref<1x1024xf32, #tpu.memory_space<vmem>>, vector<1x128xf32>
    %133 = vector.broadcast %132 : vector<1x128xf32> to vector<16x128xf32>
    %134 = arith.addf %131, %133 : vector<16x128xf32>
    %cst_66 = arith.constant 0.000000e+00 : f32
    %135 = vector.broadcast %cst_66 : f32 to vector<16x128xf32>
    %136 = arith.maximumf %134, %135 : vector<16x128xf32>
    %137 = vector.extract_strided_slice %56 {offsets = [0, 5], sizes = [16, 1], strides = [1, 1]} : vector<16x8xf32> to vector<16x1xf32>
    %138 = vector.broadcast %137 : vector<16x1xf32> to vector<16x128xf32>
    %139 = arith.mulf %136, %138 : vector<16x128xf32>
    %140 = arith.truncf %139 : vector<16x128xf32> to vector<16x128xbf16>
    %c640_67 = arith.constant 640 : index
    %c0_68 = arith.constant 0 : index
    %141 = vector.load %arg7[%c640_67, %c0_68] : memref<1024x32xbf16, #tpu.memory_space<vmem>>, vector<128x32xbf16>
    %cst_69 = arith.constant dense<0.000000e+00> : vector<16x32xf32>
    %142 = tpu.matmul %140, %141, %cst_69 {dimension_numbers = #tpu.dot_dimension_numbers<[1], [0], [0], [1], [0, 0, 1, 1], [], []>} : vector<16x128xbf16>, vector<128x32xbf16>, vector<16x32xf32> -> vector<16x32xf32>
    %143 = arith.addf %129, %142 : vector<16x32xf32>
    %c0_70 = arith.constant 0 : index
    %c768 = arith.constant 768 : index
    %144 = vector.load %arg5[%c0_70, %c768] : memref<32x1024xbf16, #tpu.memory_space<vmem>>, vector<32x128xbf16>
    %cst_71 = arith.constant dense<0.000000e+00> : vector<16x128xf32>
    %145 = tpu.matmul %57, %144, %cst_71 {dimension_numbers = #tpu.dot_dimension_numbers<[1], [0], [0], [1], [0, 0, 1, 1], [], []>} : vector<16x32xbf16>, vector<32x128xbf16>, vector<16x128xf32> -> vector<16x128xf32>
    %c0_72 = arith.constant 0 : index
    %c768_73 = arith.constant 768 : index
    %146 = vector.load %arg6[%c0_72, %c768_73] : memref<1x1024xf32, #tpu.memory_space<vmem>>, vector<1x128xf32>
    %147 = vector.broadcast %146 : vector<1x128xf32> to vector<16x128xf32>
    %148 = arith.addf %145, %147 : vector<16x128xf32>
    %cst_74 = arith.constant 0.000000e+00 : f32
    %149 = vector.broadcast %cst_74 : f32 to vector<16x128xf32>
    %150 = arith.maximumf %148, %149 : vector<16x128xf32>
    %151 = vector.extract_strided_slice %56 {offsets = [0, 6], sizes = [16, 1], strides = [1, 1]} : vector<16x8xf32> to vector<16x1xf32>
    %152 = vector.broadcast %151 : vector<16x1xf32> to vector<16x128xf32>
    %153 = arith.mulf %150, %152 : vector<16x128xf32>
    %154 = arith.truncf %153 : vector<16x128xf32> to vector<16x128xbf16>
    %c768_75 = arith.constant 768 : index
    %c0_76 = arith.constant 0 : index
    %155 = vector.load %arg7[%c768_75, %c0_76] : memref<1024x32xbf16, #tpu.memory_space<vmem>>, vector<128x32xbf16>
    %cst_77 = arith.constant dense<0.000000e+00> : vector<16x32xf32>
    %156 = tpu.matmul %154, %155, %cst_77 {dimension_numbers = #tpu.dot_dimension_numbers<[1], [0], [0], [1], [0, 0, 1, 1], [], []>} : vector<16x128xbf16>, vector<128x32xbf16>, vector<16x32xf32> -> vector<16x32xf32>
    %157 = arith.addf %143, %156 : vector<16x32xf32>
    %c0_78 = arith.constant 0 : index
    %c896 = arith.constant 896 : index
    %158 = vector.load %arg5[%c0_78, %c896] : memref<32x1024xbf16, #tpu.memory_space<vmem>>, vector<32x128xbf16>
    %cst_79 = arith.constant dense<0.000000e+00> : vector<16x128xf32>
    %159 = tpu.matmul %57, %158, %cst_79 {dimension_numbers = #tpu.dot_dimension_numbers<[1], [0], [0], [1], [0, 0, 1, 1], [], []>} : vector<16x32xbf16>, vector<32x128xbf16>, vector<16x128xf32> -> vector<16x128xf32>
    %c0_80 = arith.constant 0 : index
    %c896_81 = arith.constant 896 : index
    %160 = vector.load %arg6[%c0_80, %c896_81] : memref<1x1024xf32, #tpu.memory_space<vmem>>, vector<1x128xf32>
    %161 = vector.broadcast %160 : vector<1x128xf32> to vector<16x128xf32>
    %162 = arith.addf %159, %161 : vector<16x128xf32>
    %cst_82 = arith.constant 0.000000e+00 : f32
    %163 = vector.broadcast %cst_82 : f32 to vector<16x128xf32>
    %164 = arith.maximumf %162, %163 : vector<16x128xf32>
    %165 = vector.extract_strided_slice %56 {offsets = [0, 7], sizes = [16, 1], strides = [1, 1]} : vector<16x8xf32> to vector<16x1xf32>
    %166 = vector.broadcast %165 : vector<16x1xf32> to vector<16x128xf32>
    %167 = arith.mulf %164, %166 : vector<16x128xf32>
    %168 = arith.truncf %167 : vector<16x128xf32> to vector<16x128xbf16>
    %c896_83 = arith.constant 896 : index
    %c0_84 = arith.constant 0 : index
    %169 = vector.load %arg7[%c896_83, %c0_84] : memref<1024x32xbf16, #tpu.memory_space<vmem>>, vector<128x32xbf16>
    %cst_85 = arith.constant dense<0.000000e+00> : vector<16x32xf32>
    %170 = tpu.matmul %168, %169, %cst_85 {dimension_numbers = #tpu.dot_dimension_numbers<[1], [0], [0], [1], [0, 0, 1, 1], [], []>} : vector<16x128xbf16>, vector<128x32xbf16>, vector<16x32xf32> -> vector<16x32xf32>
    %171 = arith.addf %157, %170 : vector<16x32xf32>
    %c0_86 = arith.constant 0 : index
    %c0_87 = arith.constant 0 : index
    %172 = vector.load %arg9[%c0_86, %c0_87] : memref<16x32xf32, #tpu.memory_space<vmem>>, vector<16x32xf32>
    tpu.vector_store %arg9[%c0_86, %c0_87], %171 {strides = array<i32>} : memref<16x32xf32, #tpu.memory_space<vmem>>, vector<16x32xf32>,
    return
  }
  func.func @transform_0(%arg0: i32) -> (i32, i32) {
    %c0_i32 = arith.constant 0 : i32
    %c0_i32_0 = arith.constant 0 : i32
    return %arg0, %c0_i32 : i32, i32
  }
  func.func @transform_1(%arg0: i32) -> (i32, i32) {
    %c0_i32 = arith.constant 0 : i32
    %c0_i32_0 = arith.constant 0 : i32
    return %arg0, %c0_i32 : i32, i32
  }
  func.func @transform_2(%arg0: i32) -> (i32, i32) {
    %c0_i32 = arith.constant 0 : i32
    %c0_i32_0 = arith.constant 0 : i32
    %c0_i32_1 = arith.constant 0 : i32
    return %c0_i32, %c0_i32_0 : i32, i32
  }
  func.func @transform_3(%arg0: i32) -> (i32, i32) {
    %c0_i32 = arith.constant 0 : i32
    %c0_i32_0 = arith.constant 0 : i32
    %c0_i32_1 = arith.constant 0 : i32
    return %c0_i32, %c0_i32_0 : i32, i32
  }
  func.func @transform_4(%arg0: i32) -> (i32, i32) {
    %c0_i32 = arith.constant 0 : i32
    %c0_i32_0 = arith.constant 0 : i32
    %c0_i32_1 = arith.constant 0 : i32
    return %c0_i32, %c0_i32_0 : i32, i32
  }
  func.func @transform_5(%arg0: i32) -> (i32, i32) {
    %c0_i32 = arith.constant 0 : i32
    %c0_i32_0 = arith.constant 0 : i32
    %c0_i32_1 = arith.constant 0 : i32
    return %c0_i32, %c0_i32_0 : i32, i32
  }
  func.func @transform_6(%arg0: i32) -> (i32, i32) {
    %c0_i32 = arith.constant 0 : i32
    %c0_i32_0 = arith.constant 0 : i32
    %c0_i32_1 = arith.constant 0 : i32
    return %c0_i32, %c0_i32_0 : i32, i32
  }
  func.func @transform_7(%arg0: i32) -> (i32, i32) {
    %c0_i32 = arith.constant 0 : i32
    %c0_i32_0 = arith.constant 0 : i32
    %c0_i32_1 = arith.constant 0 : i32
    return %c0_i32, %c0_i32_0 : i32, i32
  }
  func.func @transform_8(%arg0: i32) -> (i32, i32) {
    %c0_i32 = arith.constant 0 : i32
    %c0_i32_0 = arith.constant 0 : i32
    return %arg0, %c0_i32 : i32, i32
  }
}

</mosaic_0001>

<llo_original>
// kernel: tpu_custom_call.1
$region0: #{tpu_custom_call.1}
  #allocation0 [shape = 'u32[]', space=smem, size = 0x4, offset = 0x4, fixed_abs, tag = 'smem constant byte address 0x4 - core index']
  #allocation1 [shape = 'u32[144,128]{1,0:T(1,128)}', space=vmem, size = 0x12000, scoped, tag = 'internal scratch']
  %s0 = inlined_call_operand.vmem [shape: f32[16,32], index: 0, kind: input, shape index: {}]
  %s1 = inlined_call_operand.vmem [shape: f32[16,8], index: 1, kind: input, shape index: {}]
  %s2 = inlined_call_operand.vmem [shape: f32[32,16], index: 2, kind: input, shape index: {}]
  %s3 = inlined_call_operand.vmem [shape: f32[1,16], index: 3, kind: input, shape index: {}]
  %s4 = inlined_call_operand.vmem [shape: bf16[32,1024], index: 4, kind: input, shape index: {}]
  %s5 = inlined_call_operand.vmem [shape: f32[1,1024], index: 5, kind: input, shape index: {}]
  %s6 = inlined_call_operand.vmem [shape: bf16[1024,32], index: 6, kind: input, shape index: {}]
  %s7 = inlined_call_operand.vmem [shape: f32[8,32], index: 7, kind: input, shape index: {}]
  %s8 = inlined_call_operand.hbm [shape: f32[16,32], index: 8, kind: output, shape index: {}]
  %s9 = sld [smem:[#allocation0]]
  $region42: #{tpu_custom_call.1} parent=0
    _
  %s11 = ssub.s32 1, %s9
  %s12 = scalar_select 0, %s11, %s9
  $region1: #{tpu_custom_call.1} parent=0
    #allocation2 [shape = 'u8[8192]{0}', space=vmem, size = 0x2000, scoped, tag = 'output window, operand 0, single buffered']
    #allocation3 [shape = 's32[1]{0}', space=sflag, size = 0x4, scoped, tag = 'scoped memory for tpu_custom_call.1']
    %13 = vsyncpa [#allocation3], 0
    // Predicated region
    $region2: #{tpu_custom_call.1} parent=1 // pred_check
      _
    $region3: #{tpu_custom_call.1} parent=1 // pred_check_branch
      %15 = sbr.rel (0) target = $region5
    $region4: #{tpu_custom_call.1} parent=1 // pred_region
      _
    $region5: #{tpu_custom_call.1} parent=1 // pred_fallthru
      _
    // Predicated region
    $region6: #{tpu_custom_call.1} parent=1 // pred_check
      _
    $region7: #{tpu_custom_call.1} parent=1 // pred_check_branch
      %17 = sbr.rel (0) target = $region9
    $region8: #{tpu_custom_call.1} parent=1 // pred_region
      _
    $region9: #{tpu_custom_call.1} parent=1 // pred_fallthru
      _
    // Predicated region
    $region10: #{tpu_custom_call.1} parent=1 // pred_check
      _
    $region11: #{tpu_custom_call.1} parent=1 // pred_check_branch
      %19 = sbr.rel (0) target = $region13
    $region12: #{tpu_custom_call.1} parent=1 // pred_region
      _
    $region13: #{tpu_custom_call.1} parent=1 // pred_fallthru
      _
    // Predicated region
    $region14: #{tpu_custom_call.1} parent=1 // pred_check
      _
    $region15: #{tpu_custom_call.1} parent=1 // pred_check_branch
      %21 = sbr.rel (0) target = $region17
    $region16: #{tpu_custom_call.1} parent=1 // pred_region
      _
    $region17: #{tpu_custom_call.1} parent=1 // pred_fallthru
      _
    // Predicated region
    $region18: #{tpu_custom_call.1} parent=1 // pred_check
      _
    $region19: #{tpu_custom_call.1} parent=1 // pred_check_branch
      %23 = sbr.rel (0) target = $region21
    $region20: #{tpu_custom_call.1} parent=1 // pred_region
      _
    $region21: #{tpu_custom_call.1} parent=1 // pred_fallthru
      _
    // Predicated region
    $region22: #{tpu_custom_call.1} parent=1 // pred_check
      _
    $region23: #{tpu_custom_call.1} parent=1 // pred_check_branch
      %25 = sbr.rel (0) target = $region25
    $region24: #{tpu_custom_call.1} parent=1 // pred_region
      _
    $region25: #{tpu_custom_call.1} parent=1 // pred_fallthru
      _
    // Predicated region
    $region26: #{tpu_custom_call.1} parent=1 // pred_check
      _
    $region27: #{tpu_custom_call.1} parent=1 // pred_check_branch
      %27 = sbr.rel (0) target = $region29
    $region28: #{tpu_custom_call.1} parent=1 // pred_region
      _
    $region29: #{tpu_custom_call.1} parent=1 // pred_fallthru
      _
    // Predicated region
    $region30: #{tpu_custom_call.1} parent=1 // pred_check
      _
    $region31: #{tpu_custom_call.1} parent=1 // pred_check_branch
      %29 = sbr.rel (0) target = $region33
    $region32: #{tpu_custom_call.1} parent=1 // pred_region
      _
    $region33: #{tpu_custom_call.1} parent=1 // pred_fallthru
      _
    %v31 = vld [vmem:[%s0] sm:$0xff]
    %v32 = vld [vmem:[%s0 + $0x8] sm:$0xff]
    %v33 = vld [vmem:[%s2] sm:$0xff]
    %v34 = vld [vmem:[%s2 + $0x8] sm:$0xff]
    %v35 = vld [vmem:[%s2 + $0x10] sm:$0xff]
    %v36 = vld [vmem:[%s2 + $0x18] sm:$0xff]
    %v37 = vld [vmem:[%s3] sm:$0x1]
    %v39 = vlaneseq
    %v40 = vshrl.u32 %v39, 7
    %v41 = vsub.s32 0, %v40
    %v42 = vrot.slane %v37, %v41
    %vm44 = vcmask 261120
    %v46 = vsel %vm44, %v31, 0
    %v49 = vsel %vm44, %v32, 0
    %51 = vmatprep.subr.mxu0 0.0
    %52 = vmatpush1.msra.mxu0 %v33
    %53 = vmatprep.subr.mxu0 0.0
    %54 = vmatpush1.msra.mxu0 %v34
    %55 = vmatprep.subr.mxu0 0.0
    %56 = vmatpush1.msra.mxu0 %v35
    %57 = vmatprep.subr.mxu0 0.0
    %58 = vmatpush1.msra.mxu0 %v36
    %59 = vmatprep.subr.mxu0 0.0
    %60 = vmatpush1.msra.mxu0 0.0
    %61 = vmatprep.subr.mxu0 0.0
    %62 = vmatpush1.msra.mxu0 0.0
    %63 = vmatprep.subr.mxu0 0.0
    %64 = vmatpush1.msra.mxu0 0.0
    %65 = vmatprep.subr.mxu0 0.0
    %66 = vmatpush1.msra.mxu0 0.0
    %67 = vmatprep.subr.mxu0 0.0
    %68 = vmatpush1.msra.mxu0 0.0
    %69 = vmatprep.subr.mxu0 0.0
    %70 = vmatpush1.msra.mxu0 0.0
    %71 = vmatprep.subr.mxu0 0.0
    %72 = vmatpush1.msra.mxu0 0.0
    %73 = vmatprep.subr.mxu0 0.0
    %74 = vmatpush1.msra.mxu0 0.0
    %75 = vmatprep.subr.mxu0 0.0
    %76 = vmatpush1.msra.mxu0 0.0
    %77 = vmatprep.subr.mxu0 0.0
    %78 = vmatpush1.msra.mxu0 0.0
    %79 = vmatprep.subr.mxu0 0.0
    %80 = vmatpush1.msra.mxu0 0.0
    %81 = vmatprep.subr.mxu0 0.0
    %82 = vmatpush1.msra.mxu0 0.0
    %83 = vmatprep.subr.mxu0 0.0
    %84 = vmatpush1.msra.mxu0 0.0
    %85 = vmatprep.subr.mxu0 0.0
    %86 = vmatpush1.msra.mxu0 0.0
    %87 = vmatprep.subr.mxu0 0.0
    %88 = vmatpush1.msra.mxu0 0.0
    %89 = vmatprep.subr.mxu0 0.0
    %90 = vmatpush1.msra.mxu0 0.0
    %91 = vmatprep.subr.mxu0 0.0
    %92 = vmatpush1.msra.mxu0 0.0
    %93 = vmatprep.subr.mxu0 0.0
    %94 = vmatpush1.msra.mxu0 0.0
    %95 = vmatprep.subr.mxu0 0.0
    %96 = vmatpush1.msra.mxu0 0.0
    %97 = vmatprep.subr.mxu0 0.0
    %98 = vmatpush1.msra.mxu0 0.0
    %99 = vmatprep.subr.mxu0 0.0
    %100 = vmatpush1.msra.mxu0 0.0
    %101 = vmatprep.subr.mxu0 0.0
    %102 = vmatpush1.msra.mxu0 0.0
    %103 = vmatprep.subr.mxu0 0.0
    %104 = vmatpush1.msra.mxu0 0.0
    %105 = vmatprep.subr.mxu0 0.0
    %106 = vmatpush1.msra.mxu0 0.0
    %107 = vmatprep.subr.mxu0 0.0
    %108 = vmatpush1.msra.mxu0 0.0
    %109 = vmatprep.subr.mxu0 0.0
    %110 = vmatpush1.msra.mxu0 0.0
    %111 = vmatprep.subr.mxu0 0.0
    %112 = vmatpush1.msra.mxu0 0.0
    %113 = vmatprep.subr.mxu0 0.0
    %114 = vmatpush1.msra.mxu0 0.0
    %115 = vmatprep.mubr.f32.mxu0 0.0
    %116 = vmatmul.mubr.f32.gmra.mrb[0].mxu0 %v46
    %v117 = vpop.f32.mrb[0].mxu0
    %v118 = vadd.f32 %v42, %v117
    %v119 = vpop.f32.mrb[0].mxu0
    %120 = vmatprep.mubr.f32.mxu0 0.0
    %121 = vmatmul.mubr.f32.gmra.mrb[0].mxu0 %v49
    %v122 = vpop.f32.mrb[0].mxu0
    %v123 = vadd.f32 %v42, %v122
    %v124 = vpop.f32.mrb[0].mxu0
    %125 = vdwg.mxu0
    %v126 = vld [vmem:[%s1] sm:$0xff]
    %v127 = vld [vmem:[%s1 + $0x8] sm:$0xff]
    %v128 = vand.u32 2147483647, %v118
    %v129 = vand.u32 2147483647, %v123
    %v130 = vsub.f32 0.0, %v128
    %v131 = vsub.f32 0.0, %v129
    %v132 = vmul.f32 %v130, 1.442695
    %v133 = vpow.pop %v132
    %v134 = vmul.f32 %v131, 1.442695
    %v135 = vpow.pop %v134
    %v136 = vadd.f32 %v133, 1.0
    %v137 = vlog2.pop %v136
    %v138 = vmul.f32 %v137, 0.6931472
    %v139 = vmul.f32 -0.5, %v133
    %v140 = vadd.f32 %v139, 1.0
    %v141 = vmul.f32 %v140, %v133
    %v142 = vand.u32 2147483647, %v133
    %vm143 = vcmp.lt.f32.partialorder %v142, 0.0004427343
    %v144 = vsel %vm143, %v141, %v138
    %v145 = vadd.f32 %v135, 1.0
    %v146 = vlog2.pop %v145
    %v147 = vmul.f32 %v146, 0.6931472
    %v148 = vmul.f32 -0.5, %v135
    %v149 = vadd.f32 %v148, 1.0
    %v150 = vmul.f32 %v149, %v135
    %v151 = vand.u32 2147483647, %v135
    %vm152 = vcmp.lt.f32.partialorder %v151, 0.0004427343
    %v153 = vsel %vm152, %v150, %v147
    %v154 = vmax.f32 %v118, 0.0
    %v155 = vmax.f32 %v123, 0.0
    %v156 = vadd.f32 %v144, %v154
    %v157 = vadd.f32 %v153, %v155
    %160 = vrot.lane.b32.xlu0 %v156, 120
    %v161 = vpop.permute.xlu0 %160
    %162 = vrot.lane.b32.xlu0 %v157, 120
    %v163 = vpop.permute.xlu0 %162
    %v166 = vmul.f32 %v126, %v161
    %v167 = vmul.f32 %v127, %v163
    %v168 = vadd.f32 %v118, %v166
    %v169 = vadd.f32 %v123, %v167
    %v170 = vlaneseq
    %v171 = vand.u32 %v170, 127
    %vm172 = vcmask 64512
    %v173 = vsel %vm172, %v168, -inf
    %174 = vmax.xlane.f32.xlu0 %v173
    %v175 = vpop.xlane.xlu0 %174
    %v176 = vsel %vm172, %v169, -inf
    %177 = vmax.xlane.f32.xlu0 %v176
    %v178 = vpop.xlane.xlu0 %177
    %vm179 = vcmp.eq.f32.partialorder %v168, %v175
    %vm180 = vcmp.eq.f32.partialorder %v169, %v178
    %v181 = vsel %vm179, %v171, 8
    %v182 = vsel %vm180, %v171, 8
    %v183 = vsel %vm172, %v181, 2147483647
    %v184 = vand.u32 %v183, 65535
    %v185 = vshra.s32 %v183, 16
    %v186 = vcvt.s32.f32 %v184
    %v187 = vcvt.s32.f32 %v185
    %188 = vmin.xlane.f32.xlu0 %v187
    %v189 = vpop.xlane.xlu0 %188
    %vm190 = vcmp.eq.f32.partialorder %v187, %v189
    %v191 = vsel %vm190, %v186, inf
    %192 = vmin.xlane.f32.xlu0 %v191
    %v193 = vpop.xlane.xlu0 %192
    %v194 = vcvt.f32.s32 %v193
    %v195 = vcvt.f32.s32 %v189
    %v196 = vshll.u32 %v195, 16
    %v197 = vadd.s32 %v196, %v194
    %v198 = vsel %vm172, %v182, 2147483647
    %v199 = vand.u32 %v198, 65535
    %v200 = vshra.s32 %v198, 16
    %v201 = vcvt.s32.f32 %v199
    %v202 = vcvt.s32.f32 %v200
    %203 = vmin.xlane.f32.xlu0 %v202
    %v204 = vpop.xlane.xlu0 %203
    %vm205 = vcmp.eq.f32.partialorder %v202, %v204
    %v206 = vsel %vm205, %v201, inf
    %207 = vmin.xlane.f32.xlu0 %v206
    %v208 = vpop.xlane.xlu0 %207
    %v209 = vcvt.f32.s32 %v208
    %v210 = vcvt.f32.s32 %v204
    %v211 = vshll.u32 %v210, 16
    %v212 = vadd.s32 %v211, %v209
    %vm213 = vcmp.eq.s32.totalorder %v171, %v197
    %vm214 = vcmp.eq.s32.totalorder %v171, %v212
    %v215 = vsel %vm213, -inf, %v168
    %v216 = vsel %vm214, -inf, %v169
    %v217 = vsel %vm172, %v215, -inf
    %218 = vmax.xlane.f32.xlu0 %v217
    %v219 = vpop.xlane.xlu0 %218
    %v220 = vsel %vm172, %v216, -inf
    %221 = vmax.xlane.f32.xlu0 %v220
    %v222 = vpop.xlane.xlu0 %221
    %vm223 = vcmp.eq.f32.partialorder %v215, %v219
    %vm224 = vcmp.eq.f32.partialorder %v216, %v222
    %v225 = vsel %vm223, %v171, 8
    %v226 = vsel %vm224, %v171, 8
    %v227 = vsel %vm172, %v225, 2147483647
    %v228 = vand.u32 %v227, 65535
    %v229 = vshra.s32 %v227, 16
    %v230 = vcvt.s32.f32 %v228
    %v231 = vcvt.s32.f32 %v229
    %232 = vmin.xlane.f32.xlu0 %v231
    %v233 = vpop.xlane.xlu0 %232
    %vm234 = vcmp.eq.f32.partialorder %v231, %v233
    %v235 = vsel %vm234, %v230, inf
    %236 = vmin.xlane.f32.xlu0 %v235
    %v237 = vpop.xlane.xlu0 %236
    %v238 = vcvt.f32.s32 %v237
    %v239 = vcvt.f32.s32 %v233
    %v240 = vshll.u32 %v239, 16
    %v241 = vadd.s32 %v240, %v238
    %v242 = vsel %vm172, %v226, 2147483647
    %v243 = vand.u32 %v242, 65535
    %v244 = vshra.s32 %v242, 16
    %v245 = vcvt.s32.f32 %v243
    %v246 = vcvt.s32.f32 %v244
    %247 = vmin.xlane.f32.xlu0 %v246
    %v248 = vpop.xlane.xlu0 %247
    %vm249 = vcmp.eq.f32.partialorder %v246, %v248
    %v250 = vsel %vm249, %v245, inf
    %251 = vmin.xlane.f32.xlu0 %v250
    %v252 = vpop.xlane.xlu0 %251
    %v253 = vcvt.f32.s32 %v252
    %v254 = vcvt.f32.s32 %v248
    %v255 = vshll.u32 %v254, 16
    %v256 = vadd.s32 %v255, %v253
    %vm257 = vcmp.eq.s32.totalorder %v171, %v241
    %vm258 = vcmp.eq.s32.totalorder %v171, %v256
    %vm259 = vmor %vm213, %vm257
    %vm260 = vmor %vm214, %vm258
    %v261 = vsub.f32 %v168, %v175
    %v262 = vsub.f32 %v169, %v178
    %v263 = vmul.f32 %v261, 1.442695
    %v264 = vpow.pop %v263
    %v265 = vmul.f32 %v262, 1.442695
    %v266 = vpow.pop %v265
    %v267 = vsel %vm259, %v264, 0.0
    %v268 = vsel %vm260, %v266, 0.0
    %v269 = vsel %vm172, %v267, 0.0
    %270 = vadd.xlane.f32.xlu0 %v269
    %v271 = vpop.xlane.xlu0 %270
    %v272 = vsel %vm172, %v268, 0.0
    %273 = vadd.xlane.f32.xlu0 %v272
    %v274 = vpop.xlane.xlu0 %273
    %v275 = vrcp.pop %v271
    %v276 = vrcp.pop %v274
    %v277 = vmul.f32 %v267, %v275
    %v278 = vmul.f32 %v268, %v276
    %v279 = vpack.c.bf16 %v32, %v31
    %v280 = vld [vmem:[%s7] sm:$0xff]
    %v281 = vld [vmem:[%s4] sm:$0xf]
    %v282 = vld [vmem:[%s4 + $0x20] sm:$0xf]
    %v283 = vld [vmem:[%s4 + $0x40] sm:$0xf]
    %v284 = vld [vmem:[%s4 + $0x60] sm:$0xf]
    %v285 = vld [vmem:[%s5] sm:$0x1]
    %v287 = vlaneseq
    %v288 = vshrl.u32 %v287, 7
    %v289 = vsub.s32 0, %v288
    %v290 = vrot.slane %v285, %v289
    %v296 = vunpack.c.l.b16 %v281
    %v297 = vunpack.c.l.b16 %v282
    %v298 = vunpack.c.l.b16 %v283
    %v299 = vunpack.c.l.b16 %v284
    %v300 = vpack.c.b16 %v297, %v296
    %v301 = vpack.c.b16 %v299, %v298
    %v305 = vsel %vm44, %v279, 0
    %307 = vmatprep.subr.bf16.mxu0 0
    %308 = vmatpush1.bf16.msra.mxu0 %v300
    %309 = vmatprep.subr.bf16.mxu0 0
    %310 = vmatpush1.bf16.msra.mxu0 %v301
    %311 = vmatprep.subr.bf16.mxu0 0
    %312 = vmatpush1.bf16.msra.mxu0 0
    %313 = vmatprep.subr.bf16.mxu0 0
    %314 = vmatpush1.bf16.msra.mxu0 0
    %315 = vmatprep.subr.bf16.mxu0 0
    %316 = vmatpush1.bf16.msra.mxu0 0
    %317 = vmatprep.subr.bf16.mxu0 0
    %318 = vmatpush1.bf16.msra.mxu0 0
    %319 = vmatprep.subr.bf16.mxu0 0
    %320 = vmatpush1.bf16.msra.mxu0 0
    %321 = vmatprep.subr.bf16.mxu0 0
    %322 = vmatpush1.bf16.msra.mxu0 0
    %323 = vmatprep.subr.bf16.mxu0 0
    %324 = vmatpush1.bf16.msra.mxu0 0
    %325 = vmatprep.subr.bf16.mxu0 0
    %326 = vmatpush1.bf16.msra.mxu0 0
    %327 = vmatprep.subr.bf16.mxu0 0
    %328 = vmatpush1.bf16.msra.mxu0 0
    %329 = vmatprep.subr.bf16.mxu0 0
    %330 = vmatpush1.bf16.msra.mxu0 0
    %331 = vmatprep.subr.bf16.mxu0 0
    %332 = vmatpush1.bf16.msra.mxu0 0
    %333 = vmatprep.subr.bf16.mxu0 0
    %334 = vmatpush1.bf16.msra.mxu0 0
    %335 = vmatprep.subr.bf16.mxu0 0
    %336 = vmatpush1.bf16.msra.mxu0 0
    %337 = vmatprep.subr.bf16.mxu0 0
    %338 = vmatpush1.bf16.msra.mxu0 0
    %339 = vmatprep.mubr.bf16.mxu0 0
    %340 = vmatmul.mubr.bf16.gmra.mrb[0].mxu0 %v305
    %v341 = vpop.f32.mrb[0].mxu0
    %v342 = vadd.f32 %v290, %v341
    %v343 = vpop.f32.mrb[0].mxu0
    %v344 = vpop.f32.mrb[0].mxu0
    %v345 = vadd.f32 %v290, %v344
    %v346 = vpop.f32.mrb[0].mxu0
    %347 = vdwg.mxu0
    %v348 = vmax.f32 %v342, 0.0
    %v349 = vmax.f32 %v345, 0.0
    %351 = vset.pattern.permute.xlu0 0
    %352 = vperm.xlu0 %351, %v277
    %v353 = vpop.permute.xlu0 %352
    %356 = vset.pattern.permute.xlu0 0
    %357 = vperm.xlu0 %356, %v278
    %v358 = vpop.permute.xlu0 %357
    %v360 = vmul.f32 %v348, %v353
    %v361 = vmul.f32 %v349, %v358
    %v362 = vpack.c.bf16 %v361, %v360
    %v363 = vld [vmem:[%s6] sm:$0xf]
    %v364 = vld [vmem:[%s6 + $0x4] sm:$0xf]
    %v365 = vld [vmem:[%s6 + $0x8] sm:$0xf]
    %v366 = vld [vmem:[%s6 + $0xc] sm:$0xf]
    %v367 = vld [vmem:[%s6 + $0x10] sm:$0xf]
    %v368 = vld [vmem:[%s6 + $0x14] sm:$0xf]
    %v369 = vld [vmem:[%s6 + $0x18] sm:$0xf]
    %v370 = vld [vmem:[%s6 + $0x1c] sm:$0xf]
    %v371 = vld [vmem:[%s6 + $0x20] sm:$0xf]
    %v372 = vld [vmem:[%s6 + $0x24] sm:$0xf]
    %v373 = vld [vmem:[%s6 + $0x28] sm:$0xf]
    %v374 = vld [vmem:[%s6 + $0x2c] sm:$0xf]
    %v375 = vld [vmem:[%s6 + $0x30] sm:$0xf]
    %v376 = vld [vmem:[%s6 + $0x34] sm:$0xf]
    %v377 = vld [vmem:[%s6 + $0x38] sm:$0xf]
    %v378 = vld [vmem:[%s6 + $0x3c] sm:$0xf]
    %v395 = vunpack.c.l.b16 %v363
    %v396 = vunpack.c.l.b16 %v364
    %v397 = vunpack.c.l.b16 %v365
    %v398 = vunpack.c.l.b16 %v366
    %v399 = vunpack.c.l.b16 %v367
    %v400 = vunpack.c.l.b16 %v368
    %v401 = vunpack.c.l.b16 %v369
    %v402 = vunpack.c.l.b16 %v370
    %v403 = vunpack.c.l.b16 %v371
    %v404 = vunpack.c.l.b16 %v372
    %v405 = vunpack.c.l.b16 %v373
    %v406 = vunpack.c.l.b16 %v374
    %v407 = vunpack.c.l.b16 %v375
    %v408 = vunpack.c.l.b16 %v376
    %v409 = vunpack.c.l.b16 %v377
    %v410 = vunpack.c.l.b16 %v378
    %v411 = vpack.c.b16 %v396, %v395
    %v412 = vpack.c.b16 %v398, %v397
    %v413 = vpack.c.b16 %v400, %v399
    %v414 = vpack.c.b16 %v402, %v401
    %v415 = vpack.c.b16 %v404, %v403
    %v416 = vpack.c.b16 %v406, %v405
    %v417 = vpack.c.b16 %v408, %v407
    %v418 = vpack.c.b16 %v410, %v409
    %427 = vmatprep.subr.bf16.mxu0 0
    %428 = vmatpush1.bf16.msra.mxu0 %v411
    %429 = vmatprep.subr.bf16.mxu0 0
    %430 = vmatpush1.bf16.msra.mxu0 %v412
    %431 = vmatprep.subr.bf16.mxu0 0
    %432 = vmatpush1.bf16.msra.mxu0 %v413
    %433 = vmatprep.subr.bf16.mxu0 0
    %434 = vmatpush1.bf16.msra.mxu0 %v414
    %435 = vmatprep.subr.bf16.mxu0 0
    %436 = vmatpush1.bf16.msra.mxu0 %v415
    %437 = vmatprep.subr.bf16.mxu0 0
    %438 = vmatpush1.bf16.msra.mxu0 %v416
    %439 = vmatprep.subr.bf16.mxu0 0
    %440 = vmatpush1.bf16.msra.mxu0 %v417
    %441 = vmatprep.subr.bf16.mxu0 0
    %442 = vmatpush1.bf16.msra.mxu0 %v418
    %443 = vmatprep.subr.bf16.mxu0 0
    %444 = vmatpush1.bf16.msra.mxu0 0
    %445 = vmatprep.subr.bf16.mxu0 0
    %446 = vmatpush1.bf16.msra.mxu0 0
    %447 = vmatprep.subr.bf16.mxu0 0
    %448 = vmatpush1.bf16.msra.mxu0 0
    %449 = vmatprep.subr.bf16.mxu0 0
    %450 = vmatpush1.bf16.msra.mxu0 0
    %451 = vmatprep.subr.bf16.mxu0 0
    %452 = vmatpush1.bf16.msra.mxu0 0
    %453 = vmatprep.subr.bf16.mxu0 0
    %454 = vmatpush1.bf16.msra.mxu0 0
    %455 = vmatprep.subr.bf16.mxu0 0
    %456 = vmatpush1.bf16.msra.mxu0 0
    %457 = vmatprep.subr.bf16.mxu0 0
    %458 = vmatpush1.bf16.msra.mxu0 0
    %459 = vmatprep.mubr.bf16.mxu0 0
    %460 = vmatmul.mubr.bf16.gmra.mrb[0].mxu0 %v362
    %v461 = vpop.f32.mrb[0].mxu0
    %v462 = vadd.f32 0.0, %v461
    %v463 = vpop.f32.mrb[0].mxu0
    %v464 = vpop.f32.mrb[0].mxu0
    %v465 = vadd.f32 0.0, %v464
    %v466 = vpop.f32.mrb[0].mxu0
    %467 = vdwg.mxu0
    %v468 = vsel %vm172, %v277, 0
    %v470 = vsel %vm172, %v278, 0
    %472 = vmatprep.subr.mxu0 0.0
    %473 = vmatpush1.msra.mxu0 %v280
    %474 = vmatprep.subr.mxu0 0.0
    %475 = vmatpush1.msra.mxu0 0.0
    %476 = vmatprep.subr.mxu0 0.0
    %477 = vmatpush1.msra.mxu0 0.0
    %478 = vmatprep.subr.mxu0 0.0
    %479 = vmatpush1.msra.mxu0 0.0
    %480 = vmatprep.subr.mxu0 0.0
    %481 = vmatpush1.msra.mxu0 0.0
    %482 = vmatprep.subr.mxu0 0.0
    %483 = vmatpush1.msra.mxu0 0.0
    %484 = vmatprep.subr.mxu0 0.0
    %485 = vmatpush1.msra.mxu0 0.0
    %486 = vmatprep.subr.mxu0 0.0
    %487 = vmatpush1.msra.mxu0 0.0
    %488 = vmatprep.subr.mxu0 0.0
    %489 = vmatpush1.msra.mxu0 0.0
    %490 = vmatprep.subr.mxu0 0.0
    %491 = vmatpush1.msra.mxu0 0.0
    %492 = vmatprep.subr.mxu0 0.0
    %493 = vmatpush1.msra.mxu0 0.0
    %494 = vmatprep.subr.mxu0 0.0
    %495 = vmatpush1.msra.mxu0 0.0
    %496 = vmatprep.subr.mxu0 0.0
    %497 = vmatpush1.msra.mxu0 0.0
    %498 = vmatprep.subr.mxu0 0.0
    %499 = vmatpush1.msra.mxu0 0.0
    %500 = vmatprep.subr.mxu0 0.0
    %501 = vmatpush1.msra.mxu0 0.0
    %502 = vmatprep.subr.mxu0 0.0
    %503 = vmatpush1.msra.mxu0 0.0
    %504 = vmatprep.subr.mxu0 0.0
    %505 = vmatpush1.msra.mxu0 0.0
    %506 = vmatprep.subr.mxu0 0.0
    %507 = vmatpush1.msra.mxu0 0.0
    %508 = vmatprep.subr.mxu0 0.0
    %509 = vmatpush1.msra.mxu0 0.0
    %510 = vmatprep.subr.mxu0 0.0
    %511 = vmatpush1.msra.mxu0 0.0
    %512 = vmatprep.subr.mxu0 0.0
    %513 = vmatpush1.msra.mxu0 0.0
    %514 = vmatprep.subr.mxu0 0.0
    %515 = vmatpush1.msra.mxu0 0.0
    %516 = vmatprep.subr.mxu0 0.0
    %517 = vmatpush1.msra.mxu0 0.0
    %518 = vmatprep.subr.mxu0 0.0
    %519 = vmatpush1.msra.mxu0 0.0
    %520 = vmatprep.subr.mxu0 0.0
    %521 = vmatpush1.msra.mxu0 0.0
    %522 = vmatprep.subr.mxu0 0.0
    %523 = vmatpush1.msra.mxu0 0.0
    %524 = vmatprep.subr.mxu0 0.0
    %525 = vmatpush1.msra.mxu0 0.0
    %526 = vmatprep.subr.mxu0 0.0
    %527 = vmatpush1.msra.mxu0 0.0
    %528 = vmatprep.subr.mxu0 0.0
    %529 = vmatpush1.msra.mxu0 0.0
    %530 = vmatprep.subr.mxu0 0.0
    %531 = vmatpush1.msra.mxu0 0.0
    %532 = vmatprep.subr.mxu0 0.0
    %533 = vmatpush1.msra.mxu0 0.0
    %534 = vmatprep.subr.mxu0 0.0
    %535 = vmatpush1.msra.mxu0 0.0
    %536 = vmatprep.mubr.f32.mxu0 0.0
    %537 = vmatmul.mubr.f32.gmra.mrb[0].mxu0 %v468
    %v538 = vpop.f32.mrb[0].mxu0
    %v539 = vadd.f32 %v462, %v538
    %v540 = vpop.f32.mrb[0].mxu0
    %541 = vmatprep.mubr.f32.mxu0 0.0
    %542 = vmatmul.mubr.f32.gmra.mrb[0].mxu0 %v470
    %v543 = vpop.f32.mrb[0].mxu0
    %v544 = vadd.f32 %v465, %v543
    %v545 = vpop.f32.mrb[0].mxu0
    %546 = vdwg.mxu0
    %v547 = vld [vmem:[%s4 + $0x4] sm:$0xf]
    %v548 = vld [vmem:[%s4 + $0x24] sm:$0xf]
    %v549 = vld [vmem:[%s4 + $0x44] sm:$0xf]
    %v550 = vld [vmem:[%s4 + $0x64] sm:$0xf]
    %v551 = vld [vmem:[%s5 + $0x1] sm:$0x1]
    %v553 = vlaneseq
    %v554 = vshrl.u32 %v553, 7
    %v555 = vsub.s32 0, %v554
    %v556 = vrot.slane %v551, %v555
    %v562 = vunpack.c.l.b16 %v547
    %v563 = vunpack.c.l.b16 %v548
    %v564 = vunpack.c.l.b16 %v549
    %v565 = vunpack.c.l.b16 %v550
    %v566 = vpack.c.b16 %v563, %v562
    %v567 = vpack.c.b16 %v565, %v564
    %570 = vmatprep.subr.bf16.mxu0 0
    %571 = vmatpush1.bf16.msra.mxu0 %v566
    %572 = vmatprep.subr.bf16.mxu0 0
    %573 = vmatpush1.bf16.msra.mxu0 %v567
    %574 = vmatprep.subr.bf16.mxu0 0
    %575 = vmatpush1.bf16.msra.mxu0 0
    %576 = vmatprep.subr.bf16.mxu0 0
    %577 = vmatpush1.bf16.msra.mxu0 0
    %578 = vmatprep.subr.bf16.mxu0 0
    %579 = vmatpush1.bf16.msra.mxu0 0
    %580 = vmatprep.subr.bf16.mxu0 0
    %581 = vmatpush1.bf16.msra.mxu0 0
    %582 = vmatprep.subr.bf16.mxu0 0
    %583 = vmatpush1.bf16.msra.mxu0 0
    %584 = vmatprep.subr.bf16.mxu0 0
    %585 = vmatpush1.bf16.msra.mxu0 0
    %586 = vmatprep.subr.bf16.mxu0 0
    %587 = vmatpush1.bf16.msra.mxu0 0
    %588 = vmatprep.subr.bf16.mxu0 0
    %589 = vmatpush1.bf16.msra.mxu0 0
    %590 = vmatprep.subr.bf16.mxu0 0
    %591 = vmatpush1.bf16.msra.mxu0 0
    %592 = vmatprep.subr.bf16.mxu0 0
    %593 = vmatpush1.bf16.msra.mxu0 0
    %594 = vmatprep.subr.bf16.mxu0 0
    %595 = vmatpush1.bf16.msra.mxu0 0
    %596 = vmatprep.subr.bf16.mxu0 0
    %597 = vmatpush1.bf16.msra.mxu0 0
    %598 = vmatprep.subr.bf16.mxu0 0
    %599 = vmatpush1.bf16.msra.mxu0 0
    %600 = vmatprep.subr.bf16.mxu0 0
    %601 = vmatpush1.bf16.msra.mxu0 0
    %602 = vmatprep.mubr.bf16.mxu0 0
    %603 = vmatmul.mubr.bf16.gmra.mrb[0].mxu0 %v305
    %v604 = vpop.f32.mrb[0].mxu0
    %v605 = vadd.f32 %v556, %v604
    %v606 = vpop.f32.mrb[0].mxu0
    %v607 = vpop.f32.mrb[0].mxu0
    %v608 = vadd.f32 %v556, %v607
    %v609 = vpop.f32.mrb[0].mxu0
    %610 = vdwg.mxu0
    %v611 = vmax.f32 %v605, 0.0
    %v612 = vmax.f32 %v608, 0.0
    %613 = vset.pattern.permute.xlu0 1
    %614 = vperm.xlu0 %613, %v277
    %v615 = vpop.permute.xlu0 %614
    %617 = vset.pattern.permute.xlu0 1
    %618 = vperm.xlu0 %617, %v278
    %v619 = vpop.permute.xlu0 %618
    %v621 = vmul.f32 %v611, %v615
    %v622 = vmul.f32 %v612, %v619
    %v623 = vpack.c.bf16 %v622, %v621
    %v624 = vld [vmem:[%s6 + $0x40] sm:$0xf]
    %v625 = vld [vmem:[%s6 + $0x44] sm:$0xf]
    %v626 = vld [vmem:[%s6 + $0x48] sm:$0xf]
    %v627 = vld [vmem:[%s6 + $0x4c] sm:$0xf]
    %v628 = vld [vmem:[%s6 + $0x50] sm:$0xf]
    %v629 = vld [vmem:[%s6 + $0x54] sm:$0xf]
    %v630 = vld [vmem:[%s6 + $0x58] sm:$0xf]
    %v631 = vld [vmem:[%s6 + $0x5c] sm:$0xf]
    %v632 = vld [vmem:[%s6 + $0x60] sm:$0xf]
    %v633 = vld [vmem:[%s6 + $0x64] sm:$0xf]
    %v634 = vld [vmem:[%s6 + $0x68] sm:$0xf]
    %v635 = vld [vmem:[%s6 + $0x6c] sm:$0xf]
    %v636 = vld [vmem:[%s6 + $0x70] sm:$0xf]
    %v637 = vld [vmem:[%s6 + $0x74] sm:$0xf]
    %v638 = vld [vmem:[%s6 + $0x78] sm:$0xf]
    %v639 = vld [vmem:[%s6 + $0x7c] sm:$0xf]
    %v656 = vunpack.c.l.b16 %v624
    %v657 = vunpack.c.l.b16 %v625
    %v658 = vunpack.c.l.b16 %v626
    %v659 = vunpack.c.l.b16 %v627
    %v660 = vunpack.c.l.b16 %v628
    %v661 = vunpack.c.l.b16 %v629
    %v662 = vunpack.c.l.b16 %v630
    %v663 = vunpack.c.l.b16 %v631
    %v664 = vunpack.c.l.b16 %v632
    %v665 = vunpack.c.l.b16 %v633
    %v666 = vunpack.c.l.b16 %v634
    %v667 = vunpack.c.l.b16 %v635
    %v668 = vunpack.c.l.b16 %v636
    %v669 = vunpack.c.l.b16 %v637
    %v670 = vunpack.c.l.b16 %v638
    %v671 = vunpack.c.l.b16 %v639
    %v672 = vpack.c.b16 %v657, %v656
    %v673 = vpack.c.b16 %v659, %v658
    %v674 = vpack.c.b16 %v661, %v660
    %v675 = vpack.c.b16 %v663, %v662
    %v676 = vpack.c.b16 %v665, %v664
    %v677 = vpack.c.b16 %v667, %v666
    %v678 = vpack.c.b16 %v669, %v668
    %v679 = vpack.c.b16 %v671, %v670
    %688 = vmatprep.subr.bf16.mxu0 0
    %689 = vmatpush1.bf16.msra.mxu0 %v672
    %690 = vmatprep.subr.bf16.mxu0 0
    %691 = vmatpush1.bf16.msra.mxu0 %v673
    %692 = vmatprep.subr.bf16.mxu0 0
    %693 = vmatpush1.bf16.msra.mxu0 %v674
    %694 = vmatprep.subr.bf16.mxu0 0
    %695 = vmatpush1.bf16.msra.mxu0 %v675
    %696 = vmatprep.subr.bf16.mxu0 0
    %697 = vmatpush1.bf16.msra.mxu0 %v676
    %698 = vmatprep.subr.bf16.mxu0 0
    %699 = vmatpush1.bf16.msra.mxu0 %v677
    %700 = vmatprep.subr.bf16.mxu0 0
    %701 = vmatpush1.bf16.msra.mxu0 %v678
    %702 = vmatprep.subr.bf16.mxu0 0
    %703 = vmatpush1.bf16.msra.mxu0 %v679
    %704 = vmatprep.subr.bf16.mxu0 0
    %705 = vmatpush1.bf16.msra.mxu0 0
    %706 = vmatprep.subr.bf16.mxu0 0
    %707 = vmatpush1.bf16.msra.mxu0 0
    %708 = vmatprep.subr.bf16.mxu0 0
    %709 = vmatpush1.bf16.msra.mxu0 0
    %710 = vmatprep.subr.bf16.mxu0 0
    %711 = vmatpush1.bf16.msra.mxu0 0
    %712 = vmatprep.subr.bf16.mxu0 0
    %713 = vmatpush1.bf16.msra.mxu0 0
    %714 = vmatprep.subr.bf16.mxu0 0
    %715 = vmatpush1.bf16.msra.mxu0 0
    %716 = vmatprep.subr.bf16.mxu0 0
    %717 = vmatpush1.bf16.msra.mxu0 0
    %718 = vmatprep.subr.bf16.mxu0 0
    %719 = vmatpush1.bf16.msra.mxu0 0
    %720 = vmatprep.mubr.bf16.mxu0 0
    %721 = vmatmul.mubr.bf16.gmra.mrb[0].mxu0 %v623
    %v722 = vpop.f32.mrb[0].mxu0
    %v723 = vadd.f32 0.0, %v722
    %v724 = vpop.f32.mrb[0].mxu0
    %v725 = vpop.f32.mrb[0].mxu0
    %v726 = vadd.f32 0.0, %v725
    %v727 = vpop.f32.mrb[0].mxu0
    %728 = vdwg.mxu0
    %v729 = vadd.f32 %v539, %v723
    %v730 = vadd.f32 %v544, %v726
    %v731 = vld [vmem:[%s4 + $0x8] sm:$0xf]
    %v732 = vld [vmem:[%s4 + $0x28] sm:$0xf]
    %v733 = vld [vmem:[%s4 + $0x48] sm:$0xf]
    %v734 = vld [vmem:[%s4 + $0x68] sm:$0xf]
    %v735 = vld [vmem:[%s5 + $0x2] sm:$0x1]
    %v737 = vlaneseq
    %v738 = vshrl.u32 %v737, 7
    %v739 = vsub.s32 0, %v738
    %v740 = vrot.slane %v735, %v739
    %v746 = vunpack.c.l.b16 %v731
    %v747 = vunpack.c.l.b16 %v732
    %v748 = vunpack.c.l.b16 %v733
    %v749 = vunpack.c.l.b16 %v734
    %v750 = vpack.c.b16 %v747, %v746
    %v751 = vpack.c.b16 %v749, %v748
    %754 = vmatprep.subr.bf16.mxu0 0
    %755 = vmatpush1.bf16.msra.mxu0 %v750
    %756 = vmatprep.subr.bf16.mxu0 0
    %757 = vmatpush1.bf16.msra.mxu0 %v751
    %758 = vmatprep.subr.bf16.mxu0 0
    %759 = vmatpush1.bf16.msra.mxu0 0
    %760 = vmatprep.subr.bf16.mxu0 0
    %761 = vmatpush1.bf16.msra.mxu0 0
    %762 = vmatprep.subr.bf16.mxu0 0
    %763 = vmatpush1.bf16.msra.mxu0 0
    %764 = vmatprep.subr.bf16.mxu0 0
    %765 = vmatpush1.bf16.msra.mxu0 0
    %766 = vmatprep.subr.bf16.mxu0 0
    %767 = vmatpush1.bf16.msra.mxu0 0
    %768 = vmatprep.subr.bf16.mxu0 0
    %769 = vmatpush1.bf16.msra.mxu0 0
    %770 = vmatprep.subr.bf16.mxu0 0
    %771 = vmatpush1.bf16.msra.mxu0 0
    %772 = vmatprep.subr.bf16.mxu0 0
    %773 = vmatpush1.bf16.msra.mxu0 0
    %774 = vmatprep.subr.bf16.mxu0 0
    %775 = vmatpush1.bf16.msra.mxu0 0
    %776 = vmatprep.subr.bf16.mxu0 0
    %777 = vmatpush1.bf16.msra.mxu0 0
    %778 = vmatprep.subr.bf16.mxu0 0
    %779 = vmatpush1.bf16.msra.mxu0 0
    %780 = vmatprep.subr.bf16.mxu0 0
    %781 = vmatpush1.bf16.msra.mxu0 0
    %782 = vmatprep.subr.bf16.mxu0 0
    %783 = vmatpush1.bf16.msra.mxu0 0
    %784 = vmatprep.subr.bf16.mxu0 0
    %785 = vmatpush1.bf16.msra.mxu0 0
    %786 = vmatprep.mubr.bf16.mxu0 0
    %787 = vmatmul.mubr.bf16.gmra.mrb[0].mxu0 %v305
    %v788 = vpop.f32.mrb[0].mxu0
    %v789 = vadd.f32 %v740, %v788
    %v790 = vpop.f32.mrb[0].mxu0
    %v791 = vpop.f32.mrb[0].mxu0
    %v792 = vadd.f32 %v740, %v791
    %v793 = vpop.f32.mrb[0].mxu0
    %794 = vdwg.mxu0
    %v795 = vmax.f32 %v789, 0.0
    %v796 = vmax.f32 %v792, 0.0
    %797 = vset.pattern.permute.xlu0 2
    %798 = vperm.xlu0 %797, %v277
    %v799 = vpop.permute.xlu0 %798
    %801 = vset.pattern.permute.xlu0 2
    %802 = vperm.xlu0 %801, %v278
    %v803 = vpop.permute.xlu0 %802
    %v805 = vmul.f32 %v795, %v799
    %v806 = vmul.f32 %v796, %v803
    %v807 = vpack.c.bf16 %v806, %v805
    %v808 = vld [vmem:[%s6 + $0x80] sm:$0xf]
    %v809 = vld [vmem:[%s6 + $0x84] sm:$0xf]
    %v810 = vld [vmem:[%s6 + $0x88] sm:$0xf]
    %v811 = vld [vmem:[%s6 + $0x8c] sm:$0xf]
    %v812 = vld [vmem:[%s6 + $0x90] sm:$0xf]
    %v813 = vld [vmem:[%s6 + $0x94] sm:$0xf]
    %v814 = vld [vmem:[%s6 + $0x98] sm:$0xf]
    %v815 = vld [vmem:[%s6 + $0x9c] sm:$0xf]
    %v816 = vld [vmem:[%s6 + $0xa0] sm:$0xf]
    %v817 = vld [vmem:[%s6 + $0xa4] sm:$0xf]
    %v818 = vld [vmem:[%s6 + $0xa8] sm:$0xf]
    %v819 = vld [vmem:[%s6 + $0xac] sm:$0xf]
    %v820 = vld [vmem:[%s6 + $0xb0] sm:$0xf]
    %v821 = vld [vmem:[%s6 + $0xb4] sm:$0xf]
    %v822 = vld [vmem:[%s6 + $0xb8] sm:$0xf]
    %v823 = vld [vmem:[%s6 + $0xbc] sm:$0xf]
    %v840 = vunpack.c.l.b16 %v808
    %v841 = vunpack.c.l.b16 %v809
    %v842 = vunpack.c.l.b16 %v810
    %v843 = vunpack.c.l.b16 %v811
    %v844 = vunpack.c.l.b16 %v812
    %v845 = vunpack.c.l.b16 %v813
    %v846 = vunpack.c.l.b16 %v814
    %v847 = vunpack.c.l.b16 %v815
    %v848 = vunpack.c.l.b16 %v816
    %v849 = vunpack.c.l.b16 %v817
    %v850 = vunpack.c.l.b16 %v818
    %v851 = vunpack.c.l.b16 %v819
    %v852 = vunpack.c.l.b16 %v820
    %v853 = vunpack.c.l.b16 %v821
    %v854 = vunpack.c.l.b16 %v822
    %v855 = vunpack.c.l.b16 %v823
    %v856 = vpack.c.b16 %v841, %v840
    %v857 = vpack.c.b16 %v843, %v842
    %v858 = vpack.c.b16 %v845, %v844
    %v859 = vpack.c.b16 %v847, %v846
    %v860 = vpack.c.b16 %v849, %v848
    %v861 = vpack.c.b16 %v851, %v850
    %v862 = vpack.c.b16 %v853, %v852
    %v863 = vpack.c.b16 %v855, %v854
    %872 = vmatprep.subr.bf16.mxu0 0
    %873 = vmatpush1.bf16.msra.mxu0 %v856
    %874 = vmatprep.subr.bf16.mxu0 0
    %875 = vmatpush1.bf16.msra.mxu0 %v857
    %876 = vmatprep.subr.bf16.mxu0 0
    %877 = vmatpush1.bf16.msra.mxu0 %v858
    %878 = vmatprep.subr.bf16.mxu0 0
    %879 = vmatpush1.bf16.msra.mxu0 %v859
    %880 = vmatprep.subr.bf16.mxu0 0
    %881 = vmatpush1.bf16.msra.mxu0 %v860
    %882 = vmatprep.subr.bf16.mxu0 0
    %883 = vmatpush1.bf16.msra.mxu0 %v861
    %884 = vmatprep.subr.bf16.mxu0 0
    %885 = vmatpush1.bf16.msra.mxu0 %v862
    %886 = vmatprep.subr.bf16.mxu0 0
    %887 = vmatpush1.bf16.msra.mxu0 %v863
    %888 = vmatprep.subr.bf16.mxu0 0
    %889 = vmatpush1.bf16.msra.mxu0 0
    %890 = vmatprep.subr.bf16.mxu0 0
    %891 = vmatpush1.bf16.msra.mxu0 0
    %892 = vmatprep.subr.bf16.mxu0 0
    %893 = vmatpush1.bf16.msra.mxu0 0
    %894 = vmatprep.subr.bf16.mxu0 0
    %895 = vmatpush1.bf16.msra.mxu0 0
    %896 = vmatprep.subr.bf16.mxu0 0
    %897 = vmatpush1.bf16.msra.mxu0 0
    %898 = vmatprep.subr.bf16.mxu0 0
    %899 = vmatpush1.bf16.msra.mxu0 0
    %900 = vmatprep.subr.bf16.mxu0 0
    %901 = vmatpush1.bf16.msra.mxu0 0
    %902 = vmatprep.subr.bf16.mxu0 0
    %903 = vmatpush1.bf16.msra.mxu0 0
    %904 = vmatprep.mubr.bf16.mxu0 0
    %905 = vmatmul.mubr.bf16.gmra.mrb[0].mxu0 %v807
    %v906 = vpop.f32.mrb[0].mxu0
    %v907 = vadd.f32 0.0, %v906
    %v908 = vpop.f32.mrb[0].mxu0
    %v909 = vpop.f32.mrb[0].mxu0
    %v910 = vadd.f32 0.0, %v909
    %v911 = vpop.f32.mrb[0].mxu0
    %912 = vdwg.mxu0
    %v913 = vadd.f32 %v729, %v907
    %v914 = vadd.f32 %v730, %v910
    %v915 = vld [vmem:[%s4 + $0xc] sm:$0xf]
    %v916 = vld [vmem:[%s4 + $0x2c] sm:$0xf]
    %v917 = vld [vmem:[%s4 + $0x4c] sm:$0xf]
    %v918 = vld [vmem:[%s4 + $0x6c] sm:$0xf]
    %v919 = vld [vmem:[%s5 + $0x3] sm:$0x1]
    %v921 = vlaneseq
    %v922 = vshrl.u32 %v921, 7
    %v923 = vsub.s32 0, %v922
    %v924 = vrot.slane %v919, %v923
    %v930 = vunpack.c.l.b16 %v915
    %v931 = vunpack.c.l.b16 %v916
    %v932 = vunpack.c.l.b16 %v917
    %v933 = vunpack.c.l.b16 %v918
    %v934 = vpack.c.b16 %v931, %v930
    %v935 = vpack.c.b16 %v933, %v932
    %938 = vmatprep.subr.bf16.mxu0 0
    %939 = vmatpush1.bf16.msra.mxu0 %v934
    %940 = vmatprep.subr.bf16.mxu0 0
    %941 = vmatpush1.bf16.msra.mxu0 %v935
    %942 = vmatprep.subr.bf16.mxu0 0
    %943 = vmatpush1.bf16.msra.mxu0 0
    %944 = vmatprep.subr.bf16.mxu0 0
    %945 = vmatpush1.bf16.msra.mxu0 0
    %946 = vmatprep.subr.bf16.mxu0 0
    %947 = vmatpush1.bf16.msra.mxu0 0
    %948 = vmatprep.subr.bf16.mxu0 0
    %949 = vmatpush1.bf16.msra.mxu0 0
    %950 = vmatprep.subr.bf16.mxu0 0
    %951 = vmatpush1.bf16.msra.mxu0 0
    %952 = vmatprep.subr.bf16.mxu0 0
    %953 = vmatpush1.bf16.msra.mxu0 0
    %954 = vmatprep.subr.bf16.mxu0 0
    %955 = vmatpush1.bf16.msra.mxu0 0
    %956 = vmatprep.subr.bf16.mxu0 0
    %957 = vmatpush1.bf16.msra.mxu0 0
    %958 = vmatprep.subr.bf16.mxu0 0
    %959 = vmatpush1.bf16.msra.mxu0 0
    %960 = vmatprep.subr.bf16.mxu0 0
    %961 = vmatpush1.bf16.msra.mxu0 0
    %962 = vmatprep.subr.bf16.mxu0 0
    %963 = vmatpush1.bf16.msra.mxu0 0
    %964 = vmatprep.subr.bf16.mxu0 0
    %965 = vmatpush1.bf16.msra.mxu0 0
    %966 = vmatprep.subr.bf16.mxu0 0
    %967 = vmatpush1.bf16.msra.mxu0 0
    %968 = vmatprep.subr.bf16.mxu0 0
    %969 = vmatpush1.bf16.msra.mxu0 0
    %970 = vmatprep.mubr.bf16.mxu0 0
    %971 = vmatmul.mubr.bf16.gmra.mrb[0].mxu0 %v305
    %v972 = vpop.f32.mrb[0].mxu0
    %v973 = vadd.f32 %v924, %v972
    %v974 = vpop.f32.mrb[0].mxu0
    %v975 = vpop.f32.mrb[0].mxu0
    %v976 = vadd.f32 %v924, %v975
    %v977 = vpop.f32.mrb[0].mxu0
    %978 = vdwg.mxu0
    %v979 = vmax.f32 %v973, 0.0
    %v980 = vmax.f32 %v976, 0.0
    %981 = vset.pattern.permute.xlu0 3
    %982 = vperm.xlu0 %981, %v277
    %v983 = vpop.permute.xlu0 %982
    %985 = vset.pattern.permute.xlu0 3
    %986 = vperm.xlu0 %985, %v278
    %v987 = vpop.permute.xlu0 %986
    %v989 = vmul.f32 %v979, %v983
    %v990 = vmul.f32 %v980, %v987
    %v991 = vpack.c.bf16 %v990, %v989
    %v992 = vld [vmem:[%s6 + $0xc0] sm:$0xf]
    %v993 = vld [vmem:[%s6 + $0xc4] sm:$0xf]
    %v994 = vld [vmem:[%s6 + $0xc8] sm:$0xf]
    %v995 = vld [vmem:[%s6 + $0xcc] sm:$0xf]
    %v996 = vld [vmem:[%s6 + $0xd0] sm:$0xf]
    %v997 = vld [vmem:[%s6 + $0xd4] sm:$0xf]
    %v998 = vld [vmem:[%s6 + $0xd8] sm:$0xf]
    %v999 = vld [vmem:[%s6 + $0xdc] sm:$0xf]
    %v1000 = vld [vmem:[%s6 + $0xe0] sm:$0xf]
    %v1001 = vld [vmem:[%s6 + $0xe4] sm:$0xf]
    %v1002 = vld [vmem:[%s6 + $0xe8] sm:$0xf]
    %v1003 = vld [vmem:[%s6 + $0xec] sm:$0xf]
    %v1004 = vld [vmem:[%s6 + $0xf0] sm:$0xf]
    %v1005 = vld [vmem:[%s6 + $0xf4] sm:$0xf]
    %v1006 = vld [vmem:[%s6 + $0xf8] sm:$0xf]
    %v1007 = vld [vmem:[%s6 + $0xfc] sm:$0xf]
    %v1024 = vunpack.c.l.b16 %v992
    %v1025 = vunpack.c.l.b16 %v993
    %v1026 = vunpack.c.l.b16 %v994
    %v1027 = vunpack.c.l.b16 %v995
    %v1028 = vunpack.c.l.b16 %v996
    %v1029 = vunpack.c.l.b16 %v997
    %v1030 = vunpack.c.l.b16 %v998
    %v1031 = vunpack.c.l.b16 %v999
    %v1032 = vunpack.c.l.b16 %v1000
    %v1033 = vunpack.c.l.b16 %v1001
    %v1034 = vunpack.c.l.b16 %v1002
    %v1035 = vunpack.c.l.b16 %v1003
    %v1036 = vunpack.c.l.b16 %v1004
    %v1037 = vunpack.c.l.b16 %v1005
    %v1038 = vunpack.c.l.b16 %v1006
    %v1039 = vunpack.c.l.b16 %v1007
    %v1040 = vpack.c.b16 %v1025, %v1024
    %v1041 = vpack.c.b16 %v1027, %v1026
    %v1042 = vpack.c.b16 %v1029, %v1028
    %v1043 = vpack.c.b16 %v1031, %v1030
    %v1044 = vpack.c.b16 %v1033, %v1032
    %v1045 = vpack.c.b16 %v1035, %v1034
    %v1046 = vpack.c.b16 %v1037, %v1036
    %v1047 = vpack.c.b16 %v1039, %v1038
    %1056 = vmatprep.subr.bf16.mxu0 0
    %1057 = vmatpush1.bf16.msra.mxu0 %v1040
    %1058 = vmatprep.subr.bf16.mxu0 0
    %1059 = vmatpush1.bf16.msra.mxu0 %v1041
    %1060 = vmatprep.subr.bf16.mxu0 0
    %1061 = vmatpush1.bf16.msra.mxu0 %v1042
    %1062 = vmatprep.subr.bf16.mxu0 0
    %1063 = vmatpush1.bf16.msra.mxu0 %v1043
    %1064 = vmatprep.subr.bf16.mxu0 0
    %1065 = vmatpush1.bf16.msra.mxu0 %v1044
    %1066 = vmatprep.subr.bf16.mxu0 0
    %1067 = vmatpush1.bf16.msra.mxu0 %v1045
    %1068 = vmatprep.subr.bf16.mxu0 0
    %1069 = vmatpush1.bf16.msra.mxu0 %v1046
    %1070 = vmatprep.subr.bf16.mxu0 0
    %1071 = vmatpush1.bf16.msra.mxu0 %v1047
    %1072 = vmatprep.subr.bf16.mxu0 0
    %1073 = vmatpush1.bf16.msra.mxu0 0
    %1074 = vmatprep.subr.bf16.mxu0 0
    %1075 = vmatpush1.bf16.msra.mxu0 0
    %1076 = vmatprep.subr.bf16.mxu0 0
    %1077 = vmatpush1.bf16.msra.mxu0 0
    %1078 = vmatprep.subr.bf16.mxu0 0
    %1079 = vmatpush1.bf16.msra.mxu0 0
    %1080 = vmatprep.subr.bf16.mxu0 0
    %1081 = vmatpush1.bf16.msra.mxu0 0
    %1082 = vmatprep.subr.bf16.mxu0 0
    %1083 = vmatpush1.bf16.msra.mxu0 0
    %1084 = vmatprep.subr.bf16.mxu0 0
    %1085 = vmatpush1.bf16.msra.mxu0 0
    %1086 = vmatprep.subr.bf16.mxu0 0
    %1087 = vmatpush1.bf16.msra.mxu0 0
    %1088 = vmatprep.mubr.bf16.mxu0 0
    %1089 = vmatmul.mubr.bf16.gmra.mrb[0].mxu0 %v991
    %v1090 = vpop.f32.mrb[0].mxu0
    %v1091 = vadd.f32 0.0, %v1090
    %v1092 = vpop.f32.mrb[0].mxu0
    %v1093 = vpop.f32.mrb[0].mxu0
    %v1094 = vadd.f32 0.0, %v1093
    %v1095 = vpop.f32.mrb[0].mxu0
    %1096 = vdwg.mxu0
    %v1097 = vadd.f32 %v913, %v1091
    %v1098 = vadd.f32 %v914, %v1094
    %v1099 = vld [vmem:[%s4 + $0x10] sm:$0xf]
    %v1100 = vld [vmem:[%s4 + $0x30] sm:$0xf]
    %v1101 = vld [vmem:[%s4 + $0x50] sm:$0xf]
    %v1102 = vld [vmem:[%s4 + $0x70] sm:$0xf]
    %v1103 = vld [vmem:[%s5 + $0x4] sm:$0x1]
    %v1105 = vlaneseq
    %v1106 = vshrl.u32 %v1105, 7
    %v1107 = vsub.s32 0, %v1106
    %v1108 = vrot.slane %v1103, %v1107
    %v1114 = vunpack.c.l.b16 %v1099
    %v1115 = vunpack.c.l.b16 %v1100
    %v1116 = vunpack.c.l.b16 %v1101
    %v1117 = vunpack.c.l.b16 %v1102
    %v1118 = vpack.c.b16 %v1115, %v1114
    %v1119 = vpack.c.b16 %v1117, %v1116
    %1122 = vmatprep.subr.bf16.mxu0 0
    %1123 = vmatpush1.bf16.msra.mxu0 %v1118
    %1124 = vmatprep.subr.bf16.mxu0 0
    %1125 = vmatpush1.bf16.msra.mxu0 %v1119
    %1126 = vmatprep.subr.bf16.mxu0 0
    %1127 = vmatpush1.bf16.msra.mxu0 0
    %1128 = vmatprep.subr.bf16.mxu0 0
    %1129 = vmatpush1.bf16.msra.mxu0 0
    %1130 = vmatprep.subr.bf16.mxu0 0
    %1131 = vmatpush1.bf16.msra.mxu0 0
    %1132 = vmatprep.subr.bf16.mxu0 0
    %1133 = vmatpush1.bf16.msra.mxu0 0
    %1134 = vmatprep.subr.bf16.mxu0 0
    %1135 = vmatpush1.bf16.msra.mxu0 0
    %1136 = vmatprep.subr.bf16.mxu0 0
    %1137 = vmatpush1.bf16.msra.mxu0 0
    %1138 = vmatprep.subr.bf16.mxu0 0
    %1139 = vmatpush1.bf16.msra.mxu0 0
    %1140 = vmatprep.subr.bf16.mxu0 0
    %1141 = vmatpush1.bf16.msra.mxu0 0
    %1142 = vmatprep.subr.bf16.mxu0 0
    %1143 = vmatpush1.bf16.msra.mxu0 0
    %1144 = vmatprep.subr.bf16.mxu0 0
    %1145 = vmatpush1.bf16.msra.mxu0 0
    %1146 = vmatprep.subr.bf16.mxu0 0
    %1147 = vmatpush1.bf16.msra.mxu0 0
    %1148 = vmatprep.subr.bf16.mxu0 0
    %1149 = vmatpush1.bf16.msra.mxu0 0
    %1150 = vmatprep.subr.bf16.mxu0 0
    %1151 = vmatpush1.bf16.msra.mxu0 0
    %1152 = vmatprep.subr.bf16.mxu0 0
    %1153 = vmatpush1.bf16.msra.mxu0 0
    %1154 = vmatprep.mubr.bf16.mxu0 0
    %1155 = vmatmul.mubr.bf16.gmra.mrb[0].mxu0 %v305
    %v1156 = vpop.f32.mrb[0].mxu0
    %v1157 = vadd.f32 %v1108, %v1156
    %v1158 = vpop.f32.mrb[0].mxu0
    %v1159 = vpop.f32.mrb[0].mxu0
    %v1160 = vadd.f32 %v1108, %v1159
    %v1161 = vpop.f32.mrb[0].mxu0
    %1162 = vdwg.mxu0
    %v1163 = vmax.f32 %v1157, 0.0
    %v1164 = vmax.f32 %v1160, 0.0
    %1165 = vset.pattern.permute.xlu0 4
    %1166 = vperm.xlu0 %1165, %v277
    %v1167 = vpop.permute.xlu0 %1166
    %1169 = vset.pattern.permute.xlu0 4
    %1170 = vperm.xlu0 %1169, %v278
    %v1171 = vpop.permute.xlu0 %1170
    %v1173 = vmul.f32 %v1163, %v1167
    %v1174 = vmul.f32 %v1164, %v1171
    %v1175 = vpack.c.bf16 %v1174, %v1173
    %v1176 = vld [vmem:[%s6 + $0x100] sm:$0xf]
    %v1177 = vld [vmem:[%s6 + $0x104] sm:$0xf]
    %v1178 = vld [vmem:[%s6 + $0x108] sm:$0xf]
    %v1179 = vld [vmem:[%s6 + $0x10c] sm:$0xf]
    %v1180 = vld [vmem:[%s6 + $0x110] sm:$0xf]
    %v1181 = vld [vmem:[%s6 + $0x114] sm:$0xf]
    %v1182 = vld [vmem:[%s6 + $0x118] sm:$0xf]
    %v1183 = vld [vmem:[%s6 + $0x11c] sm:$0xf]
    %v1184 = vld [vmem:[%s6 + $0x120] sm:$0xf]
    %v1185 = vld [vmem:[%s6 + $0x124] sm:$0xf]
    %v1186 = vld [vmem:[%s6 + $0x128] sm:$0xf]
    %v1187 = vld [vmem:[%s6 + $0x12c] sm:$0xf]
    %v1188 = vld [vmem:[%s6 + $0x130] sm:$0xf]
    %v1189 = vld [vmem:[%s6 + $0x134] sm:$0xf]
    %v1190 = vld [vmem:[%s6 + $0x138] sm:$0xf]
    %v1191 = vld [vmem:[%s6 + $0x13c] sm:$0xf]
    %v1208 = vunpack.c.l.b16 %v1176
    %v1209 = vunpack.c.l.b16 %v1177
    %v1210 = vunpack.c.l.b16 %v1178
    %v1211 = vunpack.c.l.b16 %v1179
    %v1212 = vunpack.c.l.b16 %v1180
    %v1213 = vunpack.c.l.b16 %v1181
    %v1214 = vunpack.c.l.b16 %v1182
    %v1215 = vunpack.c.l.b16 %v1183
    %v1216 = vunpack.c.l.b16 %v1184
    %v1217 = vunpack.c.l.b16 %v1185
    %v1218 = vunpack.c.l.b16 %v1186
    %v1219 = vunpack.c.l.b16 %v1187
    %v1220 = vunpack.c.l.b16 %v1188
    %v1221 = vunpack.c.l.b16 %v1189
    %v1222 = vunpack.c.l.b16 %v1190
    %v1223 = vunpack.c.l.b16 %v1191
    %v1224 = vpack.c.b16 %v1209, %v1208
    %v1225 = vpack.c.b16 %v1211, %v1210
    %v1226 = vpack.c.b16 %v1213, %v1212
    %v1227 = vpack.c.b16 %v1215, %v1214
    %v1228 = vpack.c.b16 %v1217, %v1216
    %v1229 = vpack.c.b16 %v1219, %v1218
    %v1230 = vpack.c.b16 %v1221, %v1220
    %v1231 = vpack.c.b16 %v1223, %v1222
    %1240 = vmatprep.subr.bf16.mxu0 0
    %1241 = vmatpush1.bf16.msra.mxu0 %v1224
    %1242 = vmatprep.subr.bf16.mxu0 0
    %1243 = vmatpush1.bf16.msra.mxu0 %v1225
    %1244 = vmatprep.subr.bf16.mxu0 0
    %1245 = vmatpush1.bf16.msra.mxu0 %v1226
    %1246 = vmatprep.subr.bf16.mxu0 0
    %1247 = vmatpush1.bf16.msra.mxu0 %v1227
    %1248 = vmatprep.subr.bf16.mxu0 0
    %1249 = vmatpush1.bf16.msra.mxu0 %v1228
    %1250 = vmatprep.subr.bf16.mxu0 0
    %1251 = vmatpush1.bf16.msra.mxu0 %v1229
    %1252 = vmatprep.subr.bf16.mxu0 0
    %1253 = vmatpush1.bf16.msra.mxu0 %v1230
    %1254 = vmatprep.subr.bf16.mxu0 0
    %1255 = vmatpush1.bf16.msra.mxu0 %v1231
    %1256 = vmatprep.subr.bf16.mxu0 0
    %1257 = vmatpush1.bf16.msra.mxu0 0
    %1258 = vmatprep.subr.bf16.mxu0 0
    %1259 = vmatpush1.bf16.msra.mxu0 0
    %1260 = vmatprep.subr.bf16.mxu0 0
    %1261 = vmatpush1.bf16.msra.mxu0 0
    %1262 = vmatprep.subr.bf16.mxu0 0
    %1263 = vmatpush1.bf16.msra.mxu0 0
    %1264 = vmatprep.subr.bf16.mxu0 0
    %1265 = vmatpush1.bf16.msra.mxu0 0
    %1266 = vmatprep.subr.bf16.mxu0 0
    %1267 = vmatpush1.bf16.msra.mxu0 0
    %1268 = vmatprep.subr.bf16.mxu0 0
    %1269 = vmatpush1.bf16.msra.mxu0 0
    %1270 = vmatprep.subr.bf16.mxu0 0
    %1271 = vmatpush1.bf16.msra.mxu0 0
    %1272 = vmatprep.mubr.bf16.mxu0 0
    %1273 = vmatmul.mubr.bf16.gmra.mrb[0].mxu0 %v1175
    %v1274 = vpop.f32.mrb[0].mxu0
    %v1275 = vadd.f32 0.0, %v1274
    %v1276 = vpop.f32.mrb[0].mxu0
    %v1277 = vpop.f32.mrb[0].mxu0
    %v1278 = vadd.f32 0.0, %v1277
    %v1279 = vpop.f32.mrb[0].mxu0
    %1280 = vdwg.mxu0
    %v1281 = vadd.f32 %v1097, %v1275
    %v1282 = vadd.f32 %v1098, %v1278
    %v1283 = vld [vmem:[%s4 + $0x14] sm:$0xf]
    %v1284 = vld [vmem:[%s4 + $0x34] sm:$0xf]
    %v1285 = vld [vmem:[%s4 + $0x54] sm:$0xf]
    %v1286 = vld [vmem:[%s4 + $0x74] sm:$0xf]
    %v1287 = vld [vmem:[%s5 + $0x5] sm:$0x1]
    %v1289 = vlaneseq
    %v1290 = vshrl.u32 %v1289, 7
    %v1291 = vsub.s32 0, %v1290
    %v1292 = vrot.slane %v1287, %v1291
    %v1298 = vunpack.c.l.b16 %v1283
    %v1299 = vunpack.c.l.b16 %v1284
    %v1300 = vunpack.c.l.b16 %v1285
    %v1301 = vunpack.c.l.b16 %v1286
    %v1302 = vpack.c.b16 %v1299, %v1298
    %v1303 = vpack.c.b16 %v1301, %v1300
    %1306 = vmatprep.subr.bf16.mxu0 0
    %1307 = vmatpush1.bf16.msra.mxu0 %v1302
    %1308 = vmatprep.subr.bf16.mxu0 0
    %1309 = vmatpush1.bf16.msra.mxu0 %v1303
    %1310 = vmatprep.subr.bf16.mxu0 0
    %1311 = vmatpush1.bf16.msra.mxu0 0
    %1312 = vmatprep.subr.bf16.mxu0 0
    %1313 = vmatpush1.bf16.msra.mxu0 0
    %1314 = vmatprep.subr.bf16.mxu0 0
    %1315 = vmatpush1.bf16.msra.mxu0 0
    %1316 = vmatprep.subr.bf16.mxu0 0
    %1317 = vmatpush1.bf16.msra.mxu0 0
    %1318 = vmatprep.subr.bf16.mxu0 0
    %1319 = vmatpush1.bf16.msra.mxu0 0
    %1320 = vmatprep.subr.bf16.mxu0 0
    %1321 = vmatpush1.bf16.msra.mxu0 0
    %1322 = vmatprep.subr.bf16.mxu0 0
    %1323 = vmatpush1.bf16.msra.mxu0 0
    %1324 = vmatprep.subr.bf16.mxu0 0
    %1325 = vmatpush1.bf16.msra.mxu0 0
    %1326 = vmatprep.subr.bf16.mxu0 0
    %1327 = vmatpush1.bf16.msra.mxu0 0
    %1328 = vmatprep.subr.bf16.mxu0 0
    %1329 = vmatpush1.bf16.msra.mxu0 0
    %1330 = vmatprep.subr.bf16.mxu0 0
    %1331 = vmatpush1.bf16.msra.mxu0 0
    %1332 = vmatprep.subr.bf16.mxu0 0
    %1333 = vmatpush1.bf16.msra.mxu0 0
    %1334 = vmatprep.subr.bf16.mxu0 0
    %1335 = vmatpush1.bf16.msra.mxu0 0
    %1336 = vmatprep.subr.bf16.mxu0 0
    %1337 = vmatpush1.bf16.msra.mxu0 0
    %1338 = vmatprep.mubr.bf16.mxu0 0
    %1339 = vmatmul.mubr.bf16.gmra.mrb[0].mxu0 %v305
    %v1340 = vpop.f32.mrb[0].mxu0
    %v1341 = vadd.f32 %v1292, %v1340
    %v1342 = vpop.f32.mrb[0].mxu0
    %v1343 = vpop.f32.mrb[0].mxu0
    %v1344 = vadd.f32 %v1292, %v1343
    %v1345 = vpop.f32.mrb[0].mxu0
    %1346 = vdwg.mxu0
    %v1347 = vmax.f32 %v1341, 0.0
    %v1348 = vmax.f32 %v1344, 0.0
    %1349 = vset.pattern.permute.xlu0 5
    %1350 = vperm.xlu0 %1349, %v277
    %v1351 = vpop.permute.xlu0 %1350
    %1353 = vset.pattern.permute.xlu0 5
    %1354 = vperm.xlu0 %1353, %v278
    %v1355 = vpop.permute.xlu0 %1354
    %v1357 = vmul.f32 %v1347, %v1351
    %v1358 = vmul.f32 %v1348, %v1355
    %v1359 = vpack.c.bf16 %v1358, %v1357
    %v1360 = vld [vmem:[%s6 + $0x140] sm:$0xf]
    %v1361 = vld [vmem:[%s6 + $0x144] sm:$0xf]
    %v1362 = vld [vmem:[%s6 + $0x148] sm:$0xf]
    %v1363 = vld [vmem:[%s6 + $0x14c] sm:$0xf]
    %v1364 = vld [vmem:[%s6 + $0x150] sm:$0xf]
    %v1365 = vld [vmem:[%s6 + $0x154] sm:$0xf]
    %v1366 = vld [vmem:[%s6 + $0x158] sm:$0xf]
    %v1367 = vld [vmem:[%s6 + $0x15c] sm:$0xf]
    %v1368 = vld [vmem:[%s6 + $0x160] sm:$0xf]
    %v1369 = vld [vmem:[%s6 + $0x164] sm:$0xf]
    %v1370 = vld [vmem:[%s6 + $0x168] sm:$0xf]
    %v1371 = vld [vmem:[%s6 + $0x16c] sm:$0xf]
    %v1372 = vld [vmem:[%s6 + $0x170] sm:$0xf]
    %v1373 = vld [vmem:[%s6 + $0x174] sm:$0xf]
    %v1374 = vld [vmem:[%s6 + $0x178] sm:$0xf]
    %v1375 = vld [vmem:[%s6 + $0x17c] sm:$0xf]
    %v1392 = vunpack.c.l.b16 %v1360
    %v1393 = vunpack.c.l.b16 %v1361
    %v1394 = vunpack.c.l.b16 %v1362
    %v1395 = vunpack.c.l.b16 %v1363
    %v1396 = vunpack.c.l.b16 %v1364
    %v1397 = vunpack.c.l.b16 %v1365
    %v1398 = vunpack.c.l.b16 %v1366
    %v1399 = vunpack.c.l.b16 %v1367
    %v1400 = vunpack.c.l.b16 %v1368
    %v1401 = vunpack.c.l.b16 %v1369
    %v1402 = vunpack.c.l.b16 %v1370
    %v1403 = vunpack.c.l.b16 %v1371
    %v1404 = vunpack.c.l.b16 %v1372
    %v1405 = vunpack.c.l.b16 %v1373
    %v1406 = vunpack.c.l.b16 %v1374
    %v1407 = vunpack.c.l.b16 %v1375
    %v1408 = vpack.c.b16 %v1393, %v1392
    %v1409 = vpack.c.b16 %v1395, %v1394
    %v1410 = vpack.c.b16 %v1397, %v1396
    %v1411 = vpack.c.b16 %v1399, %v1398
    %v1412 = vpack.c.b16 %v1401, %v1400
    %v1413 = vpack.c.b16 %v1403, %v1402
    %v1414 = vpack.c.b16 %v1405, %v1404
    %v1415 = vpack.c.b16 %v1407, %v1406
    %1424 = vmatprep.subr.bf16.mxu0 0
    %1425 = vmatpush1.bf16.msra.mxu0 %v1408
    %1426 = vmatprep.subr.bf16.mxu0 0
    %1427 = vmatpush1.bf16.msra.mxu0 %v1409
    %1428 = vmatprep.subr.bf16.mxu0 0
    %1429 = vmatpush1.bf16.msra.mxu0 %v1410
    %1430 = vmatprep.subr.bf16.mxu0 0
    %1431 = vmatpush1.bf16.msra.mxu0 %v1411
    %1432 = vmatprep.subr.bf16.mxu0 0
    %1433 = vmatpush1.bf16.msra.mxu0 %v1412
    %1434 = vmatprep.subr.bf16.mxu0 0
    %1435 = vmatpush1.bf16.msra.mxu0 %v1413
    %1436 = vmatprep.subr.bf16.mxu0 0
    %1437 = vmatpush1.bf16.msra.mxu0 %v1414
    %1438 = vmatprep.subr.bf16.mxu0 0
    %1439 = vmatpush1.bf16.msra.mxu0 %v1415
    %1440 = vmatprep.subr.bf16.mxu0 0
    %1441 = vmatpush1.bf16.msra.mxu0 0
    %1442 = vmatprep.subr.bf16.mxu0 0
    %1443 = vmatpush1.bf16.msra.mxu0 0
    %1444 = vmatprep.subr.bf16.mxu0 0
    %1445 = vmatpush1.bf16.msra.mxu0 0
    %1446 = vmatprep.subr.bf16.mxu0 0
    %1447 = vmatpush1.bf16.msra.mxu0 0
    %1448 = vmatprep.subr.bf16.mxu0 0
    %1449 = vmatpush1.bf16.msra.mxu0 0
    %1450 = vmatprep.subr.bf16.mxu0 0
    %1451 = vmatpush1.bf16.msra.mxu0 0
    %1452 = vmatprep.subr.bf16.mxu0 0
    %1453 = vmatpush1.bf16.msra.mxu0 0
    %1454 = vmatprep.subr.bf16.mxu0 0
    %1455 = vmatpush1.bf16.msra.mxu0 0
    %1456 = vmatprep.mubr.bf16.mxu0 0
    %1457 = vmatmul.mubr.bf16.gmra.mrb[0].mxu0 %v1359
    %v1458 = vpop.f32.mrb[0].mxu0
    %v1459 = vadd.f32 0.0, %v1458
    %v1460 = vpop.f32.mrb[0].mxu0
    %v1461 = vpop.f32.mrb[0].mxu0
    %v1462 = vadd.f32 0.0, %v1461
    %v1463 = vpop.f32.mrb[0].mxu0
    %1464 = vdwg.mxu0
    %v1465 = vadd.f32 %v1281, %v1459
    %v1466 = vadd.f32 %v1282, %v1462
    %v1467 = vld [vmem:[%s4 + $0x18] sm:$0xf]
    %v1468 = vld [vmem:[%s4 + $0x38] sm:$0xf]
    %v1469 = vld [vmem:[%s4 + $0x58] sm:$0xf]
    %v1470 = vld [vmem:[%s4 + $0x78] sm:$0xf]
    %v1471 = vld [vmem:[%s5 + $0x6] sm:$0x1]
    %v1473 = vlaneseq
    %v1474 = vshrl.u32 %v1473, 7
    %v1475 = vsub.s32 0, %v1474
    %v1476 = vrot.slane %v1471, %v1475
    %v1482 = vunpack.c.l.b16 %v1467
    %v1483 = vunpack.c.l.b16 %v1468
    %v1484 = vunpack.c.l.b16 %v1469
    %v1485 = vunpack.c.l.b16 %v1470
    %v1486 = vpack.c.b16 %v1483, %v1482
    %v1487 = vpack.c.b16 %v1485, %v1484
    %1490 = vmatprep.subr.bf16.mxu0 0
    %1491 = vmatpush1.bf16.msra.mxu0 %v1486
    %1492 = vmatprep.subr.bf16.mxu0 0
    %1493 = vmatpush1.bf16.msra.mxu0 %v1487
    %1494 = vmatprep.subr.bf16.mxu0 0
    %1495 = vmatpush1.bf16.msra.mxu0 0
    %1496 = vmatprep.subr.bf16.mxu0 0
    %1497 = vmatpush1.bf16.msra.mxu0 0
    %1498 = vmatprep.subr.bf16.mxu0 0
    %1499 = vmatpush1.bf16.msra.mxu0 0
    %1500 = vmatprep.subr.bf16.mxu0 0
    %1501 = vmatpush1.bf16.msra.mxu0 0
    %1502 = vmatprep.subr.bf16.mxu0 0
    %1503 = vmatpush1.bf16.msra.mxu0 0
    %1504 = vmatprep.subr.bf16.mxu0 0
    %1505 = vmatpush1.bf16.msra.mxu0 0
    %1506 = vmatprep.subr.bf16.mxu0 0
    %1507 = vmatpush1.bf16.msra.mxu0 0
    %1508 = vmatprep.subr.bf16.mxu0 0
    %1509 = vmatpush1.bf16.msra.mxu0 0
    %1510 = vmatprep.subr.bf16.mxu0 0
    %1511 = vmatpush1.bf16.msra.mxu0 0
    %1512 = vmatprep.subr.bf16.mxu0 0
    %1513 = vmatpush1.bf16.msra.mxu0 0
    %1514 = vmatprep.subr.bf16.mxu0 0
    %1515 = vmatpush1.bf16.msra.mxu0 0
    %1516 = vmatprep.subr.bf16.mxu0 0
    %1517 = vmatpush1.bf16.msra.mxu0 0
    %1518 = vmatprep.subr.bf16.mxu0 0
    %1519 = vmatpush1.bf16.msra.mxu0 0
    %1520 = vmatprep.subr.bf16.mxu0 0
    %1521 = vmatpush1.bf16.msra.mxu0 0
    %1522 = vmatprep.mubr.bf16.mxu0 0
    %1523 = vmatmul.mubr.bf16.gmra.mrb[0].mxu0 %v305
    %v1524 = vpop.f32.mrb[0].mxu0
    %v1525 = vadd.f32 %v1476, %v1524
    %v1526 = vpop.f32.mrb[0].mxu0
    %v1527 = vpop.f32.mrb[0].mxu0
    %v1528 = vadd.f32 %v1476, %v1527
    %v1529 = vpop.f32.mrb[0].mxu0
    %1530 = vdwg.mxu0
    %v1531 = vmax.f32 %v1525, 0.0
    %v1532 = vmax.f32 %v1528, 0.0
    %1533 = vset.pattern.permute.xlu0 6
    %1534 = vperm.xlu0 %1533, %v277
    %v1535 = vpop.permute.xlu0 %1534
    %1537 = vset.pattern.permute.xlu0 6
    %1538 = vperm.xlu0 %1537, %v278
    %v1539 = vpop.permute.xlu0 %1538
    %v1541 = vmul.f32 %v1531, %v1535
    %v1542 = vmul.f32 %v1532, %v1539
    %v1543 = vpack.c.bf16 %v1542, %v1541
    %v1544 = vld [vmem:[%s6 + $0x180] sm:$0xf]
    %v1545 = vld [vmem:[%s6 + $0x184] sm:$0xf]
    %v1546 = vld [vmem:[%s6 + $0x188] sm:$0xf]
    %v1547 = vld [vmem:[%s6 + $0x18c] sm:$0xf]
    %v1548 = vld [vmem:[%s6 + $0x190] sm:$0xf]
    %v1549 = vld [vmem:[%s6 + $0x194] sm:$0xf]
    %v1550 = vld [vmem:[%s6 + $0x198] sm:$0xf]
    %v1551 = vld [vmem:[%s6 + $0x19c] sm:$0xf]
    %v1552 = vld [vmem:[%s6 + $0x1a0] sm:$0xf]
    %v1553 = vld [vmem:[%s6 + $0x1a4] sm:$0xf]
    %v1554 = vld [vmem:[%s6 + $0x1a8] sm:$0xf]
    %v1555 = vld [vmem:[%s6 + $0x1ac] sm:$0xf]
    %v1556 = vld [vmem:[%s6 + $0x1b0] sm:$0xf]
    %v1557 = vld [vmem:[%s6 + $0x1b4] sm:$0xf]
    %v1558 = vld [vmem:[%s6 + $0x1b8] sm:$0xf]
    %v1559 = vld [vmem:[%s6 + $0x1bc] sm:$0xf]
    %v1576 = vunpack.c.l.b16 %v1544
    %v1577 = vunpack.c.l.b16 %v1545
    %v1578 = vunpack.c.l.b16 %v1546
    %v1579 = vunpack.c.l.b16 %v1547
    %v1580 = vunpack.c.l.b16 %v1548
    %v1581 = vunpack.c.l.b16 %v1549
    %v1582 = vunpack.c.l.b16 %v1550
    %v1583 = vunpack.c.l.b16 %v1551
    %v1584 = vunpack.c.l.b16 %v1552
    %v1585 = vunpack.c.l.b16 %v1553
    %v1586 = vunpack.c.l.b16 %v1554
    %v1587 = vunpack.c.l.b16 %v1555
    %v1588 = vunpack.c.l.b16 %v1556
    %v1589 = vunpack.c.l.b16 %v1557
    %v1590 = vunpack.c.l.b16 %v1558
    %v1591 = vunpack.c.l.b16 %v1559
    %v1592 = vpack.c.b16 %v1577, %v1576
    %v1593 = vpack.c.b16 %v1579, %v1578
    %v1594 = vpack.c.b16 %v1581, %v1580
    %v1595 = vpack.c.b16 %v1583, %v1582
    %v1596 = vpack.c.b16 %v1585, %v1584
    %v1597 = vpack.c.b16 %v1587, %v1586
    %v1598 = vpack.c.b16 %v1589, %v1588
    %v1599 = vpack.c.b16 %v1591, %v1590
    %1608 = vmatprep.subr.bf16.mxu0 0
    %1609 = vmatpush1.bf16.msra.mxu0 %v1592
    %1610 = vmatprep.subr.bf16.mxu0 0
    %1611 = vmatpush1.bf16.msra.mxu0 %v1593
    %1612 = vmatprep.subr.bf16.mxu0 0
    %1613 = vmatpush1.bf16.msra.mxu0 %v1594
    %1614 = vmatprep.subr.bf16.mxu0 0
    %1615 = vmatpush1.bf16.msra.mxu0 %v1595
    %1616 = vmatprep.subr.bf16.mxu0 0
    %1617 = vmatpush1.bf16.msra.mxu0 %v1596
    %1618 = vmatprep.subr.bf16.mxu0 0
    %1619 = vmatpush1.bf16.msra.mxu0 %v1597
    %1620 = vmatprep.subr.bf16.mxu0 0
    %1621 = vmatpush1.bf16.msra.mxu0 %v1598
    %1622 = vmatprep.subr.bf16.mxu0 0
    %1623 = vmatpush1.bf16.msra.mxu0 %v1599
    %1624 = vmatprep.subr.bf16.mxu0 0
    %1625 = vmatpush1.bf16.msra.mxu0 0
    %1626 = vmatprep.subr.bf16.mxu0 0
    %1627 = vmatpush1.bf16.msra.mxu0 0
    %1628 = vmatprep.subr.bf16.mxu0 0
    %1629 = vmatpush1.bf16.msra.mxu0 0
    %1630 = vmatprep.subr.bf16.mxu0 0
    %1631 = vmatpush1.bf16.msra.mxu0 0
    %1632 = vmatprep.subr.bf16.mxu0 0
    %1633 = vmatpush1.bf16.msra.mxu0 0
    %1634 = vmatprep.subr.bf16.mxu0 0
    %1635 = vmatpush1.bf16.msra.mxu0 0
    %1636 = vmatprep.subr.bf16.mxu0 0
    %1637 = vmatpush1.bf16.msra.mxu0 0
    %1638 = vmatprep.subr.bf16.mxu0 0
    %1639 = vmatpush1.bf16.msra.mxu0 0
    %1640 = vmatprep.mubr.bf16.mxu0 0
    %1641 = vmatmul.mubr.bf16.gmra.mrb[0].mxu0 %v1543
    %v1642 = vpop.f32.mrb[0].mxu0
    %v1643 = vadd.f32 0.0, %v1642
    %v1644 = vpop.f32.mrb[0].mxu0
    %v1645 = vpop.f32.mrb[0].mxu0
    %v1646 = vadd.f32 0.0, %v1645
    %v1647 = vpop.f32.mrb[0].mxu0
    %1648 = vdwg.mxu0
    %v1649 = vadd.f32 %v1465, %v1643
    %v1650 = vadd.f32 %v1466, %v1646
    %v1651 = vld [vmem:[%s4 + $0x1c] sm:$0xf]
    %v1652 = vld [vmem:[%s4 + $0x3c] sm:$0xf]
    %v1653 = vld [vmem:[%s4 + $0x5c] sm:$0xf]
    %v1654 = vld [vmem:[%s4 + $0x7c] sm:$0xf]
    %v1655 = vld [vmem:[%s5 + $0x7] sm:$0x1]
    %v1657 = vlaneseq
    %v1658 = vshrl.u32 %v1657, 7
    %v1659 = vsub.s32 0, %v1658
    %v1660 = vrot.slane %v1655, %v1659
    %v1666 = vunpack.c.l.b16 %v1651
    %v1667 = vunpack.c.l.b16 %v1652
    %v1668 = vunpack.c.l.b16 %v1653
    %v1669 = vunpack.c.l.b16 %v1654
    %v1670 = vpack.c.b16 %v1667, %v1666
    %v1671 = vpack.c.b16 %v1669, %v1668
    %1674 = vmatprep.subr.bf16.mxu0 0
    %1675 = vmatpush1.bf16.msra.mxu0 %v1670
    %1676 = vmatprep.subr.bf16.mxu0 0
    %1677 = vmatpush1.bf16.msra.mxu0 %v1671
    %1678 = vmatprep.subr.bf16.mxu0 0
    %1679 = vmatpush1.bf16.msra.mxu0 0
    %1680 = vmatprep.subr.bf16.mxu0 0
    %1681 = vmatpush1.bf16.msra.mxu0 0
    %1682 = vmatprep.subr.bf16.mxu0 0
    %1683 = vmatpush1.bf16.msra.mxu0 0
    %1684 = vmatprep.subr.bf16.mxu0 0
    %1685 = vmatpush1.bf16.msra.mxu0 0
    %1686 = vmatprep.subr.bf16.mxu0 0
    %1687 = vmatpush1.bf16.msra.mxu0 0
    %1688 = vmatprep.subr.bf16.mxu0 0
    %1689 = vmatpush1.bf16.msra.mxu0 0
    %1690 = vmatprep.subr.bf16.mxu0 0
    %1691 = vmatpush1.bf16.msra.mxu0 0
    %1692 = vmatprep.subr.bf16.mxu0 0
    %1693 = vmatpush1.bf16.msra.mxu0 0
    %1694 = vmatprep.subr.bf16.mxu0 0
    %1695 = vmatpush1.bf16.msra.mxu0 0
    %1696 = vmatprep.subr.bf16.mxu0 0
    %1697 = vmatpush1.bf16.msra.mxu0 0
    %1698 = vmatprep.subr.bf16.mxu0 0
    %1699 = vmatpush1.bf16.msra.mxu0 0
    %1700 = vmatprep.subr.bf16.mxu0 0
    %1701 = vmatpush1.bf16.msra.mxu0 0
    %1702 = vmatprep.subr.bf16.mxu0 0
    %1703 = vmatpush1.bf16.msra.mxu0 0
    %1704 = vmatprep.subr.bf16.mxu0 0
    %1705 = vmatpush1.bf16.msra.mxu0 0
    %1706 = vmatprep.mubr.bf16.mxu0 0
    %1707 = vmatmul.mubr.bf16.gmra.mrb[0].mxu0 %v305
    %v1708 = vpop.f32.mrb[0].mxu0
    %v1709 = vadd.f32 %v1660, %v1708
    %v1710 = vpop.f32.mrb[0].mxu0
    %v1711 = vpop.f32.mrb[0].mxu0
    %v1712 = vadd.f32 %v1660, %v1711
    %v1713 = vpop.f32.mrb[0].mxu0
    %1714 = vdwg.mxu0
    %v1715 = vmax.f32 %v1709, 0.0
    %v1716 = vmax.f32 %v1712, 0.0
    %1717 = vset.pattern.permute.xlu0 7
    %1718 = vperm.xlu0 %1717, %v277
    %v1719 = vpop.permute.xlu0 %1718
    %1721 = vset.pattern.permute.xlu0 7
    %1722 = vperm.xlu0 %1721, %v278
    %v1723 = vpop.permute.xlu0 %1722
    %v1725 = vmul.f32 %v1715, %v1719
    %v1726 = vmul.f32 %v1716, %v1723
    %v1727 = vpack.c.bf16 %v1726, %v1725
    %v1728 = vld [vmem:[%s6 + $0x1c0] sm:$0xf]
    %v1729 = vld [vmem:[%s6 + $0x1c4] sm:$0xf]
    %v1730 = vld [vmem:[%s6 + $0x1c8] sm:$0xf]
    %v1731 = vld [vmem:[%s6 + $0x1cc] sm:$0xf]
    %v1732 = vld [vmem:[%s6 + $0x1d0] sm:$0xf]
    %v1733 = vld [vmem:[%s6 + $0x1d4] sm:$0xf]
    %v1734 = vld [vmem:[%s6 + $0x1d8] sm:$0xf]
    %v1735 = vld [vmem:[%s6 + $0x1dc] sm:$0xf]
    %v1736 = vld [vmem:[%s6 + $0x1e0] sm:$0xf]
    %v1737 = vld [vmem:[%s6 + $0x1e4] sm:$0xf]
    %v1738 = vld [vmem:[%s6 + $0x1e8] sm:$0xf]
    %v1739 = vld [vmem:[%s6 + $0x1ec] sm:$0xf]
    %v1740 = vld [vmem:[%s6 + $0x1f0] sm:$0xf]
    %v1741 = vld [vmem:[%s6 + $0x1f4] sm:$0xf]
    %v1742 = vld [vmem:[%s6 + $0x1f8] sm:$0xf]
    %v1743 = vld [vmem:[%s6 + $0x1fc] sm:$0xf]
    %v1760 = vunpack.c.l.b16 %v1728
    %v1761 = vunpack.c.l.b16 %v1729
    %v1762 = vunpack.c.l.b16 %v1730
    %v1763 = vunpack.c.l.b16 %v1731
    %v1764 = vunpack.c.l.b16 %v1732
    %v1765 = vunpack.c.l.b16 %v1733
    %v1766 = vunpack.c.l.b16 %v1734
    %v1767 = vunpack.c.l.b16 %v1735
    %v1768 = vunpack.c.l.b16 %v1736
    %v1769 = vunpack.c.l.b16 %v1737
    %v1770 = vunpack.c.l.b16 %v1738
    %v1771 = vunpack.c.l.b16 %v1739
    %v1772 = vunpack.c.l.b16 %v1740
    %v1773 = vunpack.c.l.b16 %v1741
    %v1774 = vunpack.c.l.b16 %v1742
    %v1775 = vunpack.c.l.b16 %v1743
    %v1776 = vpack.c.b16 %v1761, %v1760
    %v1777 = vpack.c.b16 %v1763, %v1762
    %v1778 = vpack.c.b16 %v1765, %v1764
    %v1779 = vpack.c.b16 %v1767, %v1766
    %v1780 = vpack.c.b16 %v1769, %v1768
    %v1781 = vpack.c.b16 %v1771, %v1770
    %v1782 = vpack.c.b16 %v1773, %v1772
    %v1783 = vpack.c.b16 %v1775, %v1774
    %1792 = vmatprep.subr.bf16.mxu0 0
    %1793 = vmatpush1.bf16.msra.mxu0 %v1776
    %1794 = vmatprep.subr.bf16.mxu0 0
    %1795 = vmatpush1.bf16.msra.mxu0 %v1777
    %1796 = vmatprep.subr.bf16.mxu0 0
    %1797 = vmatpush1.bf16.msra.mxu0 %v1778
    %1798 = vmatprep.subr.bf16.mxu0 0
    %1799 = vmatpush1.bf16.msra.mxu0 %v1779
    %1800 = vmatprep.subr.bf16.mxu0 0
    %1801 = vmatpush1.bf16.msra.mxu0 %v1780
    %1802 = vmatprep.subr.bf16.mxu0 0
    %1803 = vmatpush1.bf16.msra.mxu0 %v1781
    %1804 = vmatprep.subr.bf16.mxu0 0
    %1805 = vmatpush1.bf16.msra.mxu0 %v1782
    %1806 = vmatprep.subr.bf16.mxu0 0
    %1807 = vmatpush1.bf16.msra.mxu0 %v1783
    %1808 = vmatprep.subr.bf16.mxu0 0
    %1809 = vmatpush1.bf16.msra.mxu0 0
    %1810 = vmatprep.subr.bf16.mxu0 0
    %1811 = vmatpush1.bf16.msra.mxu0 0
    %1812 = vmatprep.subr.bf16.mxu0 0
    %1813 = vmatpush1.bf16.msra.mxu0 0
    %1814 = vmatprep.subr.bf16.mxu0 0
    %1815 = vmatpush1.bf16.msra.mxu0 0
    %1816 = vmatprep.subr.bf16.mxu0 0
    %1817 = vmatpush1.bf16.msra.mxu0 0
    %1818 = vmatprep.subr.bf16.mxu0 0
    %1819 = vmatpush1.bf16.msra.mxu0 0
    %1820 = vmatprep.subr.bf16.mxu0 0
    %1821 = vmatpush1.bf16.msra.mxu0 0
    %1822 = vmatprep.subr.bf16.mxu0 0
    %1823 = vmatpush1.bf16.msra.mxu0 0
    %1824 = vmatprep.mubr.bf16.mxu0 0
    %1825 = vmatmul.mubr.bf16.gmra.mrb[0].mxu0 %v1727
    %v1826 = vpop.f32.mrb[0].mxu0
    %v1827 = vadd.f32 0.0, %v1826
    %v1828 = vpop.f32.mrb[0].mxu0
    %v1829 = vpop.f32.mrb[0].mxu0
    %v1830 = vadd.f32 0.0, %v1829
    %v1831 = vpop.f32.mrb[0].mxu0
    %1832 = vdwg.mxu0
    %v1833 = vadd.f32 %v1649, %v1827
    %v1834 = vadd.f32 %v1650, %v1830
    %1835 = vst.msk [vmem:[#allocation2] sm:$0xff] %vm44, %v1833
    %1836 = vst.msk [vmem:[#allocation2 + $0x8] sm:$0xff] %vm44, %v1834
    // Predicated region
    $region34: #{tpu_custom_call.1} parent=1 // pred_check
      _
    $region35: #{tpu_custom_call.1} parent=1 // pred_check_branch
      %1838 = sbr.rel (0) target = $region37
    $region36: #{tpu_custom_call.1} parent=1 // pred_region
      %s1840 = ssub.s32 256, 256
      %1841 = vsyncadd [#allocation3], %s1840
      %s1842 = sshll.u32 [#allocation2], 4
      %s1843 = int_to_ptr.vmem [resolvable:$true] %s1842
      %1848 = dma.vmem_to_hbm [thread:$0]  %s1843, 256, %s8, [#allocation3], 128, 128, 8
    $region37: #{tpu_custom_call.1} parent=1 // pred_fallthru
      _
    // Predicated region
    $region38: #{tpu_custom_call.1} parent=1 // pred_check
      _
    $region39: #{tpu_custom_call.1} parent=1 // pred_check_branch
      %1850 = sbr.rel (0) target = $region41
    $region40: #{tpu_custom_call.1} parent=1 // pred_region
      %1851 = dma.done [#allocation3], 256
    $region41: #{tpu_custom_call.1} parent=1 // pred_fallthru
      _
    %1852 = vsyncpa [#allocation3], 1

// kernel: tpu_custom_call.1
$region0: #{tpu_custom_call.1}
  #allocation0 [shape = 'u32[]', space=smem, size = 0x4, offset = 0x4, fixed_abs, tag = 'smem constant byte address 0x4 - core index']
  #allocation1 [shape = 'u32[144,128]{1,0:T(1,128)}', space=vmem, size = 0x12000, scoped, tag = 'internal scratch']
  %s0 = inlined_call_operand.vmem [shape: f32[16,32], index: 0, kind: input, shape index: {}]
  %s1 = inlined_call_operand.vmem [shape: f32[16,8], index: 1, kind: input, shape index: {}]
  %s2 = inlined_call_operand.vmem [shape: f32[32,16], index: 2, kind: input, shape index: {}]
  %s3 = inlined_call_operand.vmem [shape: f32[1,16], index: 3, kind: input, shape index: {}]
  %s4 = inlined_call_operand.vmem [shape: bf16[32,1024], index: 4, kind: input, shape index: {}]
  %s5 = inlined_call_operand.vmem [shape: f32[1,1024], index: 5, kind: input, shape index: {}]
  %s6 = inlined_call_operand.vmem [shape: bf16[1024,32], index: 6, kind: input, shape index: {}]
  %s7 = inlined_call_operand.vmem [shape: f32[8,32], index: 7, kind: input, shape index: {}]
  %s8 = inlined_call_operand.hbm [shape: f32[16,32], index: 8, kind: output, shape index: {}]
  %s9 = sld [smem:[#allocation0]]
  $region42: #{tpu_custom_call.1} parent=0
    _
  %s11 = ssub.s32 1, %s9
  %s12 = scalar_select 0, %s11, %s9
  $region1: #{tpu_custom_call.1} parent=0
    #allocation2 [shape = 'u8[8192]{0}', space=vmem, size = 0x2000, scoped, tag = 'output window, operand 0, single buffered']
    #allocation3 [shape = 's32[1]{0}', space=sflag, size = 0x4, scoped, tag = 'scoped memory for tpu_custom_call.1']
    %13 = vsyncpa [#allocation3], 0
    // Predicated region
    $region2: #{tpu_custom_call.1} parent=1 // pred_check
      _
    $region3: #{tpu_custom_call.1} parent=1 // pred_check_branch
      %15 = sbr.rel (0) target = $region5
    $region4: #{tpu_custom_call.1} parent=1 // pred_region
      _
    $region5: #{tpu_custom_call.1} parent=1 // pred_fallthru
      _
    // Predicated region
    $region6: #{tpu_custom_call.1} parent=1 // pred_check
      _
    $region7: #{tpu_custom_call.1} parent=1 // pred_check_branch
      %17 = sbr.rel (0) target = $region9
    $region8: #{tpu_custom_call.1} parent=1 // pred_region
      _
    $region9: #{tpu_custom_call.1} parent=1 // pred_fallthru
      _
    // Predicated region
    $region10: #{tpu_custom_call.1} parent=1 // pred_check
      _
    $region11: #{tpu_custom_call.1} parent=1 // pred_check_branch
      %19 = sbr.rel (0) target = $region13
    $region12: #{tpu_custom_call.1} parent=1 // pred_region
      _
    $region13: #{tpu_custom_call.1} parent=1 // pred_fallthru
      _
    // Predicated region
    $region14: #{tpu_custom_call.1} parent=1 // pred_check
      _
    $region15: #{tpu_custom_call.1} parent=1 // pred_check_branch
      %21 = sbr.rel (0) target = $region17
    $region16: #{tpu_custom_call.1} parent=1 // pred_region
      _
    $region17: #{tpu_custom_call.1} parent=1 // pred_fallthru
      _
    // Predicated region
    $region18: #{tpu_custom_call.1} parent=1 // pred_check
      _
    $region19: #{tpu_custom_call.1} parent=1 // pred_check_branch
      %23 = sbr.rel (0) target = $region21
    $region20: #{tpu_custom_call.1} parent=1 // pred_region
      _
    $region21: #{tpu_custom_call.1} parent=1 // pred_fallthru
      _
    // Predicated region
    $region22: #{tpu_custom_call.1} parent=1 // pred_check
      _
    $region23: #{tpu_custom_call.1} parent=1 // pred_check_branch
      %25 = sbr.rel (0) target = $region25
    $region24: #{tpu_custom_call.1} parent=1 // pred_region
      _
    $region25: #{tpu_custom_call.1} parent=1 // pred_fallthru
      _
    // Predicated region
    $region26: #{tpu_custom_call.1} parent=1 // pred_check
      _
    $region27: #{tpu_custom_call.1} parent=1 // pred_check_branch
      %27 = sbr.rel (0) target = $region29
    $region28: #{tpu_custom_call.1} parent=1 // pred_region
      _
    $region29: #{tpu_custom_call.1} parent=1 // pred_fallthru
      _
    // Predicated region
    $region30: #{tpu_custom_call.1} parent=1 // pred_check
      _
    $region31: #{tpu_custom_call.1} parent=1 // pred_check_branch
      %29 = sbr.rel (0) target = $region33
    $region32: #{tpu_custom_call.1} parent=1 // pred_region
      _
    $region33: #{tpu_custom_call.1} parent=1 // pred_fallthru
      _
    %v31 = vld [vmem:[%s0] sm:$0xff]
    %v32 = vld [vmem:[%s0 + $0x8] sm:$0xff]
    %v33 = vld [vmem:[%s2] sm:$0xff]
    %v34 = vld [vmem:[%s2 + $0x8] sm:$0xff]
    %v35 = vld [vmem:[%s2 + $0x10] sm:$0xff]
    %v36 = vld [vmem:[%s2 + $0x18] sm:$0xff]
    %v37 = vld [vmem:[%s3] sm:$0x1]
    %v39 = vlaneseq
    %v40 = vshrl.u32 %v39, 7
    %v41 = vsub.s32 0, %v40
    %v42 = vrot.slane %v37, %v41
    %vm44 = vcmask 261120
    %v46 = vsel %vm44, %v31, 0
    %v49 = vsel %vm44, %v32, 0
    %51 = vmatprep.subr.mxu0 0.0
    %52 = vmatpush1.msra.mxu0 %v33
    %53 = vmatprep.subr.mxu0 0.0
    %54 = vmatpush1.msra.mxu0 %v34
    %55 = vmatprep.subr.mxu0 0.0
    %56 = vmatpush1.msra.mxu0 %v35
    %57 = vmatprep.subr.mxu0 0.0
    %58 = vmatpush1.msra.mxu0 %v36
    %59 = vmatprep.subr.mxu0 0.0
    %60 = vmatpush1.msra.mxu0 0.0
    %61 = vmatprep.subr.mxu0 0.0
    %62 = vmatpush1.msra.mxu0 0.0
    %63 = vmatprep.subr.mxu0 0.0
    %64 = vmatpush1.msra.mxu0 0.0
    %65 = vmatprep.subr.mxu0 0.0
    %66 = vmatpush1.msra.mxu0 0.0
    %67 = vmatprep.subr.mxu0 0.0
    %68 = vmatpush1.msra.mxu0 0.0
    %69 = vmatprep.subr.mxu0 0.0
    %70 = vmatpush1.msra.mxu0 0.0
    %71 = vmatprep.subr.mxu0 0.0
    %72 = vmatpush1.msra.mxu0 0.0
    %73 = vmatprep.subr.mxu0 0.0
    %74 = vmatpush1.msra.mxu0 0.0
    %75 = vmatprep.subr.mxu0 0.0
    %76 = vmatpush1.msra.mxu0 0.0
    %77 = vmatprep.subr.mxu0 0.0
    %78 = vmatpush1.msra.mxu0 0.0
    %79 = vmatprep.subr.mxu0 0.0
    %80 = vmatpush1.msra.mxu0 0.0
    %81 = vmatprep.subr.mxu0 0.0
    %82 = vmatpush1.msra.mxu0 0.0
    %83 = vmatprep.subr.mxu0 0.0
    %84 = vmatpush1.msra.mxu0 0.0
    %85 = vmatprep.subr.mxu0 0.0
    %86 = vmatpush1.msra.mxu0 0.0
    %87 = vmatprep.subr.mxu0 0.0
    %88 = vmatpush1.msra.mxu0 0.0
    %89 = vmatprep.subr.mxu0 0.0
    %90 = vmatpush1.msra.mxu0 0.0
    %91 = vmatprep.subr.mxu0 0.0
    %92 = vmatpush1.msra.mxu0 0.0
    %93 = vmatprep.subr.mxu0 0.0
    %94 = vmatpush1.msra.mxu0 0.0
    %95 = vmatprep.subr.mxu0 0.0
    %96 = vmatpush1.msra.mxu0 0.0
    %97 = vmatprep.subr.mxu0 0.0
    %98 = vmatpush1.msra.mxu0 0.0
    %99 = vmatprep.subr.mxu0 0.0
    %100 = vmatpush1.msra.mxu0 0.0
    %101 = vmatprep.subr.mxu0 0.0
    %102 = vmatpush1.msra.mxu0 0.0
    %103 = vmatprep.subr.mxu0 0.0
    %104 = vmatpush1.msra.mxu0 0.0
    %105 = vmatprep.subr.mxu0 0.0
    %106 = vmatpush1.msra.mxu0 0.0
    %107 = vmatprep.subr.mxu0 0.0
    %108 = vmatpush1.msra.mxu0 0.0
    %109 = vmatprep.subr.mxu0 0.0
    %110 = vmatpush1.msra.mxu0 0.0
    %111 = vmatprep.subr.mxu0 0.0
    %112 = vmatpush1.msra.mxu0 0.0
    %113 = vmatprep.subr.mxu0 0.0
    %114 = vmatpush1.msra.mxu0 0.0
    %115 = vmatprep.mubr.f32.mxu0 0.0
    %116 = vmatmul.mubr.f32.gmra.mrb[0].mxu0 %v46
    %v117 = vpop.f32.mrb[0].mxu0
    %v118 = vadd.f32 %v42, %v117
    %v119 = vpop.f32.mrb[0].mxu0
    %120 = vmatprep.mubr.f32.mxu0 0.0
    %121 = vmatmul.mubr.f32.gmra.mrb[0].mxu0 %v49
    %v122 = vpop.f32.mrb[0].mxu0
    %v123 = vadd.f32 %v42, %v122
    %v124 = vpop.f32.mrb[0].mxu0
    %125 = vdwg.mxu0
    %v126 = vld [vmem:[%s1] sm:$0xff]
    %v127 = vld [vmem:[%s1 + $0x8] sm:$0xff]
    %v128 = vand.u32 2147483647, %v118
    %v129 = vand.u32 2147483647, %v123
    %v130 = vsub.f32 0.0, %v128
    %v131 = vsub.f32 0.0, %v129
    %v132 = vmul.f32 %v130, 1.442695
    %v133 = vpow.pop %v132
    %v134 = vmul.f32 %v131, 1.442695
    %v135 = vpow.pop %v134
    %v136 = vadd.f32 %v133, 1.0
    %v137 = vlog2.pop %v136
    %v138 = vmul.f32 %v137, 0.6931472
    %v139 = vmul.f32 -0.5, %v133
    %v140 = vadd.f32 %v139, 1.0
    %v141 = vmul.f32 %v140, %v133
    %v142 = vand.u32 2147483647, %v133
    %vm143 = vcmp.lt.f32.partialorder %v142, 0.0004427343
    %v144 = vsel %vm143, %v141, %v138
    %v145 = vadd.f32 %v135, 1.0
    %v146 = vlog2.pop %v145
    %v147 = vmul.f32 %v146, 0.6931472
    %v148 = vmul.f32 -0.5, %v135
    %v149 = vadd.f32 %v148, 1.0
    %v150 = vmul.f32 %v149, %v135
    %v151 = vand.u32 2147483647, %v135
    %vm152 = vcmp.lt.f32.partialorder %v151, 0.0004427343
    %v153 = vsel %vm152, %v150, %v147
    %v154 = vmax.f32 %v118, 0.0
    %v155 = vmax.f32 %v123, 0.0
    %v156 = vadd.f32 %v144, %v154
    %v157 = vadd.f32 %v153, %v155
    %160 = vrot.lane.b32.xlu0 %v156, 120
    %v161 = vpop.permute.xlu0 %160
    %162 = vrot.lane.b32.xlu0 %v157, 120
    %v163 = vpop.permute.xlu0 %162
    %v166 = vmul.f32 %v126, %v161
    %v167 = vmul.f32 %v127, %v163
    %v168 = vadd.f32 %v118, %v166
    %v169 = vadd.f32 %v123, %v167
    %v170 = vlaneseq
    %v171 = vand.u32 %v170, 127
    %vm172 = vcmask 64512
    %v173 = vsel %vm172, %v168, -inf
    %174 = vmax.xlane.f32.xlu0 %v173
    %v175 = vpop.xlane.xlu0 %174
    %v176 = vsel %vm172, %v169, -inf
    %177 = vmax.xlane.f32.xlu0 %v176
    %v178 = vpop.xlane.xlu0 %177
    %vm179 = vcmp.eq.f32.partialorder %v168, %v175
    %vm180 = vcmp.eq.f32.partialorder %v169, %v178
    %v181 = vsel %vm179, %v171, 8
    %v182 = vsel %vm180, %v171, 8
    %v183 = vsel %vm172, %v181, 2147483647
    %v184 = vand.u32 %v183, 65535
    %v185 = vshra.s32 %v183, 16
    %v186 = vcvt.s32.f32 %v184
    %v187 = vcvt.s32.f32 %v185
    %188 = vmin.xlane.f32.xlu0 %v187
    %v189 = vpop.xlane.xlu0 %188
    %vm190 = vcmp.eq.f32.partialorder %v187, %v189
    %v191 = vsel %vm190, %v186, inf
    %192 = vmin.xlane.f32.xlu0 %v191
    %v193 = vpop.xlane.xlu0 %192
    %v194 = vcvt.f32.s32 %v193
    %v195 = vcvt.f32.s32 %v189
    %v196 = vshll.u32 %v195, 16
    %v197 = vadd.s32 %v196, %v194
    %v198 = vsel %vm172, %v182, 2147483647
    %v199 = vand.u32 %v198, 65535
    %v200 = vshra.s32 %v198, 16
    %v201 = vcvt.s32.f32 %v199
    %v202 = vcvt.s32.f32 %v200
    %203 = vmin.xlane.f32.xlu0 %v202
    %v204 = vpop.xlane.xlu0 %203
    %vm205 = vcmp.eq.f32.partialorder %v202, %v204
    %v206 = vsel %vm205, %v201, inf
    %207 = vmin.xlane.f32.xlu0 %v206
    %v208 = vpop.xlane.xlu0 %207
    %v209 = vcvt.f32.s32 %v208
    %v210 = vcvt.f32.s32 %v204
    %v211 = vshll.u32 %v210, 16
    %v212 = vadd.s32 %v211, %v209
    %vm213 = vcmp.eq.s32.totalorder %v171, %v197
    %vm214 = vcmp.eq.s32.totalorder %v171, %v212
    %v215 = vsel %vm213, -inf, %v168
    %v216 = vsel %vm214, -inf, %v169
    %v217 = vsel %vm172, %v215, -inf
    %218 = vmax.xlane.f32.xlu0 %v217
    %v219 = vpop.xlane.xlu0 %218
    %v220 = vsel %vm172, %v216, -inf
    %221 = vmax.xlane.f32.xlu0 %v220
    %v222 = vpop.xlane.xlu0 %221
    %vm223 = vcmp.eq.f32.partialorder %v215, %v219
    %vm224 = vcmp.eq.f32.partialorder %v216, %v222
    %v225 = vsel %vm223, %v171, 8
    %v226 = vsel %vm224, %v171, 8
    %v227 = vsel %vm172, %v225, 2147483647
    %v228 = vand.u32 %v227, 65535
    %v229 = vshra.s32 %v227, 16
    %v230 = vcvt.s32.f32 %v228
    %v231 = vcvt.s32.f32 %v229
    %232 = vmin.xlane.f32.xlu0 %v231
    %v233 = vpop.xlane.xlu0 %232
    %vm234 = vcmp.eq.f32.partialorder %v231, %v233
    %v235 = vsel %vm234, %v230, inf
    %236 = vmin.xlane.f32.xlu0 %v235
    %v237 = vpop.xlane.xlu0 %236
    %v238 = vcvt.f32.s32 %v237
    %v239 = vcvt.f32.s32 %v233
    %v240 = vshll.u32 %v239, 16
    %v241 = vadd.s32 %v240, %v238
    %v242 = vsel %vm172, %v226, 2147483647
    %v243 = vand.u32 %v242, 65535
    %v244 = vshra.s32 %v242, 16
    %v245 = vcvt.s32.f32 %v243
    %v246 = vcvt.s32.f32 %v244
    %247 = vmin.xlane.f32.xlu0 %v246
    %v248 = vpop.xlane.xlu0 %247
    %vm249 = vcmp.eq.f32.partialorder %v246, %v248
    %v250 = vsel %vm249, %v245, inf
    %251 = vmin.xlane.f32.xlu0 %v250
    %v252 = vpop.xlane.xlu0 %251
    %v253 = vcvt.f32.s32 %v252
    %v254 = vcvt.f32.s32 %v248
    %v255 = vshll.u32 %v254, 16
    %v256 = vadd.s32 %v255, %v253
    %vm257 = vcmp.eq.s32.totalorder %v171, %v241
    %vm258 = vcmp.eq.s32.totalorder %v171, %v256
    %vm259 = vmor %vm213, %vm257
    %vm260 = vmor %vm214, %vm258
    %v261 = vsub.f32 %v168, %v175
    %v262 = vsub.f32 %v169, %v178
    %v263 = vmul.f32 %v261, 1.442695
    %v264 = vpow.pop %v263
    %v265 = vmul.f32 %v262, 1.442695
    %v266 = vpow.pop %v265
    %v267 = vsel %vm259, %v264, 0.0
    %v268 = vsel %vm260, %v266, 0.0
    %v269 = vsel %vm172, %v267, 0.0
    %270 = vadd.xlane.f32.xlu0 %v269
    %v271 = vpop.xlane.xlu0 %270
    %v272 = vsel %vm172, %v268, 0.0
    %273 = vadd.xlane.f32.xlu0 %v272
    %v274 = vpop.xlane.xlu0 %273
    %v275 = vrcp.pop %v271
    %v276 = vrcp.pop %v274
    %v277 = vmul.f32 %v267, %v275
    %v278 = vmul.f32 %v268, %v276
    %v279 = vpack.c.bf16 %v32, %v31
    %v280 = vld [vmem:[%s7] sm:$0xff]
    %v281 = vld [vmem:[%s4] sm:$0xf]
    %v282 = vld [vmem:[%s4 + $0x20] sm:$0xf]
    %v283 = vld [vmem:[%s4 + $0x40] sm:$0xf]
    %v284 = vld [vmem:[%s4 + $0x60] sm:$0xf]
    %v285 = vld [vmem:[%s5] sm:$0x1]
    %v287 = vlaneseq
    %v288 = vshrl.u32 %v287, 7
    %v289 = vsub.s32 0, %v288
    %v290 = vrot.slane %v285, %v289
    %v296 = vunpack.c.l.b16 %v281
    %v297 = vunpack.c.l.b16 %v282
    %v298 = vunpack.c.l.b16 %v283
    %v299 = vunpack.c.l.b16 %v284
    %v300 = vpack.c.b16 %v297, %v296
    %v301 = vpack.c.b16 %v299, %v298
    %v305 = vsel %vm44, %v279, 0
    %307 = vmatprep.subr.bf16.mxu0 0
    %308 = vmatpush1.bf16.msra.mxu0 %v300
    %309 = vmatprep.subr.bf16.mxu0 0
    %310 = vmatpush1.bf16.msra.mxu0 %v301
    %311 = vmatprep.subr.bf16.mxu0 0
    %312 = vmatpush1.bf16.msra.mxu0 0
    %313 = vmatprep.subr.bf16.mxu0 0
    %314 = vmatpush1.bf16.msra.mxu0 0
    %315 = vmatprep.subr.bf16.mxu0 0
    %316 = vmatpush1.bf16.msra.mxu0 0
    %317 = vmatprep.subr.bf16.mxu0 0
    %318 = vmatpush1.bf16.msra.mxu0 0
    %319 = vmatprep.subr.bf16.mxu0 0
    %320 = vmatpush1.bf16.msra.mxu0 0
    %321 = vmatprep.subr.bf16.mxu0 0
    %322 = vmatpush1.bf16.msra.mxu0 0
    %323 = vmatprep.subr.bf16.mxu0 0
    %324 = vmatpush1.bf16.msra.mxu0 0
    %325 = vmatprep.subr.bf16.mxu0 0
    %326 = vmatpush1.bf16.msra.mxu0 0
    %327 = vmatprep.subr.bf16.mxu0 0
    %328 = vmatpush1.bf16.msra.mxu0 0
    %329 = vmatprep.subr.bf16.mxu0 0
    %330 = vmatpush1.bf16.msra.mxu0 0
    %331 = vmatprep.subr.bf16.mxu0 0
    %332 = vmatpush1.bf16.msra.mxu0 0
    %333 = vmatprep.subr.bf16.mxu0 0
    %334 = vmatpush1.bf16.msra.mxu0 0
    %335 = vmatprep.subr.bf16.mxu0 0
    %336 = vmatpush1.bf16.msra.mxu0 0
    %337 = vmatprep.subr.bf16.mxu0 0
    %338 = vmatpush1.bf16.msra.mxu0 0
    %339 = vmatprep.mubr.bf16.mxu0 0
    %340 = vmatmul.mubr.bf16.gmra.mrb[0].mxu0 %v305
    %v341 = vpop.f32.mrb[0].mxu0
    %v342 = vadd.f32 %v290, %v341
    %v343 = vpop.f32.mrb[0].mxu0
    %v344 = vpop.f32.mrb[0].mxu0
    %v345 = vadd.f32 %v290, %v344
    %v346 = vpop.f32.mrb[0].mxu0
    %347 = vdwg.mxu0
    %v348 = vmax.f32 %v342, 0.0
    %v349 = vmax.f32 %v345, 0.0
    %351 = vset.pattern.permute.xlu0 0
    %352 = vperm.xlu0 %351, %v277
    %v353 = vpop.permute.xlu0 %352
    %356 = vset.pattern.permute.xlu0 0
    %357 = vperm.xlu0 %356, %v278
    %v358 = vpop.permute.xlu0 %357
    %v360 = vmul.f32 %v348, %v353
    %v361 = vmul.f32 %v349, %v358
    %v362 = vpack.c.bf16 %v361, %v360
    %v363 = vld [vmem:[%s6] sm:$0xf]
    %v364 = vld [vmem:[%s6 + $0x4] sm:$0xf]
    %v365 = vld [vmem:[%s6 + $0x8] sm:$0xf]
    %v366 = vld [vmem:[%s6 + $0xc] sm:$0xf]
    %v367 = vld [vmem:[%s6 + $0x10] sm:$0xf]
    %v368 = vld [vmem:[%s6 + $0x14] sm:$0xf]
    %v369 = vld [vmem:[%s6 + $0x18] sm:$0xf]
    %v370 = vld [vmem:[%s6 + $0x1c] sm:$0xf]
    %v371 = vld [vmem:[%s6 + $0x20] sm:$0xf]
    %v372 = vld [vmem:[%s6 + $0x24] sm:$0xf]
    %v373 = vld [vmem:[%s6 + $0x28] sm:$0xf]
    %v374 = vld [vmem:[%s6 + $0x2c] sm:$0xf]
    %v375 = vld [vmem:[%s6 + $0x30] sm:$0xf]
    %v376 = vld [vmem:[%s6 + $0x34] sm:$0xf]
    %v377 = vld [vmem:[%s6 + $0x38] sm:$0xf]
    %v378 = vld [vmem:[%s6 + $0x3c] sm:$0xf]
    %v395 = vunpack.c.l.b16 %v363
    %v396 = vunpack.c.l.b16 %v364
    %v397 = vunpack.c.l.b16 %v365
    %v398 = vunpack.c.l.b16 %v366
    %v399 = vunpack.c.l.b16 %v367
    %v400 = vunpack.c.l.b16 %v368
    %v401 = vunpack.c.l.b16 %v369
    %v402 = vunpack.c.l.b16 %v370
    %v403 = vunpack.c.l.b16 %v371
    %v404 = vunpack.c.l.b16 %v372
    %v405 = vunpack.c.l.b16 %v373
    %v406 = vunpack.c.l.b16 %v374
    %v407 = vunpack.c.l.b16 %v375
    %v408 = vunpack.c.l.b16 %v376
    %v409 = vunpack.c.l.b16 %v377
    %v410 = vunpack.c.l.b16 %v378
    %v411 = vpack.c.b16 %v396, %v395
    %v412 = vpack.c.b16 %v398, %v397
    %v413 = vpack.c.b16 %v400, %v399
    %v414 = vpack.c.b16 %v402, %v401
    %v415 = vpack.c.b16 %v404, %v403
    %v416 = vpack.c.b16 %v406, %v405
    %v417 = vpack.c.b16 %v408, %v407
    %v418 = vpack.c.b16 %v410, %v409
    %427 = vmatprep.subr.bf16.mxu0 0
    %428 = vmatpush1.bf16.msra.mxu0 %v411
    %429 = vmatprep.subr.bf16.mxu0 0
    %430 = vmatpush1.bf16.msra.mxu0 %v412
    %431 = vmatprep.subr.bf16.mxu0 0
    %432 = vmatpush1.bf16.msra.mxu0 %v413
    %433 = vmatprep.subr.bf16.mxu0 0
    %434 = vmatpush1.bf16.msra.mxu0 %v414
    %435 = vmatprep.subr.bf16.mxu0 0
    %436 = vmatpush1.bf16.msra.mxu0 %v415
    %437 = vmatprep.subr.bf16.mxu0 0
    %438 = vmatpush1.bf16.msra.mxu0 %v416
    %439 = vmatprep.subr.bf16.mxu0 0
    %440 = vmatpush1.bf16.msra.mxu0 %v417
    %441 = vmatprep.subr.bf16.mxu0 0
    %442 = vmatpush1.bf16.msra.mxu0 %v418
    %443 = vmatprep.subr.bf16.mxu0 0
    %444 = vmatpush1.bf16.msra.mxu0 0
    %445 = vmatprep.subr.bf16.mxu0 0
    %446 = vmatpush1.bf16.msra.mxu0 0
    %447 = vmatprep.subr.bf16.mxu0 0
    %448 = vmatpush1.bf16.msra.mxu0 0
    %449 = vmatprep.subr.bf16.mxu0 0
    %450 = vmatpush1.bf16.msra.mxu0 0
    %451 = vmatprep.subr.bf16.mxu0 0
    %452 = vmatpush1.bf16.msra.mxu0 0
    %453 = vmatprep.subr.bf16.mxu0 0
    %454 = vmatpush1.bf16.msra.mxu0 0
    %455 = vmatprep.subr.bf16.mxu0 0
    %456 = vmatpush1.bf16.msra.mxu0 0
    %457 = vmatprep.subr.bf16.mxu0 0
    %458 = vmatpush1.bf16.msra.mxu0 0
    %459 = vmatprep.mubr.bf16.mxu0 0
    %460 = vmatmul.mubr.bf16.gmra.mrb[0].mxu0 %v362
    %v461 = vpop.f32.mrb[0].mxu0
    %v462 = vadd.f32 0.0, %v461
    %v463 = vpop.f32.mrb[0].mxu0
    %v464 = vpop.f32.mrb[0].mxu0
    %v465 = vadd.f32 0.0, %v464
    %v466 = vpop.f32.mrb[0].mxu0
    %467 = vdwg.mxu0
    %v468 = vsel %vm172, %v277, 0
    %v470 = vsel %vm172, %v278, 0
    %472 = vmatprep.subr.mxu0 0.0
    %473 = vmatpush1.msra.mxu0 %v280
    %474 = vmatprep.subr.mxu0 0.0
    %475 = vmatpush1.msra.mxu0 0.0
    %476 = vmatprep.subr.mxu0 0.0
    %477 = vmatpush1.msra.mxu0 0.0
    %478 = vmatprep.subr.mxu0 0.0
    %479 = vmatpush1.msra.mxu0 0.0
    %480 = vmatprep.subr.mxu0 0.0
    %481 = vmatpush1.msra.mxu0 0.0
    %482 = vmatprep.subr.mxu0 0.0
    %483 = vmatpush1.msra.mxu0 0.0
    %484 = vmatprep.subr.mxu0 0.0
    %485 = vmatpush1.msra.mxu0 0.0
    %486 = vmatprep.subr.mxu0 0.0
    %487 = vmatpush1.msra.mxu0 0.0
    %488 = vmatprep.subr.mxu0 0.0
    %489 = vmatpush1.msra.mxu0 0.0
    %490 = vmatprep.subr.mxu0 0.0
    %491 = vmatpush1.msra.mxu0 0.0
    %492 = vmatprep.subr.mxu0 0.0
    %493 = vmatpush1.msra.mxu0 0.0
    %494 = vmatprep.subr.mxu0 0.0
    %495 = vmatpush1.msra.mxu0 0.0
    %496 = vmatprep.subr.mxu0 0.0
    %497 = vmatpush1.msra.mxu0 0.0
    %498 = vmatprep.subr.mxu0 0.0
    %499 = vmatpush1.msra.mxu0 0.0
    %500 = vmatprep.subr.mxu0 0.0
    %501 = vmatpush1.msra.mxu0 0.0
    %502 = vmatprep.subr.mxu0 0.0
    %503 = vmatpush1.msra.mxu0 0.0
    %504 = vmatprep.subr.mxu0 0.0
    %505 = vmatpush1.msra.mxu0 0.0
    %506 = vmatprep.subr.mxu0 0.0
    %507 = vmatpush1.msra.mxu0 0.0
    %508 = vmatprep.subr.mxu0 0.0
    %509 = vmatpush1.msra.mxu0 0.0
    %510 = vmatprep.subr.mxu0 0.0
    %511 = vmatpush1.msra.mxu0 0.0
    %512 = vmatprep.subr.mxu0 0.0
    %513 = vmatpush1.msra.mxu0 0.0
    %514 = vmatprep.subr.mxu0 0.0
    %515 = vmatpush1.msra.mxu0 0.0
    %516 = vmatprep.subr.mxu0 0.0
    %517 = vmatpush1.msra.mxu0 0.0
    %518 = vmatprep.subr.mxu0 0.0
    %519 = vmatpush1.msra.mxu0 0.0
    %520 = vmatprep.subr.mxu0 0.0
    %521 = vmatpush1.msra.mxu0 0.0
    %522 = vmatprep.subr.mxu0 0.0
    %523 = vmatpush1.msra.mxu0 0.0
    %524 = vmatprep.subr.mxu0 0.0
    %525 = vmatpush1.msra.mxu0 0.0
    %526 = vmatprep.subr.mxu0 0.0
    %527 = vmatpush1.msra.mxu0 0.0
    %528 = vmatprep.subr.mxu0 0.0
    %529 = vmatpush1.msra.mxu0 0.0
    %530 = vmatprep.subr.mxu0 0.0
    %531 = vmatpush1.msra.mxu0 0.0
    %532 = vmatprep.subr.mxu0 0.0
    %533 = vmatpush1.msra.mxu0 0.0
    %534 = vmatprep.subr.mxu0 0.0
    %535 = vmatpush1.msra.mxu0 0.0
    %536 = vmatprep.mubr.f32.mxu0 0.0
    %537 = vmatmul.mubr.f32.gmra.mrb[0].mxu0 %v468
    %v538 = vpop.f32.mrb[0].mxu0
    %v539 = vadd.f32 %v462, %v538
    %v540 = vpop.f32.mrb[0].mxu0
    %541 = vmatprep.mubr.f32.mxu0 0.0
    %542 = vmatmul.mubr.f32.gmra.mrb[0].mxu0 %v470
    %v543 = vpop.f32.mrb[0].mxu0
    %v544 = vadd.f32 %v465, %v543
    %v545 = vpop.f32.mrb[0].mxu0
    %546 = vdwg.mxu0
    %v547 = vld [vmem:[%s4 + $0x4] sm:$0xf]
    %v548 = vld [vmem:[%s4 + $0x24] sm:$0xf]
    %v549 = vld [vmem:[%s4 + $0x44] sm:$0xf]
    %v550 = vld [vmem:[%s4 + $0x64] sm:$0xf]
    %v551 = vld [vmem:[%s5 + $0x1] sm:$0x1]
    %v553 = vlaneseq
    %v554 = vshrl.u32 %v553, 7
    %v555 = vsub.s32 0, %v554
    %v556 = vrot.slane %v551, %v555
    %v562 = vunpack.c.l.b16 %v547
    %v563 = vunpack.c.l.b16 %v548
    %v564 = vunpack.c.l.b16 %v549
    %v565 = vunpack.c.l.b16 %v550
    %v566 = vpack.c.b16 %v563, %v562
    %v567 = vpack.c.b16 %v565, %v564
    %570 = vmatprep.subr.bf16.mxu0 0
    %571 = vmatpush1.bf16.msra.mxu0 %v566
    %572 = vmatprep.subr.bf16.mxu0 0
    %573 = vmatpush1.bf16.msra.mxu0 %v567
    %574 = vmatprep.subr.bf16.mxu0 0
    %575 = vmatpush1.bf16.msra.mxu0 0
    %576 = vmatprep.subr.bf16.mxu0 0
    %577 = vmatpush1.bf16.msra.mxu0 0
    %578 = vmatprep.subr.bf16.mxu0 0
    %579 = vmatpush1.bf16.msra.mxu0 0
    %580 = vmatprep.subr.bf16.mxu0 0
    %581 = vmatpush1.bf16.msra.mxu0 0
    %582 = vmatprep.subr.bf16.mxu0 0
    %583 = vmatpush1.bf16.msra.mxu0 0
    %584 = vmatprep.subr.bf16.mxu0 0
    %585 = vmatpush1.bf16.msra.mxu0 0
    %586 = vmatprep.subr.bf16.mxu0 0
    %587 = vmatpush1.bf16.msra.mxu0 0
    %588 = vmatprep.subr.bf16.mxu0 0
    %589 = vmatpush1.bf16.msra.mxu0 0
    %590 = vmatprep.subr.bf16.mxu0 0
    %591 = vmatpush1.bf16.msra.mxu0 0
    %592 = vmatprep.subr.bf16.mxu0 0
    %593 = vmatpush1.bf16.msra.mxu0 0
    %594 = vmatprep.subr.bf16.mxu0 0
    %595 = vmatpush1.bf16.msra.mxu0 0
    %596 = vmatprep.subr.bf16.mxu0 0
    %597 = vmatpush1.bf16.msra.mxu0 0
    %598 = vmatprep.subr.bf16.mxu0 0
    %599 = vmatpush1.bf16.msra.mxu0 0
    %600 = vmatprep.subr.bf16.mxu0 0
    %601 = vmatpush1.bf16.msra.mxu0 0
    %602 = vmatprep.mubr.bf16.mxu0 0
    %603 = vmatmul.mubr.bf16.gmra.mrb[0].mxu0 %v305
    %v604 = vpop.f32.mrb[0].mxu0
    %v605 = vadd.f32 %v556, %v604
    %v606 = vpop.f32.mrb[0].mxu0
    %v607 = vpop.f32.mrb[0].mxu0
    %v608 = vadd.f32 %v556, %v607
    %v609 = vpop.f32.mrb[0].mxu0
    %610 = vdwg.mxu0
    %v611 = vmax.f32 %v605, 0.0
    %v612 = vmax.f32 %v608, 0.0
    %613 = vset.pattern.permute.xlu0 1
    %614 = vperm.xlu0 %613, %v277
    %v615 = vpop.permute.xlu0 %614
    %617 = vset.pattern.permute.xlu0 1
    %618 = vperm.xlu0 %617, %v278
    %v619 = vpop.permute.xlu0 %618
    %v621 = vmul.f32 %v611, %v615
    %v622 = vmul.f32 %v612, %v619
    %v623 = vpack.c.bf16 %v622, %v621
    %v624 = vld [vmem:[%s6 + $0x40] sm:$0xf]
    %v625 = vld [vmem:[%s6 + $0x44] sm:$0xf]
    %v626 = vld [vmem:[%s6 + $0x48] sm:$0xf]
    %v627 = vld [vmem:[%s6 + $0x4c] sm:$0xf]
    %v628 = vld [vmem:[%s6 + $0x50] sm:$0xf]
    %v629 = vld [vmem:[%s6 + $0x54] sm:$0xf]
    %v630 = vld [vmem:[%s6 + $0x58] sm:$0xf]
    %v631 = vld [vmem:[%s6 + $0x5c] sm:$0xf]
    %v632 = vld [vmem:[%s6 + $0x60] sm:$0xf]
    %v633 = vld [vmem:[%s6 + $0x64] sm:$0xf]
    %v634 = vld [vmem:[%s6 + $0x68] sm:$0xf]
    %v635 = vld [vmem:[%s6 + $0x6c] sm:$0xf]
    %v636 = vld [vmem:[%s6 + $0x70] sm:$0xf]
    %v637 = vld [vmem:[%s6 + $0x74] sm:$0xf]
    %v638 = vld [vmem:[%s6 + $0x78] sm:$0xf]
    %v639 = vld [vmem:[%s6 + $0x7c] sm:$0xf]
    %v656 = vunpack.c.l.b16 %v624
    %v657 = vunpack.c.l.b16 %v625
    %v658 = vunpack.c.l.b16 %v626
    %v659 = vunpack.c.l.b16 %v627
    %v660 = vunpack.c.l.b16 %v628
    %v661 = vunpack.c.l.b16 %v629
    %v662 = vunpack.c.l.b16 %v630
    %v663 = vunpack.c.l.b16 %v631
    %v664 = vunpack.c.l.b16 %v632
    %v665 = vunpack.c.l.b16 %v633
    %v666 = vunpack.c.l.b16 %v634
    %v667 = vunpack.c.l.b16 %v635
    %v668 = vunpack.c.l.b16 %v636
    %v669 = vunpack.c.l.b16 %v637
    %v670 = vunpack.c.l.b16 %v638
    %v671 = vunpack.c.l.b16 %v639
    %v672 = vpack.c.b16 %v657, %v656
    %v673 = vpack.c.b16 %v659, %v658
    %v674 = vpack.c.b16 %v661, %v660
    %v675 = vpack.c.b16 %v663, %v662
    %v676 = vpack.c.b16 %v665, %v664
    %v677 = vpack.c.b16 %v667, %v666
    %v678 = vpack.c.b16 %v669, %v668
    %v679 = vpack.c.b16 %v671, %v670
    %688 = vmatprep.subr.bf16.mxu0 0
    %689 = vmatpush1.bf16.msra.mxu0 %v672
    %690 = vmatprep.subr.bf16.mxu0 0
    %691 = vmatpush1.bf16.msra.mxu0 %v673
    %692 = vmatprep.subr.bf16.mxu0 0
    %693 = vmatpush1.bf16.msra.mxu0 %v674
    %694 = vmatprep.subr.bf16.mxu0 0
    %695 = vmatpush1.bf16.msra.mxu0 %v675
    %696 = vmatprep.subr.bf16.mxu0 0
    %697 = vmatpush1.bf16.msra.mxu0 %v676
    %698 = vmatprep.subr.bf16.mxu0 0
    %699 = vmatpush1.bf16.msra.mxu0 %v677
    %700 = vmatprep.subr.bf16.mxu0 0
    %701 = vmatpush1.bf16.msra.mxu0 %v678
    %702 = vmatprep.subr.bf16.mxu0 0
    %703 = vmatpush1.bf16.msra.mxu0 %v679
    %704 = vmatprep.subr.bf16.mxu0 0
    %705 = vmatpush1.bf16.msra.mxu0 0
    %706 = vmatprep.subr.bf16.mxu0 0
    %707 = vmatpush1.bf16.msra.mxu0 0
    %708 = vmatprep.subr.bf16.mxu0 0
    %709 = vmatpush1.bf16.msra.mxu0 0
    %710 = vmatprep.subr.bf16.mxu0 0
    %711 = vmatpush1.bf16.msra.mxu0 0
    %712 = vmatprep.subr.bf16.mxu0 0
    %713 = vmatpush1.bf16.msra.mxu0 0
    %714 = vmatprep.subr.bf16.mxu0 0
    %715 = vmatpush1.bf16.msra.mxu0 0
    %716 = vmatprep.subr.bf16.mxu0 0
    %717 = vmatpush1.bf16.msra.mxu0 0
    %718 = vmatprep.subr.bf16.mxu0 0
    %719 = vmatpush1.bf16.msra.mxu0 0
    %720 = vmatprep.mubr.bf16.mxu0 0
    %721 = vmatmul.mubr.bf16.gmra.mrb[0].mxu0 %v623
    %v722 = vpop.f32.mrb[0].mxu0
    %v723 = vadd.f32 0.0, %v722
    %v724 = vpop.f32.mrb[0].mxu0
    %v725 = vpop.f32.mrb[0].mxu0
    %v726 = vadd.f32 0.0, %v725
    %v727 = vpop.f32.mrb[0].mxu0
    %728 = vdwg.mxu0
    %v729 = vadd.f32 %v539, %v723
    %v730 = vadd.f32 %v544, %v726
    %v731 = vld [vmem:[%s4 + $0x8] sm:$0xf]
    %v732 = vld [vmem:[%s4 + $0x28] sm:$0xf]
    %v733 = vld [vmem:[%s4 + $0x48] sm:$0xf]
    %v734 = vld [vmem:[%s4 + $0x68] sm:$0xf]
    %v735 = vld [vmem:[%s5 + $0x2] sm:$0x1]
    %v737 = vlaneseq
    %v738 = vshrl.u32 %v737, 7
    %v739 = vsub.s32 0, %v738
    %v740 = vrot.slane %v735, %v739
    %v746 = vunpack.c.l.b16 %v731
    %v747 = vunpack.c.l.b16 %v732
    %v748 = vunpack.c.l.b16 %v733
    %v749 = vunpack.c.l.b16 %v734
    %v750 = vpack.c.b16 %v747, %v746
    %v751 = vpack.c.b16 %v749, %v748
    %754 = vmatprep.subr.bf16.mxu0 0
    %755 = vmatpush1.bf16.msra.mxu0 %v750
    %756 = vmatprep.subr.bf16.mxu0 0
    %757 = vmatpush1.bf16.msra.mxu0 %v751
    %758 = vmatprep.subr.bf16.mxu0 0
    %759 = vmatpush1.bf16.msra.mxu0 0
    %760 = vmatprep.subr.bf16.mxu0 0
    %761 = vmatpush1.bf16.msra.mxu0 0
    %762 = vmatprep.subr.bf16.mxu0 0
    %763 = vmatpush1.bf16.msra.mxu0 0
    %764 = vmatprep.subr.bf16.mxu0 0
    %765 = vmatpush1.bf16.msra.mxu0 0
    %766 = vmatprep.subr.bf16.mxu0 0
    %767 = vmatpush1.bf16.msra.mxu0 0
    %768 = vmatprep.subr.bf16.mxu0 0
    %769 = vmatpush1.bf16.msra.mxu0 0
    %770 = vmatprep.subr.bf16.mxu0 0
    %771 = vmatpush1.bf16.msra.mxu0 0
    %772 = vmatprep.subr.bf16.mxu0 0
    %773 = vmatpush1.bf16.msra.mxu0 0
    %774 = vmatprep.subr.bf16.mxu0 0
    %775 = vmatpush1.bf16.msra.mxu0 0
    %776 = vmatprep.subr.bf16.mxu0 0
    %777 = vmatpush1.bf16.msra.mxu0 0
    %778 = vmatprep.subr.bf16.mxu0 0
    %779 = vmatpush1.bf16.msra.mxu0 0
    %780 = vmatprep.subr.bf16.mxu0 0
    %781 = vmatpush1.bf16.msra.mxu0 0
    %782 = vmatprep.subr.bf16.mxu0 0
    %783 = vmatpush1.bf16.msra.mxu0 0
    %784 = vmatprep.subr.bf16.mxu0 0
    %785 = vmatpush1.bf16.msra.mxu0 0
    %786 = vmatprep.mubr.bf16.mxu0 0
    %787 = vmatmul.mubr.bf16.gmra.mrb[0].mxu0 %v305
    %v788 = vpop.f32.mrb[0].mxu0
    %v789 = vadd.f32 %v740, %v788
    %v790 = vpop.f32.mrb[0].mxu0
    %v791 = vpop.f32.mrb[0].mxu0
    %v792 = vadd.f32 %v740, %v791
    %v793 = vpop.f32.mrb[0].mxu0
    %794 = vdwg.mxu0
    %v795 = vmax.f32 %v789, 0.0
    %v796 = vmax.f32 %v792, 0.0
    %797 = vset.pattern.permute.xlu0 2
    %798 = vperm.xlu0 %797, %v277
    %v799 = vpop.permute.xlu0 %798
    %801 = vset.pattern.permute.xlu0 2
    %802 = vperm.xlu0 %801, %v278
    %v803 = vpop.permute.xlu0 %802
    %v805 = vmul.f32 %v795, %v799
    %v806 = vmul.f32 %v796, %v803
    %v807 = vpack.c.bf16 %v806, %v805
    %v808 = vld [vmem:[%s6 + $0x80] sm:$0xf]
    %v809 = vld [vmem:[%s6 + $0x84] sm:$0xf]
    %v810 = vld [vmem:[%s6 + $0x88] sm:$0xf]
    %v811 = vld [vmem:[%s6 + $0x8c] sm:$0xf]
    %v812 = vld [vmem:[%s6 + $0x90] sm:$0xf]
    %v813 = vld [vmem:[%s6 + $0x94] sm:$0xf]
    %v814 = vld [vmem:[%s6 + $0x98] sm:$0xf]
    %v815 = vld [vmem:[%s6 + $0x9c] sm:$0xf]
    %v816 = vld [vmem:[%s6 + $0xa0] sm:$0xf]
    %v817 = vld [vmem:[%s6 + $0xa4] sm:$0xf]
    %v818 = vld [vmem:[%s6 + $0xa8] sm:$0xf]
    %v819 = vld [vmem:[%s6 + $0xac] sm:$0xf]
    %v820 = vld [vmem:[%s6 + $0xb0] sm:$0xf]
    %v821 = vld [vmem:[%s6 + $0xb4] sm:$0xf]
    %v822 = vld [vmem:[%s6 + $0xb8] sm:$0xf]
    %v823 = vld [vmem:[%s6 + $0xbc] sm:$0xf]
    %v840 = vunpack.c.l.b16 %v808
    %v841 = vunpack.c.l.b16 %v809
    %v842 = vunpack.c.l.b16 %v810
    %v843 = vunpack.c.l.b16 %v811
    %v844 = vunpack.c.l.b16 %v812
    %v845 = vunpack.c.l.b16 %v813
    %v846 = vunpack.c.l.b16 %v814
    %v847 = vunpack.c.l.b16 %v815
    %v848 = vunpack.c.l.b16 %v816
    %v849 = vunpack.c.l.b16 %v817
    %v850 = vunpack.c.l.b16 %v818
    %v851 = vunpack.c.l.b16 %v819
    %v852 = vunpack.c.l.b16 %v820
    %v853 = vunpack.c.l.b16 %v821
    %v854 = vunpack.c.l.b16 %v822
    %v855 = vunpack.c.l.b16 %v823
    %v856 = vpack.c.b16 %v841, %v840
    %v857 = vpack.c.b16 %v843, %v842
    %v858 = vpack.c.b16 %v845, %v844
    %v859 = vpack.c.b16 %v847, %v846
    %v860 = vpack.c.b16 %v849, %v848
    %v861 = vpack.c.b16 %v851, %v850
    %v862 = vpack.c.b16 %v853, %v852
    %v863 = vpack.c.b16 %v855, %v854
    %872 = vmatprep.subr.bf16.mxu0 0
    %873 = vmatpush1.bf16.msra.mxu0 %v856
    %874 = vmatprep.subr.bf16.mxu0 0
    %875 = vmatpush1.bf16.msra.mxu0 %v857
    %876 = vmatprep.subr.bf16.mxu0 0
    %877 = vmatpush1.bf16.msra.mxu0 %v858
    %878 = vmatprep.subr.bf16.mxu0 0
    %879 = vmatpush1.bf16.msra.mxu0 %v859
    %880 = vmatprep.subr.bf16.mxu0 0
    %881 = vmatpush1.bf16.msra.mxu0 %v860
    %882 = vmatprep.subr.bf16.mxu0 0
    %883 = vmatpush1.bf16.msra.mxu0 %v861
    %884 = vmatprep.subr.bf16.mxu0 0
    %885 = vmatpush1.bf16.msra.mxu0 %v862
    %886 = vmatprep.subr.bf16.mxu0 0
    %887 = vmatpush1.bf16.msra.mxu0 %v863
    %888 = vmatprep.subr.bf16.mxu0 0
    %889 = vmatpush1.bf16.msra.mxu0 0
    %890 = vmatprep.subr.bf16.mxu0 0
    %891 = vmatpush1.bf16.msra.mxu0 0
    %892 = vmatprep.subr.bf16.mxu0 0
    %893 = vmatpush1.bf16.msra.mxu0 0
    %894 = vmatprep.subr.bf16.mxu0 0
    %895 = vmatpush1.bf16.msra.mxu0 0
    %896 = vmatprep.subr.bf16.mxu0 0
    %897 = vmatpush1.bf16.msra.mxu0 0
    %898 = vmatprep.subr.bf16.mxu0 0
    %899 = vmatpush1.bf16.msra.mxu0 0
    %900 = vmatprep.subr.bf16.mxu0 0
    %901 = vmatpush1.bf16.msra.mxu0 0
    %902 = vmatprep.subr.bf16.mxu0 0
    %903 = vmatpush1.bf16.msra.mxu0 0
    %904 = vmatprep.mubr.bf16.mxu0 0
    %905 = vmatmul.mubr.bf16.gmra.mrb[0].mxu0 %v807
    %v906 = vpop.f32.mrb[0].mxu0
    %v907 = vadd.f32 0.0, %v906
    %v908 = vpop.f32.mrb[0].mxu0
    %v909 = vpop.f32.mrb[0].mxu0
    %v910 = vadd.f32 0.0, %v909
    %v911 = vpop.f32.mrb[0].mxu0
    %912 = vdwg.mxu0
    %v913 = vadd.f32 %v729, %v907
    %v914 = vadd.f32 %v730, %v910
    %v915 = vld [vmem:[%s4 + $0xc] sm:$0xf]
    %v916 = vld [vmem:[%s4 + $0x2c] sm:$0xf]
    %v917 = vld [vmem:[%s4 + $0x4c] sm:$0xf]
    %v918 = vld [vmem:[%s4 + $0x6c] sm:$0xf]
    %v919 = vld [vmem:[%s5 + $0x3] sm:$0x1]
    %v921 = vlaneseq
    %v922 = vshrl.u32 %v921, 7
    %v923 = vsub.s32 0, %v922
    %v924 = vrot.slane %v919, %v923
    %v930 = vunpack.c.l.b16 %v915
    %v931 = vunpack.c.l.b16 %v916
    %v932 = vunpack.c.l.b16 %v917
    %v933 = vunpack.c.l.b16 %v918
    %v934 = vpack.c.b16 %v931, %v930
    %v935 = vpack.c.b16 %v933, %v932
    %938 = vmatprep.subr.bf16.mxu0 0
    %939 = vmatpush1.bf16.msra.mxu0 %v934
    %940 = vmatprep.subr.bf16.mxu0 0
    %941 = vmatpush1.bf16.msra.mxu0 %v935
    %942 = vmatprep.subr.bf16.mxu0 0
    %943 = vmatpush1.bf16.msra.mxu0 0
    %944 = vmatprep.subr.bf16.mxu0 0
    %945 = vmatpush1.bf16.msra.mxu0 0
    %946 = vmatprep.subr.bf16.mxu0 0
    %947 = vmatpush1.bf16.msra.mxu0 0
    %948 = vmatprep.subr.bf16.mxu0 0
    %949 = vmatpush1.bf16.msra.mxu0 0
    %950 = vmatprep.subr.bf16.mxu0 0
    %951 = vmatpush1.bf16.msra.mxu0 0
    %952 = vmatprep.subr.bf16.mxu0 0
    %953 = vmatpush1.bf16.msra.mxu0 0
    %954 = vmatprep.subr.bf16.mxu0 0
    %955 = vmatpush1.bf16.msra.mxu0 0
    %956 = vmatprep.subr.bf16.mxu0 0
    %957 = vmatpush1.bf16.msra.mxu0 0
    %958 = vmatprep.subr.bf16.mxu0 0
    %959 = vmatpush1.bf16.msra.mxu0 0
    %960 = vmatprep.subr.bf16.mxu0 0
    %961 = vmatpush1.bf16.msra.mxu0 0
    %962 = vmatprep.subr.bf16.mxu0 0
    %963 = vmatpush1.bf16.msra.mxu0 0
    %964 = vmatprep.subr.bf16.mxu0 0
    %965 = vmatpush1.bf16.msra.mxu0 0
    %966 = vmatprep.subr.bf16.mxu0 0
    %967 = vmatpush1.bf16.msra.mxu0 0
    %968 = vmatprep.subr.bf16.mxu0 0
    %969 = vmatpush1.bf16.msra.mxu0 0
    %970 = vmatprep.mubr.bf16.mxu0 0
    %971 = vmatmul.mubr.bf16.gmra.mrb[0].mxu0 %v305
    %v972 = vpop.f32.mrb[0].mxu0
    %v973 = vadd.f32 %v924, %v972
    %v974 = vpop.f32.mrb[0].mxu0
    %v975 = vpop.f32.mrb[0].mxu0
    %v976 = vadd.f32 %v924, %v975
    %v977 = vpop.f32.mrb[0].mxu0
    %978 = vdwg.mxu0
    %v979 = vmax.f32 %v973, 0.0
    %v980 = vmax.f32 %v976, 0.0
    %981 = vset.pattern.permute.xlu0 3
    %982 = vperm.xlu0 %981, %v277
    %v983 = vpop.permute.xlu0 %982
    %985 = vset.pattern.permute.xlu0 3
    %986 = vperm.xlu0 %985, %v278
    %v987 = vpop.permute.xlu0 %986
    %v989 = vmul.f32 %v979, %v983
    %v990 = vmul.f32 %v980, %v987
    %v991 = vpack.c.bf16 %v990, %v989
    %v992 = vld [vmem:[%s6 + $0xc0] sm:$0xf]
    %v993 = vld [vmem:[%s6 + $0xc4] sm:$0xf]
    %v994 = vld [vmem:[%s6 + $0xc8] sm:$0xf]
    %v995 = vld [vmem:[%s6 + $0xcc] sm:$0xf]
    %v996 = vld [vmem:[%s6 + $0xd0] sm:$0xf]
    %v997 = vld [vmem:[%s6 + $0xd4] sm:$0xf]
    %v998 = vld [vmem:[%s6 + $0xd8] sm:$0xf]
    %v999 = vld [vmem:[%s6 + $0xdc] sm:$0xf]
    %v1000 = vld [vmem:[%s6 + $0xe0] sm:$0xf]
    %v1001 = vld [vmem:[%s6 + $0xe4] sm:$0xf]
    %v1002 = vld [vmem:[%s6 + $0xe8] sm:$0xf]
    %v1003 = vld [vmem:[%s6 + $0xec] sm:$0xf]
    %v1004 = vld [vmem:[%s6 + $0xf0] sm:$0xf]
    %v1005 = vld [vmem:[%s6 + $0xf4] sm:$0xf]
    %v1006 = vld [vmem:[%s6 + $0xf8] sm:$0xf]
    %v1007 = vld [vmem:[%s6 + $0xfc] sm:$0xf]
    %v1024 = vunpack.c.l.b16 %v992
    %v1025 = vunpack.c.l.b16 %v993
    %v1026 = vunpack.c.l.b16 %v994
    %v1027 = vunpack.c.l.b16 %v995
    %v1028 = vunpack.c.l.b16 %v996
    %v1029 = vunpack.c.l.b16 %v997
    %v1030 = vunpack.c.l.b16 %v998
    %v1031 = vunpack.c.l.b16 %v999
    %v1032 = vunpack.c.l.b16 %v1000
    %v1033 = vunpack.c.l.b16 %v1001
    %v1034 = vunpack.c.l.b16 %v1002
    %v1035 = vunpack.c.l.b16 %v1003
    %v1036 = vunpack.c.l.b16 %v1004
    %v1037 = vunpack.c.l.b16 %v1005
    %v1038 = vunpack.c.l.b16 %v1006
    %v1039 = vunpack.c.l.b16 %v1007
    %v1040 = vpack.c.b16 %v1025, %v1024
    %v1041 = vpack.c.b16 %v1027, %v1026
    %v1042 = vpack.c.b16 %v1029, %v1028
    %v1043 = vpack.c.b16 %v1031, %v1030
    %v1044 = vpack.c.b16 %v1033, %v1032
    %v1045 = vpack.c.b16 %v1035, %v1034
    %v1046 = vpack.c.b16 %v1037, %v1036
    %v1047 = vpack.c.b16 %v1039, %v1038
    %1056 = vmatprep.subr.bf16.mxu0 0
    %1057 = vmatpush1.bf16.msra.mxu0 %v1040
    %1058 = vmatprep.subr.bf16.mxu0 0
    %1059 = vmatpush1.bf16.msra.mxu0 %v1041
    %1060 = vmatprep.subr.bf16.mxu0 0
    %1061 = vmatpush1.bf16.msra.mxu0 %v1042
    %1062 = vmatprep.subr.bf16.mxu0 0
    %1063 = vmatpush1.bf16.msra.mxu0 %v1043
    %1064 = vmatprep.subr.bf16.mxu0 0
    %1065 = vmatpush1.bf16.msra.mxu0 %v1044
    %1066 = vmatprep.subr.bf16.mxu0 0
    %1067 = vmatpush1.bf16.msra.mxu0 %v1045
    %1068 = vmatprep.subr.bf16.mxu0 0
    %1069 = vmatpush1.bf16.msra.mxu0 %v1046
    %1070 = vmatprep.subr.bf16.mxu0 0
    %1071 = vmatpush1.bf16.msra.mxu0 %v1047
    %1072 = vmatprep.subr.bf16.mxu0 0
    %1073 = vmatpush1.bf16.msra.mxu0 0
    %1074 = vmatprep.subr.bf16.mxu0 0
    %1075 = vmatpush1.bf16.msra.mxu0 0
    %1076 = vmatprep.subr.bf16.mxu0 0
    %1077 = vmatpush1.bf16.msra.mxu0 0
    %1078 = vmatprep.subr.bf16.mxu0 0
    %1079 = vmatpush1.bf16.msra.mxu0 0
    %1080 = vmatprep.subr.bf16.mxu0 0
    %1081 = vmatpush1.bf16.msra.mxu0 0
    %1082 = vmatprep.subr.bf16.mxu0 0
    %1083 = vmatpush1.bf16.msra.mxu0 0
    %1084 = vmatprep.subr.bf16.mxu0 0
    %1085 = vmatpush1.bf16.msra.mxu0 0
    %1086 = vmatprep.subr.bf16.mxu0 0
    %1087 = vmatpush1.bf16.msra.mxu0 0
    %1088 = vmatprep.mubr.bf16.mxu0 0
    %1089 = vmatmul.mubr.bf16.gmra.mrb[0].mxu0 %v991
    %v1090 = vpop.f32.mrb[0].mxu0
    %v1091 = vadd.f32 0.0, %v1090
    %v1092 = vpop.f32.mrb[0].mxu0
    %v1093 = vpop.f32.mrb[0].mxu0
    %v1094 = vadd.f32 0.0, %v1093
    %v1095 = vpop.f32.mrb[0].mxu0
    %1096 = vdwg.mxu0
    %v1097 = vadd.f32 %v913, %v1091
    %v1098 = vadd.f32 %v914, %v1094
    %v1099 = vld [vmem:[%s4 + $0x10] sm:$0xf]
    %v1100 = vld [vmem:[%s4 + $0x30] sm:$0xf]
    %v1101 = vld [vmem:[%s4 + $0x50] sm:$0xf]
    %v1102 = vld [vmem:[%s4 + $0x70] sm:$0xf]
    %v1103 = vld [vmem:[%s5 + $0x4] sm:$0x1]
    %v1105 = vlaneseq
    %v1106 = vshrl.u32 %v1105, 7
    %v1107 = vsub.s32 0, %v1106
    %v1108 = vrot.slane %v1103, %v1107
    %v1114 = vunpack.c.l.b16 %v1099
    %v1115 = vunpack.c.l.b16 %v1100
    %v1116 = vunpack.c.l.b16 %v1101
    %v1117 = vunpack.c.l.b16 %v1102
    %v1118 = vpack.c.b16 %v1115, %v1114
    %v1119 = vpack.c.b16 %v1117, %v1116
    %1122 = vmatprep.subr.bf16.mxu0 0
    %1123 = vmatpush1.bf16.msra.mxu0 %v1118
    %1124 = vmatprep.subr.bf16.mxu0 0
    %1125 = vmatpush1.bf16.msra.mxu0 %v1119
    %1126 = vmatprep.subr.bf16.mxu0 0
    %1127 = vmatpush1.bf16.msra.mxu0 0
    %1128 = vmatprep.subr.bf16.mxu0 0
    %1129 = vmatpush1.bf16.msra.mxu0 0
    %1130 = vmatprep.subr.bf16.mxu0 0
    %1131 = vmatpush1.bf16.msra.mxu0 0
    %1132 = vmatprep.subr.bf16.mxu0 0
    %1133 = vmatpush1.bf16.msra.mxu0 0
    %1134 = vmatprep.subr.bf16.mxu0 0
    %1135 = vmatpush1.bf16.msra.mxu0 0
    %1136 = vmatprep.subr.bf16.mxu0 0
    %1137 = vmatpush1.bf16.msra.mxu0 0
    %1138 = vmatprep.subr.bf16.mxu0 0
    %1139 = vmatpush1.bf16.msra.mxu0 0
    %1140 = vmatprep.subr.bf16.mxu0 0
    %1141 = vmatpush1.bf16.msra.mxu0 0
    %1142 = vmatprep.subr.bf16.mxu0 0
    %1143 = vmatpush1.bf16.msra.mxu0 0
    %1144 = vmatprep.subr.bf16.mxu0 0
    %1145 = vmatpush1.bf16.msra.mxu0 0
    %1146 = vmatprep.subr.bf16.mxu0 0
    %1147 = vmatpush1.bf16.msra.mxu0 0
    %1148 = vmatprep.subr.bf16.mxu0 0
    %1149 = vmatpush1.bf16.msra.mxu0 0
    %1150 = vmatprep.subr.bf16.mxu0 0
    %1151 = vmatpush1.bf16.msra.mxu0 0
    %1152 = vmatprep.subr.bf16.mxu0 0
    %1153 = vmatpush1.bf16.msra.mxu0 0
    %1154 = vmatprep.mubr.bf16.mxu0 0
    %1155 = vmatmul.mubr.bf16.gmra.mrb[0].mxu0 %v305
    %v1156 = vpop.f32.mrb[0].mxu0
    %v1157 = vadd.f32 %v1108, %v1156
    %v1158 = vpop.f32.mrb[0].mxu0
    %v1159 = vpop.f32.mrb[0].mxu0
    %v1160 = vadd.f32 %v1108, %v1159
    %v1161 = vpop.f32.mrb[0].mxu0
    %1162 = vdwg.mxu0
    %v1163 = vmax.f32 %v1157, 0.0
    %v1164 = vmax.f32 %v1160, 0.0
    %1165 = vset.pattern.permute.xlu0 4
    %1166 = vperm.xlu0 %1165, %v277
    %v1167 = vpop.permute.xlu0 %1166
    %1169 = vset.pattern.permute.xlu0 4
    %1170 = vperm.xlu0 %1169, %v278
    %v1171 = vpop.permute.xlu0 %1170
    %v1173 = vmul.f32 %v1163, %v1167
    %v1174 = vmul.f32 %v1164, %v1171
    %v1175 = vpack.c.bf16 %v1174, %v1173
    %v1176 = vld [vmem:[%s6 + $0x100] sm:$0xf]
    %v1177 = vld [vmem:[%s6 + $0x104] sm:$0xf]
    %v1178 = vld [vmem:[%s6 + $0x108] sm:$0xf]
    %v1179 = vld [vmem:[%s6 + $0x10c] sm:$0xf]
    %v1180 = vld [vmem:[%s6 + $0x110] sm:$0xf]
    %v1181 = vld [vmem:[%s6 + $0x114] sm:$0xf]
    %v1182 = vld [vmem:[%s6 + $0x118] sm:$0xf]
    %v1183 = vld [vmem:[%s6 + $0x11c] sm:$0xf]
    %v1184 = vld [vmem:[%s6 + $0x120] sm:$0xf]
    %v1185 = vld [vmem:[%s6 + $0x124] sm:$0xf]
    %v1186 = vld [vmem:[%s6 + $0x128] sm:$0xf]
    %v1187 = vld [vmem:[%s6 + $0x12c] sm:$0xf]
    %v1188 = vld [vmem:[%s6 + $0x130] sm:$0xf]
    %v1189 = vld [vmem:[%s6 + $0x134] sm:$0xf]
    %v1190 = vld [vmem:[%s6 + $0x138] sm:$0xf]
    %v1191 = vld [vmem:[%s6 + $0x13c] sm:$0xf]
    %v1208 = vunpack.c.l.b16 %v1176
    %v1209 = vunpack.c.l.b16 %v1177
    %v1210 = vunpack.c.l.b16 %v1178
    %v1211 = vunpack.c.l.b16 %v1179
    %v1212 = vunpack.c.l.b16 %v1180
    %v1213 = vunpack.c.l.b16 %v1181
    %v1214 = vunpack.c.l.b16 %v1182
    %v1215 = vunpack.c.l.b16 %v1183
    %v1216 = vunpack.c.l.b16 %v1184
    %v1217 = vunpack.c.l.b16 %v1185
    %v1218 = vunpack.c.l.b16 %v1186
    %v1219 = vunpack.c.l.b16 %v1187
    %v1220 = vunpack.c.l.b16 %v1188
    %v1221 = vunpack.c.l.b16 %v1189
    %v1222 = vunpack.c.l.b16 %v1190
    %v1223 = vunpack.c.l.b16 %v1191
    %v1224 = vpack.c.b16 %v1209, %v1208
    %v1225 = vpack.c.b16 %v1211, %v1210
    %v1226 = vpack.c.b16 %v1213, %v1212
    %v1227 = vpack.c.b16 %v1215, %v1214
    %v1228 = vpack.c.b16 %v1217, %v1216
    %v1229 = vpack.c.b16 %v1219, %v1218
    %v1230 = vpack.c.b16 %v1221, %v1220
    %v1231 = vpack.c.b16 %v1223, %v1222
    %1240 = vmatprep.subr.bf16.mxu0 0
    %1241 = vmatpush1.bf16.msra.mxu0 %v1224
    %1242 = vmatprep.subr.bf16.mxu0 0
    %1243 = vmatpush1.bf16.msra.mxu0 %v1225
    %1244 = vmatprep.subr.bf16.mxu0 0
    %1245 = vmatpush1.bf16.msra.mxu0 %v1226
    %1246 = vmatprep.subr.bf16.mxu0 0
    %1247 = vmatpush1.bf16.msra.mxu0 %v1227
    %1248 = vmatprep.subr.bf16.mxu0 0
    %1249 = vmatpush1.bf16.msra.mxu0 %v1228
    %1250 = vmatprep.subr.bf16.mxu0 0
    %1251 = vmatpush1.bf16.msra.mxu0 %v1229
    %1252 = vmatprep.subr.bf16.mxu0 0
    %1253 = vmatpush1.bf16.msra.mxu0 %v1230
    %1254 = vmatprep.subr.bf16.mxu0 0
    %1255 = vmatpush1.bf16.msra.mxu0 %v1231
    %1256 = vmatprep.subr.bf16.mxu0 0
    %1257 = vmatpush1.bf16.msra.mxu0 0
    %1258 = vmatprep.subr.bf16.mxu0 0
    %1259 = vmatpush1.bf16.msra.mxu0 0
    %1260 = vmatprep.subr.bf16.mxu0 0
    %1261 = vmatpush1.bf16.msra.mxu0 0
    %1262 = vmatprep.subr.bf16.mxu0 0
    %1263 = vmatpush1.bf16.msra.mxu0 0
    %1264 = vmatprep.subr.bf16.mxu0 0
    %1265 = vmatpush1.bf16.msra.mxu0 0
    %1266 = vmatprep.subr.bf16.mxu0 0
    %1267 = vmatpush1.bf16.msra.mxu0 0
    %1268 = vmatprep.subr.bf16.mxu0 0
    %1269 = vmatpush1.bf16.msra.mxu0 0
    %1270 = vmatprep.subr.bf16.mxu0 0
    %1271 = vmatpush1.bf16.msra.mxu0 0
    %1272 = vmatprep.mubr.bf16.mxu0 0
    %1273 = vmatmul.mubr.bf16.gmra.mrb[0].mxu0 %v1175
    %v1274 = vpop.f32.mrb[0].mxu0
    %v1275 = vadd.f32 0.0, %v1274
    %v1276 = vpop.f32.mrb[0].mxu0
    %v1277 = vpop.f32.mrb[0].mxu0
    %v1278 = vadd.f32 0.0, %v1277
    %v1279 = vpop.f32.mrb[0].mxu0
    %1280 = vdwg.mxu0
    %v1281 = vadd.f32 %v1097, %v1275
    %v1282 = vadd.f32 %v1098, %v1278
    %v1283 = vld [vmem:[%s4 + $0x14] sm:$0xf]
    %v1284 = vld [vmem:[%s4 + $0x34] sm:$0xf]
    %v1285 = vld [vmem:[%s4 + $0x54] sm:$0xf]
    %v1286 = vld [vmem:[%s4 + $0x74] sm:$0xf]
    %v1287 = vld [vmem:[%s5 + $0x5] sm:$0x1]
    %v1289 = vlaneseq
    %v1290 = vshrl.u32 %v1289, 7
    %v1291 = vsub.s32 0, %v1290
    %v1292 = vrot.slane %v1287, %v1291
    %v1298 = vunpack.c.l.b16 %v1283
    %v1299 = vunpack.c.l.b16 %v1284
    %v1300 = vunpack.c.l.b16 %v1285
    %v1301 = vunpack.c.l.b16 %v1286
    %v1302 = vpack.c.b16 %v1299, %v1298
    %v1303 = vpack.c.b16 %v1301, %v1300
    %1306 = vmatprep.subr.bf16.mxu0 0
    %1307 = vmatpush1.bf16.msra.mxu0 %v1302
    %1308 = vmatprep.subr.bf16.mxu0 0
    %1309 = vmatpush1.bf16.msra.mxu0 %v1303
    %1310 = vmatprep.subr.bf16.mxu0 0
    %1311 = vmatpush1.bf16.msra.mxu0 0
    %1312 = vmatprep.subr.bf16.mxu0 0
    %1313 = vmatpush1.bf16.msra.mxu0 0
    %1314 = vmatprep.subr.bf16.mxu0 0
    %1315 = vmatpush1.bf16.msra.mxu0 0
    %1316 = vmatprep.subr.bf16.mxu0 0
    %1317 = vmatpush1.bf16.msra.mxu0 0
    %1318 = vmatprep.subr.bf16.mxu0 0
    %1319 = vmatpush1.bf16.msra.mxu0 0
    %1320 = vmatprep.subr.bf16.mxu0 0
    %1321 = vmatpush1.bf16.msra.mxu0 0
    %1322 = vmatprep.subr.bf16.mxu0 0
    %1323 = vmatpush1.bf16.msra.mxu0 0
    %1324 = vmatprep.subr.bf16.mxu0 0
    %1325 = vmatpush1.bf16.msra.mxu0 0
    %1326 = vmatprep.subr.bf16.mxu0 0
    %1327 = vmatpush1.bf16.msra.mxu0 0
    %1328 = vmatprep.subr.bf16.mxu0 0
    %1329 = vmatpush1.bf16.msra.mxu0 0
    %1330 = vmatprep.subr.bf16.mxu0 0
    %1331 = vmatpush1.bf16.msra.mxu0 0
    %1332 = vmatprep.subr.bf16.mxu0 0
    %1333 = vmatpush1.bf16.msra.mxu0 0
    %1334 = vmatprep.subr.bf16.mxu0 0
    %1335 = vmatpush1.bf16.msra.mxu0 0
    %1336 = vmatprep.subr.bf16.mxu0 0
    %1337 = vmatpush1.bf16.msra.mxu0 0
    %1338 = vmatprep.mubr.bf16.mxu0 0
    %1339 = vmatmul.mubr.bf16.gmra.mrb[0].mxu0 %v305
    %v1340 = vpop.f32.mrb[0].mxu0
    %v1341 = vadd.f32 %v1292, %v1340
    %v1342 = vpop.f32.mrb[0].mxu0
    %v1343 = vpop.f32.mrb[0].mxu0
    %v1344 = vadd.f32 %v1292, %v1343
    %v1345 = vpop.f32.mrb[0].mxu0
    %1346 = vdwg.mxu0
    %v1347 = vmax.f32 %v1341, 0.0
    %v1348 = vmax.f32 %v1344, 0.0
    %1349 = vset.pattern.permute.xlu0 5
    %1350 = vperm.xlu0 %1349, %v277
    %v1351 = vpop.permute.xlu0 %1350
    %1353 = vset.pattern.permute.xlu0 5
    %1354 = vperm.xlu0 %1353, %v278
    %v1355 = vpop.permute.xlu0 %1354
    %v1357 = vmul.f32 %v1347, %v1351
    %v1358 = vmul.f32 %v1348, %v1355
    %v1359 = vpack.c.bf16 %v1358, %v1357
    %v1360 = vld [vmem:[%s6 + $0x140] sm:$0xf]
    %v1361 = vld [vmem:[%s6 + $0x144] sm:$0xf]
    %v1362 = vld [vmem:[%s6 + $0x148] sm:$0xf]
    %v1363 = vld [vmem:[%s6 + $0x14c] sm:$0xf]
    %v1364 = vld [vmem:[%s6 + $0x150] sm:$0xf]
    %v1365 = vld [vmem:[%s6 + $0x154] sm:$0xf]
    %v1366 = vld [vmem:[%s6 + $0x158] sm:$0xf]
    %v1367 = vld [vmem:[%s6 + $0x15c] sm:$0xf]
    %v1368 = vld [vmem:[%s6 + $0x160] sm:$0xf]
    %v1369 = vld [vmem:[%s6 + $0x164] sm:$0xf]
    %v1370 = vld [vmem:[%s6 + $0x168] sm:$0xf]
    %v1371 = vld [vmem:[%s6 + $0x16c] sm:$0xf]
    %v1372 = vld [vmem:[%s6 + $0x170] sm:$0xf]
    %v1373 = vld [vmem:[%s6 + $0x174] sm:$0xf]
    %v1374 = vld [vmem:[%s6 + $0x178] sm:$0xf]
    %v1375 = vld [vmem:[%s6 + $0x17c] sm:$0xf]
    %v1392 = vunpack.c.l.b16 %v1360
    %v1393 = vunpack.c.l.b16 %v1361
    %v1394 = vunpack.c.l.b16 %v1362
    %v1395 = vunpack.c.l.b16 %v1363
    %v1396 = vunpack.c.l.b16 %v1364
    %v1397 = vunpack.c.l.b16 %v1365
    %v1398 = vunpack.c.l.b16 %v1366
    %v1399 = vunpack.c.l.b16 %v1367
    %v1400 = vunpack.c.l.b16 %v1368
    %v1401 = vunpack.c.l.b16 %v1369
    %v1402 = vunpack.c.l.b16 %v1370
    %v1403 = vunpack.c.l.b16 %v1371
    %v1404 = vunpack.c.l.b16 %v1372
    %v1405 = vunpack.c.l.b16 %v1373
    %v1406 = vunpack.c.l.b16 %v1374
    %v1407 = vunpack.c.l.b16 %v1375
    %v1408 = vpack.c.b16 %v1393, %v1392
    %v1409 = vpack.c.b16 %v1395, %v1394
    %v1410 = vpack.c.b16 %v1397, %v1396
    %v1411 = vpack.c.b16 %v1399, %v1398
    %v1412 = vpack.c.b16 %v1401, %v1400
    %v1413 = vpack.c.b16 %v1403, %v1402
    %v1414 = vpack.c.b16 %v1405, %v1404
    %v1415 = vpack.c.b16 %v1407, %v1406
    %1424 = vmatprep.subr.bf16.mxu0 0
    %1425 = vmatpush1.bf16.msra.mxu0 %v1408
    %1426 = vmatprep.subr.bf16.mxu0 0
    %1427 = vmatpush1.bf16.msra.mxu0 %v1409
    %1428 = vmatprep.subr.bf16.mxu0 0
    %1429 = vmatpush1.bf16.msra.mxu0 %v1410
    %1430 = vmatprep.subr.bf16.mxu0 0
    %1431 = vmatpush1.bf16.msra.mxu0 %v1411
    %1432 = vmatprep.subr.bf16.mxu0 0
    %1433 = vmatpush1.bf16.msra.mxu0 %v1412
    %1434 = vmatprep.subr.bf16.mxu0 0
    %1435 = vmatpush1.bf16.msra.mxu0 %v1413
    %1436 = vmatprep.subr.bf16.mxu0 0
    %1437 = vmatpush1.bf16.msra.mxu0 %v1414
    %1438 = vmatprep.subr.bf16.mxu0 0
    %1439 = vmatpush1.bf16.msra.mxu0 %v1415
    %1440 = vmatprep.subr.bf16.mxu0 0
    %1441 = vmatpush1.bf16.msra.mxu0 0
    %1442 = vmatprep.subr.bf16.mxu0 0
    %1443 = vmatpush1.bf16.msra.mxu0 0
    %1444 = vmatprep.subr.bf16.mxu0 0
    %1445 = vmatpush1.bf16.msra.mxu0 0
    %1446 = vmatprep.subr.bf16.mxu0 0
    %1447 = vmatpush1.bf16.msra.mxu0 0
    %1448 = vmatprep.subr.bf16.mxu0 0
    %1449 = vmatpush1.bf16.msra.mxu0 0
    %1450 = vmatprep.subr.bf16.mxu0 0
    %1451 = vmatpush1.bf16.msra.mxu0 0
    %1452 = vmatprep.subr.bf16.mxu0 0
    %1453 = vmatpush1.bf16.msra.mxu0 0
    %1454 = vmatprep.subr.bf16.mxu0 0
    %1455 = vmatpush1.bf16.msra.mxu0 0
    %1456 = vmatprep.mubr.bf16.mxu0 0
    %1457 = vmatmul.mubr.bf16.gmra.mrb[0].mxu0 %v1359
    %v1458 = vpop.f32.mrb[0].mxu0
    %v1459 = vadd.f32 0.0, %v1458
    %v1460 = vpop.f32.mrb[0].mxu0
    %v1461 = vpop.f32.mrb[0].mxu0
    %v1462 = vadd.f32 0.0, %v1461
    %v1463 = vpop.f32.mrb[0].mxu0
    %1464 = vdwg.mxu0
    %v1465 = vadd.f32 %v1281, %v1459
    %v1466 = vadd.f32 %v1282, %v1462
    %v1467 = vld [vmem:[%s4 + $0x18] sm:$0xf]
    %v1468 = vld [vmem:[%s4 + $0x38] sm:$0xf]
    %v1469 = vld [vmem:[%s4 + $0x58] sm:$0xf]
    %v1470 = vld [vmem:[%s4 + $0x78] sm:$0xf]
    %v1471 = vld [vmem:[%s5 + $0x6] sm:$0x1]
    %v1473 = vlaneseq
    %v1474 = vshrl.u32 %v1473, 7
    %v1475 = vsub.s32 0, %v1474
    %v1476 = vrot.slane %v1471, %v1475
    %v1482 = vunpack.c.l.b16 %v1467
    %v1483 = vunpack.c.l.b16 %v1468
    %v1484 = vunpack.c.l.b16 %v1469
    %v1485 = vunpack.c.l.b16 %v1470
    %v1486 = vpack.c.b16 %v1483, %v1482
    %v1487 = vpack.c.b16 %v1485, %v1484
    %1490 = vmatprep.subr.bf16.mxu0 0
    %1491 = vmatpush1.bf16.msra.mxu0 %v1486
    %1492 = vmatprep.subr.bf16.mxu0 0
    %1493 = vmatpush1.bf16.msra.mxu0 %v1487
    %1494 = vmatprep.subr.bf16.mxu0 0
    %1495 = vmatpush1.bf16.msra.mxu0 0
    %1496 = vmatprep.subr.bf16.mxu0 0
    %1497 = vmatpush1.bf16.msra.mxu0 0
    %1498 = vmatprep.subr.bf16.mxu0 0
    %1499 = vmatpush1.bf16.msra.mxu0 0
    %1500 = vmatprep.subr.bf16.mxu0 0
    %1501 = vmatpush1.bf16.msra.mxu0 0
    %1502 = vmatprep.subr.bf16.mxu0 0
    %1503 = vmatpush1.bf16.msra.mxu0 0
    %1504 = vmatprep.subr.bf16.mxu0 0
    %1505 = vmatpush1.bf16.msra.mxu0 0
    %1506 = vmatprep.subr.bf16.mxu0 0
    %1507 = vmatpush1.bf16.msra.mxu0 0
    %1508 = vmatprep.subr.bf16.mxu0 0
    %1509 = vmatpush1.bf16.msra.mxu0 0
    %1510 = vmatprep.subr.bf16.mxu0 0
    %1511 = vmatpush1.bf16.msra.mxu0 0
    %1512 = vmatprep.subr.bf16.mxu0 0
    %1513 = vmatpush1.bf16.msra.mxu0 0
    %1514 = vmatprep.subr.bf16.mxu0 0
    %1515 = vmatpush1.bf16.msra.mxu0 0
    %1516 = vmatprep.subr.bf16.mxu0 0
    %1517 = vmatpush1.bf16.msra.mxu0 0
    %1518 = vmatprep.subr.bf16.mxu0 0
    %1519 = vmatpush1.bf16.msra.mxu0 0
    %1520 = vmatprep.subr.bf16.mxu0 0
    %1521 = vmatpush1.bf16.msra.mxu0 0
    %1522 = vmatprep.mubr.bf16.mxu0 0
    %1523 = vmatmul.mubr.bf16.gmra.mrb[0].mxu0 %v305
    %v1524 = vpop.f32.mrb[0].mxu0
    %v1525 = vadd.f32 %v1476, %v1524
    %v1526 = vpop.f32.mrb[0].mxu0
    %v1527 = vpop.f32.mrb[0].mxu0
    %v1528 = vadd.f32 %v1476, %v1527
    %v1529 = vpop.f32.mrb[0].mxu0
    %1530 = vdwg.mxu0
    %v1531 = vmax.f32 %v1525, 0.0
    %v1532 = vmax.f32 %v1528, 0.0
    %1533 = vset.pattern.permute.xlu0 6
    %1534 = vperm.xlu0 %1533, %v277
    %v1535 = vpop.permute.xlu0 %1534
    %1537 = vset.pattern.permute.xlu0 6
    %1538 = vperm.xlu0 %1537, %v278
    %v1539 = vpop.permute.xlu0 %1538
    %v1541 = vmul.f32 %v1531, %v1535
    %v1542 = vmul.f32 %v1532, %v1539
    %v1543 = vpack.c.bf16 %v1542, %v1541
    %v1544 = vld [vmem:[%s6 + $0x180] sm:$0xf]
    %v1545 = vld [vmem:[%s6 + $0x184] sm:$0xf]
    %v1546 = vld [vmem:[%s6 + $0x188] sm:$0xf]
    %v1547 = vld [vmem:[%s6 + $0x18c] sm:$0xf]
    %v1548 = vld [vmem:[%s6 + $0x190] sm:$0xf]
    %v1549 = vld [vmem:[%s6 + $0x194] sm:$0xf]
    %v1550 = vld [vmem:[%s6 + $0x198] sm:$0xf]
    %v1551 = vld [vmem:[%s6 + $0x19c] sm:$0xf]
    %v1552 = vld [vmem:[%s6 + $0x1a0] sm:$0xf]
    %v1553 = vld [vmem:[%s6 + $0x1a4] sm:$0xf]
    %v1554 = vld [vmem:[%s6 + $0x1a8] sm:$0xf]
    %v1555 = vld [vmem:[%s6 + $0x1ac] sm:$0xf]
    %v1556 = vld [vmem:[%s6 + $0x1b0] sm:$0xf]
    %v1557 = vld [vmem:[%s6 + $0x1b4] sm:$0xf]
    %v1558 = vld [vmem:[%s6 + $0x1b8] sm:$0xf]
    %v1559 = vld [vmem:[%s6 + $0x1bc] sm:$0xf]
    %v1576 = vunpack.c.l.b16 %v1544
    %v1577 = vunpack.c.l.b16 %v1545
    %v1578 = vunpack.c.l.b16 %v1546
    %v1579 = vunpack.c.l.b16 %v1547
    %v1580 = vunpack.c.l.b16 %v1548
    %v1581 = vunpack.c.l.b16 %v1549
    %v1582 = vunpack.c.l.b16 %v1550
    %v1583 = vunpack.c.l.b16 %v1551
    %v1584 = vunpack.c.l.b16 %v1552
    %v1585 = vunpack.c.l.b16 %v1553
    %v1586 = vunpack.c.l.b16 %v1554
    %v1587 = vunpack.c.l.b16 %v1555
    %v1588 = vunpack.c.l.b16 %v1556
    %v1589 = vunpack.c.l.b16 %v1557
    %v1590 = vunpack.c.l.b16 %v1558
    %v1591 = vunpack.c.l.b16 %v1559
    %v1592 = vpack.c.b16 %v1577, %v1576
    %v1593 = vpack.c.b16 %v1579, %v1578
    %v1594 = vpack.c.b16 %v1581, %v1580
    %v1595 = vpack.c.b16 %v1583, %v1582
    %v1596 = vpack.c.b16 %v1585, %v1584
    %v1597 = vpack.c.b16 %v1587, %v1586
    %v1598 = vpack.c.b16 %v1589, %v1588
    %v1599 = vpack.c.b16 %v1591, %v1590
    %1608 = vmatprep.subr.bf16.mxu0 0
    %1609 = vmatpush1.bf16.msra.mxu0 %v1592
    %1610 = vmatprep.subr.bf16.mxu0 0
    %1611 = vmatpush1.bf16.msra.mxu0 %v1593
    %1612 = vmatprep.subr.bf16.mxu0 0
    %1613 = vmatpush1.bf16.msra.mxu0 %v1594
    %1614 = vmatprep.subr.bf16.mxu0 0
    %1615 = vmatpush1.bf16.msra.mxu0 %v1595
    %1616 = vmatprep.subr.bf16.mxu0 0
    %1617 = vmatpush1.bf16.msra.mxu0 %v1596
    %1618 = vmatprep.subr.bf16.mxu0 0
    %1619 = vmatpush1.bf16.msra.mxu0 %v1597
    %1620 = vmatprep.subr.bf16.mxu0 0
    %1621 = vmatpush1.bf16.msra.mxu0 %v1598
    %1622 = vmatprep.subr.bf16.mxu0 0
    %1623 = vmatpush1.bf16.msra.mxu0 %v1599
    %1624 = vmatprep.subr.bf16.mxu0 0
    %1625 = vmatpush1.bf16.msra.mxu0 0
    %1626 = vmatprep.subr.bf16.mxu0 0
    %1627 = vmatpush1.bf16.msra.mxu0 0
    %1628 = vmatprep.subr.bf16.mxu0 0
    %1629 = vmatpush1.bf16.msra.mxu0 0
    %1630 = vmatprep.subr.bf16.mxu0 0
    %1631 = vmatpush1.bf16.msra.mxu0 0
    %1632 = vmatprep.subr.bf16.mxu0 0
    %1633 = vmatpush1.bf16.msra.mxu0 0
    %1634 = vmatprep.subr.bf16.mxu0 0
    %1635 = vmatpush1.bf16.msra.mxu0 0
    %1636 = vmatprep.subr.bf16.mxu0 0
    %1637 = vmatpush1.bf16.msra.mxu0 0
    %1638 = vmatprep.subr.bf16.mxu0 0
    %1639 = vmatpush1.bf16.msra.mxu0 0
    %1640 = vmatprep.mubr.bf16.mxu0 0
    %1641 = vmatmul.mubr.bf16.gmra.mrb[0].mxu0 %v1543
    %v1642 = vpop.f32.mrb[0].mxu0
    %v1643 = vadd.f32 0.0, %v1642
    %v1644 = vpop.f32.mrb[0].mxu0
    %v1645 = vpop.f32.mrb[0].mxu0
    %v1646 = vadd.f32 0.0, %v1645
    %v1647 = vpop.f32.mrb[0].mxu0
    %1648 = vdwg.mxu0
    %v1649 = vadd.f32 %v1465, %v1643
    %v1650 = vadd.f32 %v1466, %v1646
    %v1651 = vld [vmem:[%s4 + $0x1c] sm:$0xf]
    %v1652 = vld [vmem:[%s4 + $0x3c] sm:$0xf]
    %v1653 = vld [vmem:[%s4 + $0x5c] sm:$0xf]
    %v1654 = vld [vmem:[%s4 + $0x7c] sm:$0xf]
    %v1655 = vld [vmem:[%s5 + $0x7] sm:$0x1]
    %v1657 = vlaneseq
    %v1658 = vshrl.u32 %v1657, 7
    %v1659 = vsub.s32 0, %v1658
    %v1660 = vrot.slane %v1655, %v1659
    %v1666 = vunpack.c.l.b16 %v1651
    %v1667 = vunpack.c.l.b16 %v1652
    %v1668 = vunpack.c.l.b16 %v1653
    %v1669 = vunpack.c.l.b16 %v1654
    %v1670 = vpack.c.b16 %v1667, %v1666
    %v1671 = vpack.c.b16 %v1669, %v1668
    %1674 = vmatprep.subr.bf16.mxu0 0
    %1675 = vmatpush1.bf16.msra.mxu0 %v1670
    %1676 = vmatprep.subr.bf16.mxu0 0
    %1677 = vmatpush1.bf16.msra.mxu0 %v1671
    %1678 = vmatprep.subr.bf16.mxu0 0
    %1679 = vmatpush1.bf16.msra.mxu0 0
    %1680 = vmatprep.subr.bf16.mxu0 0
    %1681 = vmatpush1.bf16.msra.mxu0 0
    %1682 = vmatprep.subr.bf16.mxu0 0
    %1683 = vmatpush1.bf16.msra.mxu0 0
    %1684 = vmatprep.subr.bf16.mxu0 0
    %1685 = vmatpush1.bf16.msra.mxu0 0
    %1686 = vmatprep.subr.bf16.mxu0 0
    %1687 = vmatpush1.bf16.msra.mxu0 0
    %1688 = vmatprep.subr.bf16.mxu0 0
    %1689 = vmatpush1.bf16.msra.mxu0 0
    %1690 = vmatprep.subr.bf16.mxu0 0
    %1691 = vmatpush1.bf16.msra.mxu0 0
    %1692 = vmatprep.subr.bf16.mxu0 0
    %1693 = vmatpush1.bf16.msra.mxu0 0
    %1694 = vmatprep.subr.bf16.mxu0 0
    %1695 = vmatpush1.bf16.msra.mxu0 0
    %1696 = vmatprep.subr.bf16.mxu0 0
    %1697 = vmatpush1.bf16.msra.mxu0 0
    %1698 = vmatprep.subr.bf16.mxu0 0
    %1699 = vmatpush1.bf16.msra.mxu0 0
    %1700 = vmatprep.subr.bf16.mxu0 0
    %1701 = vmatpush1.bf16.msra.mxu0 0
    %1702 = vmatprep.subr.bf16.mxu0 0
    %1703 = vmatpush1.bf16.msra.mxu0 0
    %1704 = vmatprep.subr.bf16.mxu0 0
    %1705 = vmatpush1.bf16.msra.mxu0 0
    %1706 = vmatprep.mubr.bf16.mxu0 0
    %1707 = vmatmul.mubr.bf16.gmra.mrb[0].mxu0 %v305
    %v1708 = vpop.f32.mrb[0].mxu0
    %v1709 = vadd.f32 %v1660, %v1708
    %v1710 = vpop.f32.mrb[0].mxu0
    %v1711 = vpop.f32.mrb[0].mxu0
    %v1712 = vadd.f32 %v1660, %v1711
    %v1713 = vpop.f32.mrb[0].mxu0
    %1714 = vdwg.mxu0
    %v1715 = vmax.f32 %v1709, 0.0
    %v1716 = vmax.f32 %v1712, 0.0
    %1717 = vset.pattern.permute.xlu0 7
    %1718 = vperm.xlu0 %1717, %v277
    %v1719 = vpop.permute.xlu0 %1718
    %1721 = vset.pattern.permute.xlu0 7
    %1722 = vperm.xlu0 %1721, %v278
    %v1723 = vpop.permute.xlu0 %1722
    %v1725 = vmul.f32 %v1715, %v1719
    %v1726 = vmul.f32 %v1716, %v1723
    %v1727 = vpack.c.bf16 %v1726, %v1725
    %v1728 = vld [vmem:[%s6 + $0x1c0] sm:$0xf]
    %v1729 = vld [vmem:[%s6 + $0x1c4] sm:$0xf]
    %v1730 = vld [vmem:[%s6 + $0x1c8] sm:$0xf]
    %v1731 = vld [vmem:[%s6 + $0x1cc] sm:$0xf]
    %v1732 = vld [vmem:[%s6 + $0x1d0] sm:$0xf]
    %v1733 = vld [vmem:[%s6 + $0x1d4] sm:$0xf]
    %v1734 = vld [vmem:[%s6 + $0x1d8] sm:$0xf]
    %v1735 = vld [vmem:[%s6 + $0x1dc] sm:$0xf]
    %v1736 = vld [vmem:[%s6 + $0x1e0] sm:$0xf]
    %v1737 = vld [vmem:[%s6 + $0x1e4] sm:$0xf]
    %v1738 = vld [vmem:[%s6 + $0x1e8] sm:$0xf]
    %v1739 = vld [vmem:[%s6 + $0x1ec] sm:$0xf]
    %v1740 = vld [vmem:[%s6 + $0x1f0] sm:$0xf]
    %v1741 = vld [vmem:[%s6 + $0x1f4] sm:$0xf]
    %v1742 = vld [vmem:[%s6 + $0x1f8] sm:$0xf]
    %v1743 = vld [vmem:[%s6 + $0x1fc] sm:$0xf]
    %v1760 = vunpack.c.l.b16 %v1728
    %v1761 = vunpack.c.l.b16 %v1729
    %v1762 = vunpack.c.l.b16 %v1730
    %v1763 = vunpack.c.l.b16 %v1731
    %v1764 = vunpack.c.l.b16 %v1732
    %v1765 = vunpack.c.l.b16 %v1733
    %v1766 = vunpack.c.l.b16 %v1734
    %v1767 = vunpack.c.l.b16 %v1735
    %v1768 = vunpack.c.l.b16 %v1736
    %v1769 = vunpack.c.l.b16 %v1737
    %v1770 = vunpack.c.l.b16 %v1738
    %v1771 = vunpack.c.l.b16 %v1739
    %v1772 = vunpack.c.l.b16 %v1740
    %v1773 = vunpack.c.l.b16 %v1741
    %v1774 = vunpack.c.l.b16 %v1742
    %v1775 = vunpack.c.l.b16 %v1743
    %v1776 = vpack.c.b16 %v1761, %v1760
    %v1777 = vpack.c.b16 %v1763, %v1762
    %v1778 = vpack.c.b16 %v1765, %v1764
    %v1779 = vpack.c.b16 %v1767, %v1766
    %v1780 = vpack.c.b16 %v1769, %v1768
    %v1781 = vpack.c.b16 %v1771, %v1770
    %v1782 = vpack.c.b16 %v1773, %v1772
    %v1783 = vpack.c.b16 %v1775, %v1774
    %1792 = vmatprep.subr.bf16.mxu0 0
    %1793 = vmatpush1.bf16.msra.mxu0 %v1776
    %1794 = vmatprep.subr.bf16.mxu0 0
    %1795 = vmatpush1.bf16.msra.mxu0 %v1777
    %1796 = vmatprep.subr.bf16.mxu0 0
    %1797 = vmatpush1.bf16.msra.mxu0 %v1778
    %1798 = vmatprep.subr.bf16.mxu0 0
    %1799 = vmatpush1.bf16.msra.mxu0 %v1779
    %1800 = vmatprep.subr.bf16.mxu0 0
    %1801 = vmatpush1.bf16.msra.mxu0 %v1780
    %1802 = vmatprep.subr.bf16.mxu0 0
    %1803 = vmatpush1.bf16.msra.mxu0 %v1781
    %1804 = vmatprep.subr.bf16.mxu0 0
    %1805 = vmatpush1.bf16.msra.mxu0 %v1782
    %1806 = vmatprep.subr.bf16.mxu0 0
    %1807 = vmatpush1.bf16.msra.mxu0 %v1783
    %1808 = vmatprep.subr.bf16.mxu0 0
    %1809 = vmatpush1.bf16.msra.mxu0 0
    %1810 = vmatprep.subr.bf16.mxu0 0
    %1811 = vmatpush1.bf16.msra.mxu0 0
    %1812 = vmatprep.subr.bf16.mxu0 0
    %1813 = vmatpush1.bf16.msra.mxu0 0
    %1814 = vmatprep.subr.bf16.mxu0 0
    %1815 = vmatpush1.bf16.msra.mxu0 0
    %1816 = vmatprep.subr.bf16.mxu0 0
    %1817 = vmatpush1.bf16.msra.mxu0 0
    %1818 = vmatprep.subr.bf16.mxu0 0
    %1819 = vmatpush1.bf16.msra.mxu0 0
    %1820 = vmatprep.subr.bf16.mxu0 0
    %1821 = vmatpush1.bf16.msra.mxu0 0
    %1822 = vmatprep.subr.bf16.mxu0 0
    %1823 = vmatpush1.bf16.msra.mxu0 0
    %1824 = vmatprep.mubr.bf16.mxu0 0
    %1825 = vmatmul.mubr.bf16.gmra.mrb[0].mxu0 %v1727
    %v1826 = vpop.f32.mrb[0].mxu0
    %v1827 = vadd.f32 0.0, %v1826
    %v1828 = vpop.f32.mrb[0].mxu0
    %v1829 = vpop.f32.mrb[0].mxu0
    %v1830 = vadd.f32 0.0, %v1829
    %v1831 = vpop.f32.mrb[0].mxu0
    %1832 = vdwg.mxu0
    %v1833 = vadd.f32 %v1649, %v1827
    %v1834 = vadd.f32 %v1650, %v1830
    %1835 = vst.msk [vmem:[#allocation2] sm:$0xff] %vm44, %v1833
    %1836 = vst.msk [vmem:[#allocation2 + $0x8] sm:$0xff] %vm44, %v1834
    // Predicated region
    $region34: #{tpu_custom_call.1} parent=1 // pred_check
      _
    $region35: #{tpu_custom_call.1} parent=1 // pred_check_branch
      %1838 = sbr.rel (0) target = $region37
    $region36: #{tpu_custom_call.1} parent=1 // pred_region
      %s1840 = ssub.s32 256, 256
      %1841 = vsyncadd [#allocation3], %s1840
      %s1842 = sshll.u32 [#allocation2], 4
      %s1843 = int_to_ptr.vmem [resolvable:$true] %s1842
      %1848 = dma.vmem_to_hbm [thread:$0]  %s1843, 256, %s8, [#allocation3], 128, 128, 8
    $region37: #{tpu_custom_call.1} parent=1 // pred_fallthru
      _
    // Predicated region
    $region38: #{tpu_custom_call.1} parent=1 // pred_check
      _
    $region39: #{tpu_custom_call.1} parent=1 // pred_check_branch
      %1850 = sbr.rel (0) target = $region41
    $region40: #{tpu_custom_call.1} parent=1 // pred_region
      %1851 = dma.done [#allocation3], 256
    $region41: #{tpu_custom_call.1} parent=1 // pred_fallthru
      _
    %1852 = vsyncpa [#allocation3], 1

</llo_original>
